<compile_context>
chip_gen: v7x
topology: tpu7x:2x2x1
jax: 0.10.0
libtpu: 0.0.40
codegen_flags: <defaults>
</compile_context>

<pallas_src>
from functools import partial

import numpy as np
import jax
import jax.numpy as jnp
from jax.experimental import pallas as pl
from jax.experimental.pallas import tpu as pltpu


_NEG_PAD = -1.0e30            # similarity assigned to zero-padded train columns
_VMEM_BUDGET = 40 * 2**20     # conservative working-set target (fits v7x 64 MiB VMEM)


def _round_up(x, m):
    return (x + m - 1) // m * m


def _vmem_estimate(tile_b, tile_n, d_aug, c_pad, n_out, max_k_pad):
    """Rough VMEM working-set estimate (double-buffered blocks + temps), in bytes."""
    d_sub = _round_up(d_aug, 16)                       # bf16 sublane packing
    blocks = 2 * (tile_b * d_sub * 2                   # query tile (bf16)
                  + d_sub * tile_n * 2                 # train_T tile (bf16)
                  + 8 * tile_n * 4)                    # labels tile (i32, sublane pad)
    out = 2 * n_out * tile_b * c_pad * 4               # resident output block
    scratch = tile_b * max_k_pad * (4 + 4)             # running top-k values + labels
    w = max_k_pad + tile_n
    temps = 4 * tile_b * w * 4 + 2 * tile_b * c_pad * 4
    return blocks + out + scratch + temps


def knn_kernel(feat_ref, trainT_ref, labels_ref, probas_ref,
               run_vals_ref, run_labs_ref, *,
               nb_knn, max_k, T, c_pad, label_bits):
    n_idx = pl.program_id(1)
    n_last = pl.num_programs(1) - 1

    # ---- init running top-k at the first train tile ------------------------------
    @pl.when(n_idx == 0)
    def _init():
        run_vals_ref[...] = jnp.full(run_vals_ref.shape, -jnp.inf, jnp.float32)
        run_labs_ref[...] = jnp.zeros(run_labs_ref.shape, jnp.int32)

    # ---- similarity for this tile: bf16 operands, f32 accumulation (MXU) ---------
    # Padded train columns come out at ~-1e30 via the host-side pad-mask feature row,
    # so no per-tile masking is needed here.
    sims = jnp.dot(feat_ref[...], trainT_ref[...],
                   preferred_element_type=jnp.float32)             # [tB, tN] f32
    tB, tN = sims.shape
    kpad = run_vals_ref.shape[1]                                    # max_k_pad
    W = kpad + tN
    mult = 1 << label_bits
    lab_mask = mult - 1
    big = jnp.int32(W * mult)                                       # > any packed key

    # ---- improvement test: does this tile beat the current k-th value? -----------
    kth = run_vals_ref[:, max_k - 1:max_k]                          # [tB, 1]
    needs_merge = jnp.any(sims > kth)

    # ---- merge running top-k with this tile (streaming top-k invariant) ----------
    @pl.when(needs_merge)
    def _merge():
        cur = jnp.concatenate([run_vals_ref[...], sims], axis=-1)   # [tB, W] f32
        lab_cat = jnp.concatenate(
            [run_labs_ref[...],
             jnp.broadcast_to(labels_ref[...], (tB, tN))], axis=-1)  # [tB, W] i32
        col = jax.lax.broadcasted_iota(jnp.int32, (1, W), 1)
        packed = col * mult + lab_cat                                # unique per column
        work = cur
        for kk in range(max_k):                                      # static unroll
            m = jnp.max(work, axis=-1, keepdims=True)                # XLU reduce 1
            pk = jnp.min(jnp.where(work == m, packed, big),
                         axis=-1, keepdims=True)                     # XLU reduce 2
            run_vals_ref[:, kk:kk + 1] = m                           # direct stores:
            run_labs_ref[:, kk:kk + 1] = pk & lab_mask               # no live-list temps
            work = jnp.where(packed == pk, -jnp.inf, work)           # remove 1 column

    # ---- epilogue on last tile: softmax weights + per-k class prefix sums --------
    @pl.when(n_idx == n_last)
    def _epilogue():
        topk_sims = run_vals_ref[...]                                # [tB, kpad] f32
        nlabs = run_labs_ref[...]                                    # [tB, kpad] i32
        z = topk_sims * (1.0 / T)
        z = z - jnp.max(z, axis=-1, keepdims=True)
        e = jnp.exp(z)                                               # -inf tail -> 0
        w = e * pl.reciprocal(jnp.sum(e, axis=-1, keepdims=True), approx=True)

        cls = jax.lax.broadcasted_iota(jnp.int32, (1, c_pad), 1)     # [1, C_pad]
        acc = jnp.zeros((tB, c_pad), jnp.float32)
        slot = {k: j for j, k in enumerate(nb_knn)}
        for kk in range(max_k):                                      # running prefix sum
            acc = acc + jnp.where(nlabs[:, kk:kk + 1] == cls,
                                  w[:, kk:kk + 1], 0.0)
            if (kk + 1) in slot:
                probas_ref[slot[kk + 1]] = acc                       # lane-dense store


def knn_prepare(train_features, train_labels, *, nb_knn, T, num_classes,
                tile_b=None, tile_n=None):
    """One-time preprocessing of the train set (transpose / pad / bf16 cast) plus
    static kernel configuration.  Returns a state reused by every knn_forward call."""
    nb_knn = tuple(int(k) for k in nb_knn)
    max_k = max(nb_knn)
    n_out = len(nb_knn)
    N, D = train_features.shape
    assert max_k <= N

    num_classes = int(num_classes)
    c_pad = _round_up(num_classes, 128)                 # lane-dense class stores
    max_k_pad = _round_up(max_k, 128)                   # lane-aligned carried top-k
    d_aug = D + 1                                        # + pad-mask feature dimension

    # --- tile selection under a VMEM budget ---------------------------------------
    tb_for_budget = tile_b if tile_b is not None else 256
    n_cap = _round_up(N, 128)
    if tile_n is None:
        cands = sorted({c for c in (128, 256, 512, 1024, 2048) if c <= n_cap}
                       | {min(n_cap, 2048)})
        chosen = 128
        for c in cands:
            if _vmem_estimate(tb_for_budget, c, d_aug, c_pad,
                              n_out, max_k_pad) <= _VMEM_BUDGET:
                chosen = c
        tile_n = chosen
    else:
        tile_n = min(_round_up(int(tile_n), 128), n_cap)
    n_pad = _round_up(N, tile_n)

    label_bits = max(1, (num_classes - 1).bit_length())
    assert (max_k_pad + tile_n) * (1 << label_bits) < 2**31

    est = _vmem_estimate(tb_for_budget, tile_n, d_aug, c_pad, n_out, max_k_pad)
    vmem_limit = int(min(max(est + (8 << 20), 32 << 20), 60 << 20))

    # --- train-side preprocessing (done once, reused by every forward) ------------
    tT = jnp.asarray(train_features, jnp.float32).T                   # [D, N]
    tT = jnp.pad(tT, ((0, 0), (0, n_pad - N)))                        # [D, N_pad]
    pad_row = jnp.where(jnp.arange(n_pad) < N, 0.0, _NEG_PAD).reshape(1, n_pad)
    train_T_aug = jnp.concatenate([tT, pad_row], axis=0).astype(jnp.bfloat16)
    labels2d = jnp.pad(jnp.asarray(train_labels, jnp.int32).reshape(1, N),
                       ((0, 0), (0, n_pad - N)))                      # [1, N_pad]

    kernel = partial(knn_kernel, nb_knn=nb_knn, max_k=max_k, T=float(T),
                     c_pad=c_pad, label_bits=label_bits)

    @jax.jit
    def _fwd(features_rank, trainT, labels):
        B = features_rank.shape[0]
        if tile_b is not None:
            tb = int(tile_b)
        else:
            # fill the 256-wide MXU / halve train re-streaming when the batch spans
            # >= 2 tiles of 128; keep 128 for a single batch tile (megacore on v7x).
            tb = 256 if _round_up(B, 128) // 128 >= 2 else 128
        b_pad = _round_up(B, tb)

        f = jnp.asarray(features_rank, jnp.float32)
        f = jnp.concatenate([f, jnp.ones((B, 1), jnp.float32)], axis=1)  # pad-mask dim
        f = jnp.pad(f, ((0, b_pad - B), (0, 0))).astype(jnp.bfloat16)    # [b_pad, D+1]

        grid = (b_pad // tb, n_pad // tile_n)
        probas = pl.pallas_call(
            kernel,
            out_shape=jax.ShapeDtypeStruct((n_out, b_pad, c_pad), jnp.float32),
            grid_spec=pltpu.PrefetchScalarGridSpec(
                num_scalar_prefetch=0,
                grid=grid,
                in_specs=[
                    pl.BlockSpec((tb, d_aug), lambda b, n: (b, 0)),      # queries
                    pl.BlockSpec((d_aug, tile_n), lambda b, n: (0, n)),  # train_T tile
                    pl.BlockSpec((1, tile_n), lambda b, n: (0, n)),      # labels tile
                ],
                out_specs=pl.BlockSpec((n_out, tb, c_pad),
                                       lambda b, n: (0, b, 0)),          # resident in n
                scratch_shapes=[
                    pltpu.VMEM((tb, max_k_pad), jnp.float32),   # running top-k values
                    pltpu.VMEM((tb, max_k_pad), jnp.int32),     # running top-k labels
                ]),
            compiler_params=pltpu.CompilerParams(
                dimension_semantics=("parallel", "arbitrary"),
                vmem_limit_bytes=vmem_limit),
        )(f, trainT, labels)
        return probas[:, :B, :num_classes]

    return {
        "train_T": train_T_aug,
        "labels": labels2d,
        "nb_knn": nb_knn,
        "cfg": dict(max_k=max_k, max_k_pad=max_k_pad, c_pad=c_pad, tile_n=tile_n,
                    n_pad=n_pad, d_aug=d_aug, label_bits=label_bits,
                    vmem_limit=vmem_limit),
        "_fwd": _fwd,
    }


def knn_forward(state, features_rank):
    """JAX equivalent of KnnModule.forward for global_size == 1."""
    probas = state["_fwd"](features_rank, state["train_T"], state["labels"])
    # Glue only: split the stacked per-k results into the dict the module returns.
    return {k: probas[j] for j, k in enumerate(state["nb_knn"])}


def knn_forward_ref(features_rank, train_features, train_labels, *, nb_knn, T,
                    num_classes):
    """Pure-JAX reference of the single-rank forward pass (same bf16 matmul numerics)."""
    f = jnp.asarray(features_rank, jnp.float32).astype(jnp.bfloat16)
    t = jnp.asarray(train_features, jnp.float32).astype(jnp.bfloat16)
    sims = jnp.dot(f, t.T, preferred_element_type=jnp.float32)
    max_k = max(nb_knn)
    topk_sims, idx = jax.lax.top_k(sims, max_k)
    nlab = jnp.asarray(train_labels, jnp.int32)[idx]
    w = jax.nn.softmax(topk_sims / T, axis=1)
    mm = jax.nn.one_hot(nlab, num_classes, dtype=jnp.float32) * w[:, :, None]
    return {k: jnp.sum(mm[:, :k, :], axis=1) for k in nb_knn}


if __name__ == "__main__":
    # Small shapes chosen so that batch padding, multiple train tiles, train padding,
    # class padding, the merge-skip path and the tile_b=256 path are all exercised.
    B, D, N, C = 8, 32, 200, 16
    nb_knn = (1, 2, 4)
    T = 0.07

    key = jax.random.PRNGKey(0)
    kf, kt, kl, kf2 = jax.random.split(key, 4)
    features_rank = jax.random.normal(kf, (B, D), dtype=jnp.float32)
    train_features = jax.random.normal(kt, (N, D), dtype=jnp.float32)
    train_labels = jax.random.randint(kl, (N,), 0, C, dtype=jnp.int32)

    # (a) forced small tile_n -> multiple train tiles, streaming merge + skip path
    state_small = knn_prepare(train_features, train_labels, nb_knn=nb_knn, T=T,
                              num_classes=C, tile_n=128)
    out_small = knn_forward(state_small, features_rank)
    jax.block_until_ready(out_small)

    # (b) default auto-tiled config (single train tile here)
    state = knn_prepare(train_features, train_labels, nb_knn=nb_knn, T=T,
                        num_classes=C)
    out = knn_forward(state, features_rank)
    jax.block_until_ready(out)

    # (c) batch > 128 on the cached state -> auto tile_b=256 + batch padding
    features_big = jax.random.normal(kf2, (200, D), dtype=jnp.float32)
    out_big = knn_forward(state_small, features_big)
    jax.block_until_ready(out_big)

    ref = knn_forward_ref(features_rank, train_features, train_labels,
                          nb_knn=nb_knn, T=T, num_classes=C)
    ref_big = knn_forward_ref(features_big, train_features, train_labels,
                              nb_knn=nb_knn, T=T, num_classes=C)
    for k in nb_knn:
        np.testing.assert_allclose(np.asarray(out_small[k]), np.asarray(ref[k]),
                                   rtol=5e-3, atol=5e-3)
        np.testing.assert_allclose(np.asarray(out[k]), np.asarray(ref[k]),
                                   rtol=5e-3, atol=5e-3)
        np.testing.assert_allclose(np.asarray(out_big[k]), np.asarray(ref_big[k]),
                                   rtol=5e-3, atol=5e-3)

    print("KERNEL_OK")
</pallas_src>

<mosaic_0001>
module attributes {stable_mosaic.version = 11 : i64} {
  func.func @knn_kernel(%arg0: i32, %arg1: i32, %arg2: memref<128x33xbf16, #tpu.memory_space<vmem>>, %arg3: memref<33x128xbf16, #tpu.memory_space<vmem>>, %arg4: memref<1x128xi32, #tpu.memory_space<vmem>>, %arg5: memref<3x128x128xf32, #tpu.memory_space<vmem>>, %arg6: memref<128x128xf32, #tpu.memory_space<vmem>>, %arg7: memref<128x128xi32, #tpu.memory_space<vmem>>) attributes {dimension_semantics = [#tpu.dimension_semantics<parallel>, #tpu.dimension_semantics<arbitrary>], iteration_bounds = array<i64: 1, 2>, scalar_prefetch = 0 : i64, scratch_operands = 2 : i64, tpu.core_type = #tpu.core_type<tc>, window_params = [{transform_indices = @transform_0, window_bounds = array<i64: 128, 33>}, {transform_indices = @transform_1, window_bounds = array<i64: 33, 128>}, {transform_indices = @transform_2, window_bounds = array<i64: 1, 128>}, {transform_indices = @transform_3, window_bounds = array<i64: 3, 128, 128>}]} {
    %c0_i32 = arith.constant 0 : i32
    %0 = arith.cmpi eq, %arg1, %c0_i32 : i32
    %1 = arith.extui %0 : i1 to i32
    %c0_i32_0 = arith.constant 0 : i32
    %2 = arith.cmpi ne, %1, %c0_i32_0 : i32
    scf.if %2 {
      %cst_11 = arith.constant 0xFF800000 : f32
      %22 = vector.broadcast %cst_11 : f32 to vector<128x128xf32>
      %c0_12 = arith.constant 0 : index
      %c0_13 = arith.constant 0 : index
      %23 = vector.load %arg6[%c0_12, %c0_13] : memref<128x128xf32, #tpu.memory_space<vmem>>, vector<128x128xf32>
      tpu.vector_store %arg6[%c0_12, %c0_13], %22 {strides = array<i32>} : memref<128x128xf32, #tpu.memory_space<vmem>>, vector<128x128xf32>,
      %c0_i32_14 = arith.constant 0 : i32
      %24 = vector.broadcast %c0_i32_14 : i32 to vector<128x128xi32>
      %c0_15 = arith.constant 0 : index
      %c0_16 = arith.constant 0 : index
      %25 = vector.load %arg7[%c0_15, %c0_16] : memref<128x128xi32, #tpu.memory_space<vmem>>, vector<128x128xi32>
      tpu.vector_store %arg7[%c0_15, %c0_16], %24 {strides = array<i32>} : memref<128x128xi32, #tpu.memory_space<vmem>>, vector<128x128xi32>,
    } else {
    }
    %c0 = arith.constant 0 : index
    %c0_1 = arith.constant 0 : index
    %3 = vector.load %arg2[%c0, %c0_1] : memref<128x33xbf16, #tpu.memory_space<vmem>>, vector<128x33xbf16>
    %c0_2 = arith.constant 0 : index
    %c0_3 = arith.constant 0 : index
    %4 = vector.load %arg3[%c0_2, %c0_3] : memref<33x128xbf16, #tpu.memory_space<vmem>>, vector<33x128xbf16>
    %cst = arith.constant dense<0.000000e+00> : vector<128x128xf32>
    %5 = tpu.matmul %3, %4, %cst {dimension_numbers = #tpu.dot_dimension_numbers<[1], [0], [0], [1], [0, 0, 1, 1], [], []>} : vector<128x33xbf16>, vector<33x128xbf16>, vector<128x128xf32> -> vector<128x128xf32>
    %c0_4 = arith.constant 0 : index
    %c3 = arith.constant 3 : index
    %6 = vector.load %arg6[%c0_4, %c3] : memref<128x128xf32, #tpu.memory_space<vmem>>, vector<128x1xf32>
    %7 = vector.broadcast %6 : vector<128x1xf32> to vector<128x128xf32>
    %8 = arith.cmpf ogt, %5, %7 : vector<128x128xf32>
    %cst_5 = arith.constant 1.000000e+00 : f32
    %cst_6 = arith.constant 0.000000e+00 : f32
    %9 = vector.broadcast %cst_5 : f32 to vector<128x128xf32>
    %10 = vector.broadcast %cst_6 : f32 to vector<128x128xf32>
    %11 = arith.select %8, %9, %10 : vector<128x128xi1>, vector<128x128xf32>
    %12 = vector.shape_cast %11 : vector<128x128xf32> to vector<1x128x128xf32>
    %cst_7 = arith.constant dense<0xFF800000> : vector<1xf32>
    %13 = vector.multi_reduction <maximumf>, %12, %cst_7 [1, 2] : vector<1x128x128xf32> to vector<1xf32>
    %14 = vector.shape_cast %13 : vector<1xf32> to vector<1x1x1xf32>
    %15 = vector.extract %14[0, 0, 0] : f32 from vector<1x1x1xf32>
    %cst_8 = arith.constant 0.000000e+00 : f32
    %16 = arith.cmpf ogt, %15, %cst_8 : f32
    %17 = arith.extui %16 : i1 to i32
    %c4096_i32 = arith.constant 4096 : i32
    %c0_i32_9 = arith.constant 0 : i32
    %18 = arith.cmpi ne, %17, %c0_i32_9 : i32
    scf.if %18 {
      %c0_11 = arith.constant 0 : index
      %c0_12 = arith.constant 0 : index
      %22 = vector.load %arg6[%c0_11, %c0_12] : memref<128x128xf32, #tpu.memory_space<vmem>>, vector<128x128xf32>
      %23 = tpu.concatenate %22, %5 in 1 : vector<128x128xf32>, vector<128x128xf32> -> vector<128x256xf32>
      %c0_13 = arith.constant 0 : index
      %c0_14 = arith.constant 0 : index
      %24 = vector.load %arg7[%c0_13, %c0_14] : memref<128x128xi32, #tpu.memory_space<vmem>>, vector<128x128xi32>
      %c0_15 = arith.constant 0 : index
      %c0_16 = arith.constant 0 : index
      %25 = vector.load %arg4[%c0_15, %c0_16] : memref<1x128xi32, #tpu.memory_space<vmem>>, vector<1x128xi32>
      %26 = vector.shape_cast %25 : vector<1x128xi32> to vector<1x128xi32>
      %27 = vector.broadcast %26 : vector<1x128xi32> to vector<128x128xi32>
      %28 = tpu.concatenate %24, %27 in 1 : vector<128x128xi32>, vector<128x128xi32> -> vector<128x256xi32>
      %29 = tpu.iota {dimensions = array<i32: 1>} : vector<1x256xi32>
      %c16_i32 = arith.constant 16 : i32
      %30 = vector.broadcast %c16_i32 : i32 to vector<1x256xi32>
      %31 = arith.muli %29, %30 : vector<1x256xi32>
      %32 = vector.broadcast %31 : vector<1x256xi32> to vector<128x256xi32>
      %33 = arith.addi %32, %28 : vector<128x256xi32>
      %cst_17 = arith.constant dense<0xFF800000> : vector<128xf32>
      %34 = vector.multi_reduction <maximumf>, %23, %cst_17 [1] : vector<128x256xf32> to vector<128xf32>
      %35 = vector.shape_cast %34 : vector<128xf32> to vector<128x1xf32>
      %36 = vector.broadcast %35 : vector<128x1xf32> to vector<128x256xf32>
      %37 = arith.cmpf oeq, %23, %36 : vector<128x256xf32>
      %38 = vector.broadcast %c4096_i32 : i32 to vector<128x256xi32>
      %39 = arith.select %37, %33, %38 : vector<128x256xi1>, vector<128x256xi32>
      %cst_18 = arith.constant dense<2147483647> : vector<128xi32>
      %40 = vector.multi_reduction <minsi>, %39, %cst_18 [1] : vector<128x256xi32> to vector<128xi32>
      %41 = vector.shape_cast %40 : vector<128xi32> to vector<128x1xi32>
      %c0_19 = arith.constant 0 : index
      %c0_20 = arith.constant 0 : index
      %42 = vector.load %arg6[%c0_19, %c0_20] : memref<128x128xf32, #tpu.memory_space<vmem>>, vector<128x1xf32>
      tpu.vector_store %arg6[%c0_19, %c0_20], %35 {strides = array<i32>} : memref<128x128xf32, #tpu.memory_space<vmem>>, vector<128x1xf32>,
      %c15_i32 = arith.constant 15 : i32
      %43 = vector.broadcast %c15_i32 : i32 to vector<128x1xi32>
      %44 = arith.andi %41, %43 : vector<128x1xi32>
      %c0_21 = arith.constant 0 : index
      %c0_22 = arith.constant 0 : index
      %45 = vector.load %arg7[%c0_21, %c0_22] : memref<128x128xi32, #tpu.memory_space<vmem>>, vector<128x1xi32>
      tpu.vector_store %arg7[%c0_21, %c0_22], %44 {strides = array<i32>} : memref<128x128xi32, #tpu.memory_space<vmem>>, vector<128x1xi32>,
      %46 = vector.broadcast %41 : vector<128x1xi32> to vector<128x256xi32>
      %47 = arith.cmpi eq, %33, %46 : vector<128x256xi32>
      %cst_23 = arith.constant 0xFF800000 : f32
      %48 = vector.broadcast %cst_23 : f32 to vector<128x256xf32>
      %49 = arith.select %47, %48, %23 : vector<128x256xi1>, vector<128x256xf32>
      %cst_24 = arith.constant dense<0xFF800000> : vector<128xf32>
      %50 = vector.multi_reduction <maximumf>, %49, %cst_24 [1] : vector<128x256xf32> to vector<128xf32>
      %51 = vector.shape_cast %50 : vector<128xf32> to vector<128x1xf32>
      %52 = vector.broadcast %51 : vector<128x1xf32> to vector<128x256xf32>
      %53 = arith.cmpf oeq, %49, %52 : vector<128x256xf32>
      %54 = vector.broadcast %c4096_i32 : i32 to vector<128x256xi32>
      %55 = arith.select %53, %33, %54 : vector<128x256xi1>, vector<128x256xi32>
      %cst_25 = arith.constant dense<2147483647> : vector<128xi32>
      %56 = vector.multi_reduction <minsi>, %55, %cst_25 [1] : vector<128x256xi32> to vector<128xi32>
      %57 = vector.shape_cast %56 : vector<128xi32> to vector<128x1xi32>
      %c0_26 = arith.constant 0 : index
      %c1 = arith.constant 1 : index
      %58 = vector.load %arg6[%c0_26, %c1] : memref<128x128xf32, #tpu.memory_space<vmem>>, vector<128x1xf32>
      tpu.vector_store %arg6[%c0_26, %c1], %51 {strides = array<i32>} : memref<128x128xf32, #tpu.memory_space<vmem>>, vector<128x1xf32>,
      %c15_i32_27 = arith.constant 15 : i32
      %59 = vector.broadcast %c15_i32_27 : i32 to vector<128x1xi32>
      %60 = arith.andi %57, %59 : vector<128x1xi32>
      %c0_28 = arith.constant 0 : index
      %c1_29 = arith.constant 1 : index
      %61 = vector.load %arg7[%c0_28, %c1_29] : memref<128x128xi32, #tpu.memory_space<vmem>>, vector<128x1xi32>
      tpu.vector_store %arg7[%c0_28, %c1_29], %60 {strides = array<i32>} : memref<128x128xi32, #tpu.memory_space<vmem>>, vector<128x1xi32>,
      %62 = vector.broadcast %57 : vector<128x1xi32> to vector<128x256xi32>
      %63 = arith.cmpi eq, %33, %62 : vector<128x256xi32>
      %cst_30 = arith.constant 0xFF800000 : f32
      %64 = vector.broadcast %cst_30 : f32 to vector<128x256xf32>
      %65 = arith.select %63, %64, %49 : vector<128x256xi1>, vector<128x256xf32>
      %cst_31 = arith.constant dense<0xFF800000> : vector<128xf32>
      %66 = vector.multi_reduction <maximumf>, %65, %cst_31 [1] : vector<128x256xf32> to vector<128xf32>
      %67 = vector.shape_cast %66 : vector<128xf32> to vector<128x1xf32>
      %68 = vector.broadcast %67 : vector<128x1xf32> to vector<128x256xf32>
      %69 = arith.cmpf oeq, %65, %68 : vector<128x256xf32>
      %70 = vector.broadcast %c4096_i32 : i32 to vector<128x256xi32>
      %71 = arith.select %69, %33, %70 : vector<128x256xi1>, vector<128x256xi32>
      %cst_32 = arith.constant dense<2147483647> : vector<128xi32>
      %72 = vector.multi_reduction <minsi>, %71, %cst_32 [1] : vector<128x256xi32> to vector<128xi32>
      %73 = vector.shape_cast %72 : vector<128xi32> to vector<128x1xi32>
      %c0_33 = arith.constant 0 : index
      %c2 = arith.constant 2 : index
      %74 = vector.load %arg6[%c0_33, %c2] : memref<128x128xf32, #tpu.memory_space<vmem>>, vector<128x1xf32>
      tpu.vector_store %arg6[%c0_33, %c2], %67 {strides = array<i32>} : memref<128x128xf32, #tpu.memory_space<vmem>>, vector<128x1xf32>,
      %c15_i32_34 = arith.constant 15 : i32
      %75 = vector.broadcast %c15_i32_34 : i32 to vector<128x1xi32>
      %76 = arith.andi %73, %75 : vector<128x1xi32>
      %c0_35 = arith.constant 0 : index
      %c2_36 = arith.constant 2 : index
      %77 = vector.load %arg7[%c0_35, %c2_36] : memref<128x128xi32, #tpu.memory_space<vmem>>, vector<128x1xi32>
      tpu.vector_store %arg7[%c0_35, %c2_36], %76 {strides = array<i32>} : memref<128x128xi32, #tpu.memory_space<vmem>>, vector<128x1xi32>,
      %78 = vector.broadcast %73 : vector<128x1xi32> to vector<128x256xi32>
      %79 = arith.cmpi eq, %33, %78 : vector<128x256xi32>
      %cst_37 = arith.constant 0xFF800000 : f32
      %80 = vector.broadcast %cst_37 : f32 to vector<128x256xf32>
      %81 = arith.select %79, %80, %65 : vector<128x256xi1>, vector<128x256xf32>
      %cst_38 = arith.constant dense<0xFF800000> : vector<128xf32>
      %82 = vector.multi_reduction <maximumf>, %81, %cst_38 [1] : vector<128x256xf32> to vector<128xf32>
      %83 = vector.shape_cast %82 : vector<128xf32> to vector<128x1xf32>
      %84 = vector.broadcast %83 : vector<128x1xf32> to vector<128x256xf32>
      %85 = arith.cmpf oeq, %81, %84 : vector<128x256xf32>
      %86 = vector.broadcast %c4096_i32 : i32 to vector<128x256xi32>
      %87 = arith.select %85, %33, %86 : vector<128x256xi1>, vector<128x256xi32>
      %cst_39 = arith.constant dense<2147483647> : vector<128xi32>
      %88 = vector.multi_reduction <minsi>, %87, %cst_39 [1] : vector<128x256xi32> to vector<128xi32>
      %89 = vector.shape_cast %88 : vector<128xi32> to vector<128x1xi32>
      %c0_40 = arith.constant 0 : index
      %c3_41 = arith.constant 3 : index
      %90 = vector.load %arg6[%c0_40, %c3_41] : memref<128x128xf32, #tpu.memory_space<vmem>>, vector<128x1xf32>
      tpu.vector_store %arg6[%c0_40, %c3_41], %83 {strides = array<i32>} : memref<128x128xf32, #tpu.memory_space<vmem>>, vector<128x1xf32>,
      %c15_i32_42 = arith.constant 15 : i32
      %91 = vector.broadcast %c15_i32_42 : i32 to vector<128x1xi32>
      %92 = arith.andi %89, %91 : vector<128x1xi32>
      %c0_43 = arith.constant 0 : index
      %c3_44 = arith.constant 3 : index
      %93 = vector.load %arg7[%c0_43, %c3_44] : memref<128x128xi32, #tpu.memory_space<vmem>>, vector<128x1xi32>
      tpu.vector_store %arg7[%c0_43, %c3_44], %92 {strides = array<i32>} : memref<128x128xi32, #tpu.memory_space<vmem>>, vector<128x1xi32>,
    } else {
    }
    %c1_i32 = arith.constant 1 : i32
    %19 = arith.cmpi eq, %arg1, %c1_i32 : i32
    %20 = arith.extui %19 : i1 to i32
    %c0_i32_10 = arith.constant 0 : i32
    %21 = arith.cmpi ne, %20, %c0_i32_10 : i32
    scf.if %21 {
      %c0_11 = arith.constant 0 : index
      %c0_12 = arith.constant 0 : index
      %22 = vector.load %arg6[%c0_11, %c0_12] : memref<128x128xf32, #tpu.memory_space<vmem>>, vector<128x128xf32>
      %c0_13 = arith.constant 0 : index
      %c0_14 = arith.constant 0 : index
      %23 = vector.load %arg7[%c0_13, %c0_14] : memref<128x128xi32, #tpu.memory_space<vmem>>, vector<128x128xi32>
      %cst_15 = arith.constant 14.2857141 : f32
      %24 = vector.broadcast %cst_15 : f32 to vector<128x128xf32>
      %25 = arith.mulf %22, %24 : vector<128x128xf32>
      %cst_16 = arith.constant dense<0xFF800000> : vector<128xf32>
      %26 = vector.multi_reduction <maximumf>, %25, %cst_16 [1] : vector<128x128xf32> to vector<128xf32>
      %27 = vector.shape_cast %26 : vector<128xf32> to vector<128x1xf32>
      %28 = vector.broadcast %27 : vector<128x1xf32> to vector<128x128xf32>
      %29 = arith.subf %25, %28 : vector<128x128xf32>
      %30 = math.exp %29 : vector<128x128xf32>
      %cst_17 = arith.constant dense<0.000000e+00> : vector<128xf32>
      %31 = vector.multi_reduction <add>, %30, %cst_17 [1] : vector<128x128xf32> to vector<128xf32>
      %32 = vector.shape_cast %31 : vector<128xf32> to vector<128x1xf32>
      %33 = tpu.reciprocal %32 {approx = true} : vector<128x1xf32> -> vector<128x1xf32>
      %34 = vector.broadcast %33 : vector<128x1xf32> to vector<128x128xf32>
      %35 = arith.mulf %30, %34 : vector<128x128xf32>
      %36 = tpu.iota {dimensions = array<i32: 1>} : vector<1x128xi32>
      %cst_18 = arith.constant 0.000000e+00 : f32
      %37 = vector.broadcast %cst_18 : f32 to vector<128x128xf32>
      %38 = vector.extract_strided_slice %23 {offsets = [0, 0], sizes = [128, 1], strides = [1, 1]} : vector<128x128xi32> to vector<128x1xi32>
      %39 = vector.broadcast %38 : vector<128x1xi32> to vector<128x128xi32>
      %40 = vector.broadcast %36 : vector<1x128xi32> to vector<128x128xi32>
      %41 = arith.cmpi eq, %39, %40 : vector<128x128xi32>
      %42 = vector.extract_strided_slice %35 {offsets = [0, 0], sizes = [128, 1], strides = [1, 1]} : vector<128x128xf32> to vector<128x1xf32>
      %cst_19 = arith.constant 0.000000e+00 : f32
      %43 = vector.shape_cast %42 : vector<128x1xf32> to vector<128x1xf32>
      %44 = vector.broadcast %43 : vector<128x1xf32> to vector<128x128xf32>
      %45 = vector.broadcast %cst_19 : f32 to vector<128x128xf32>
      %46 = arith.select %41, %44, %45 : vector<128x128xi1>, vector<128x128xf32>
      %47 = arith.addf %37, %46 : vector<128x128xf32>
      %c0_20 = arith.constant 0 : index
      %c0_21 = arith.constant 0 : index
      %c0_22 = arith.constant 0 : index
      %48 = vector.load %arg5[%c0_20, %c0_21, %c0_22] : memref<3x128x128xf32, #tpu.memory_space<vmem>>, vector<1x128x128xf32>
      %49 = vector.shape_cast %48 : vector<1x128x128xf32> to vector<128x128xf32>
      %50 = vector.shape_cast %47 : vector<128x128xf32> to vector<1x128x128xf32>
      tpu.vector_store %arg5[%c0_20, %c0_21, %c0_22], %50 {strides = array<i32>} : memref<3x128x128xf32, #tpu.memory_space<vmem>>, vector<1x128x128xf32>,
      %51 = vector.extract_strided_slice %23 {offsets = [0, 1], sizes = [128, 1], strides = [1, 1]} : vector<128x128xi32> to vector<128x1xi32>
      %52 = vector.broadcast %51 : vector<128x1xi32> to vector<128x128xi32>
      %53 = vector.broadcast %36 : vector<1x128xi32> to vector<128x128xi32>
      %54 = arith.cmpi eq, %52, %53 : vector<128x128xi32>
      %55 = vector.extract_strided_slice %35 {offsets = [0, 1], sizes = [128, 1], strides = [1, 1]} : vector<128x128xf32> to vector<128x1xf32>
      %cst_23 = arith.constant 0.000000e+00 : f32
      %56 = vector.shape_cast %55 : vector<128x1xf32> to vector<128x1xf32>
      %57 = vector.broadcast %56 : vector<128x1xf32> to vector<128x128xf32>
      %58 = vector.broadcast %cst_23 : f32 to vector<128x128xf32>
      %59 = arith.select %54, %57, %58 : vector<128x128xi1>, vector<128x128xf32>
      %60 = arith.addf %47, %59 : vector<128x128xf32>
      %c1 = arith.constant 1 : index
      %c0_24 = arith.constant 0 : index
      %c0_25 = arith.constant 0 : index
      %61 = vector.load %arg5[%c1, %c0_24, %c0_25] : memref<3x128x128xf32, #tpu.memory_space<vmem>>, vector<1x128x128xf32>
      %62 = vector.shape_cast %61 : vector<1x128x128xf32> to vector<128x128xf32>
      %63 = vector.shape_cast %60 : vector<128x128xf32> to vector<1x128x128xf32>
      tpu.vector_store %arg5[%c1, %c0_24, %c0_25], %63 {strides = array<i32>} : memref<3x128x128xf32, #tpu.memory_space<vmem>>, vector<1x128x128xf32>,
      %64 = vector.extract_strided_slice %23 {offsets = [0, 2], sizes = [128, 1], strides = [1, 1]} : vector<128x128xi32> to vector<128x1xi32>
      %65 = vector.broadcast %64 : vector<128x1xi32> to vector<128x128xi32>
      %66 = vector.broadcast %36 : vector<1x128xi32> to vector<128x128xi32>
      %67 = arith.cmpi eq, %65, %66 : vector<128x128xi32>
      %68 = vector.extract_strided_slice %35 {offsets = [0, 2], sizes = [128, 1], strides = [1, 1]} : vector<128x128xf32> to vector<128x1xf32>
      %cst_26 = arith.constant 0.000000e+00 : f32
      %69 = vector.shape_cast %68 : vector<128x1xf32> to vector<128x1xf32>
      %70 = vector.broadcast %69 : vector<128x1xf32> to vector<128x128xf32>
      %71 = vector.broadcast %cst_26 : f32 to vector<128x128xf32>
      %72 = arith.select %67, %70, %71 : vector<128x128xi1>, vector<128x128xf32>
      %73 = arith.addf %60, %72 : vector<128x128xf32>
      %74 = vector.extract_strided_slice %23 {offsets = [0, 3], sizes = [128, 1], strides = [1, 1]} : vector<128x128xi32> to vector<128x1xi32>
      %75 = vector.broadcast %74 : vector<128x1xi32> to vector<128x128xi32>
      %76 = vector.broadcast %36 : vector<1x128xi32> to vector<128x128xi32>
      %77 = arith.cmpi eq, %75, %76 : vector<128x128xi32>
      %78 = vector.extract_strided_slice %35 {offsets = [0, 3], sizes = [128, 1], strides = [1, 1]} : vector<128x128xf32> to vector<128x1xf32>
      %cst_27 = arith.constant 0.000000e+00 : f32
      %79 = vector.shape_cast %78 : vector<128x1xf32> to vector<128x1xf32>
      %80 = vector.broadcast %79 : vector<128x1xf32> to vector<128x128xf32>
      %81 = vector.broadcast %cst_27 : f32 to vector<128x128xf32>
      %82 = arith.select %77, %80, %81 : vector<128x128xi1>, vector<128x128xf32>
      %83 = arith.addf %73, %82 : vector<128x128xf32>
      %c2 = arith.constant 2 : index
      %c0_28 = arith.constant 0 : index
      %c0_29 = arith.constant 0 : index
      %84 = vector.load %arg5[%c2, %c0_28, %c0_29] : memref<3x128x128xf32, #tpu.memory_space<vmem>>, vector<1x128x128xf32>
      %85 = vector.shape_cast %84 : vector<1x128x128xf32> to vector<128x128xf32>
      %86 = vector.shape_cast %83 : vector<128x128xf32> to vector<1x128x128xf32>
      tpu.vector_store %arg5[%c2, %c0_28, %c0_29], %86 {strides = array<i32>} : memref<3x128x128xf32, #tpu.memory_space<vmem>>, vector<1x128x128xf32>,
    } else {
    }
    return
  }
  func.func @transform_0(%arg0: i32, %arg1: i32) -> (i32, i32) {
    %c0_i32 = arith.constant 0 : i32
    %c0_i32_0 = arith.constant 0 : i32
    return %arg0, %c0_i32 : i32, i32
  }
  func.func @transform_1(%arg0: i32, %arg1: i32) -> (i32, i32) {
    %c0_i32 = arith.constant 0 : i32
    %c0_i32_0 = arith.constant 0 : i32
    return %c0_i32, %arg1 : i32, i32
  }
  func.func @transform_2(%arg0: i32, %arg1: i32) -> (i32, i32) {
    %c0_i32 = arith.constant 0 : i32
    %c0_i32_0 = arith.constant 0 : i32
    return %c0_i32, %arg1 : i32, i32
  }
  func.func @transform_3(%arg0: i32, %arg1: i32) -> (i32, i32, i32) {
    %c0_i32 = arith.constant 0 : i32
    %c0_i32_0 = arith.constant 0 : i32
    %c0_i32_1 = arith.constant 0 : i32
    return %c0_i32, %arg0, %c0_i32_0 : i32, i32, i32
  }
}

</mosaic_0001>

<llo_original>
// kernel: _fwd.1
$region0: #{_fwd.1}
  #allocation0 [shape = 'u32[]', space=smem, size = 0x4, offset = 0x4, fixed_abs, tag = 'smem constant byte address 0x4 - core index']
  #allocation1 [shape = 'u32[144,128]{1,0:T(1,128)}', space=vmem, size = 0x12000, scoped, tag = 'internal scratch']
  #allocation2 [shape = 'f32[128,128]{1,0:T(8,128)}', space=vmem, size = 0x10000, scoped, tag = 'scratch operand']
  #allocation3 [shape = 's32[128,128]{1,0:T(8,128)}', space=vmem, size = 0x10000, scoped, tag = 'scratch operand']
  %s0 = inlined_call_operand.vmem [shape: bf16[128,33], index: 0, kind: input, shape index: {}]
  %s1 = inlined_call_operand.vmem [shape: bf16[33,256], index: 1, kind: input, shape index: {}]
  %s2 = inlined_call_operand.vmem [shape: s32[1,256], index: 2, kind: input, shape index: {}]
  %s3 = inlined_call_operand.vmem [shape: f32[3,128,128], index: 3, kind: output, shape index: {}]
  %s4 = sld [smem:[#allocation0]]
  $region98: #{_fwd.1} parent=0
    _
  %s6 = ssub.s32 1, %s4
  %s7 = scalar_select 0, %s6, %s4
  $region1: #{_fwd.1} parent=0
    #allocation4 [shape = 'u8[20480]{0}', space=vmem, size = 0x5000, scoped, tag = 'input window, operand 1']
    loop: start=0, step=1, limit=4
    $region2: #{_fwd.1} parent=1 // loop_pre_header
      _
    $region3: #{_fwd.1} parent=1 // loop_header
      %s9 = sphi 0, %s13
      %p10 = scmp.ge.s32.totalorder %s9, 4
      %s16 = sphi 0, %s28
      %s17 = sphi 0, %s24
      %s18 = sphi 0, %s16
      %s19 = sphi 0, %s17
      %s20 = sphi 0, %s18
      %s21 = sphi 0, %s19
      %s31 = sphi 0, %s33
      %s34 = sphi 0, %s31
      %s35 = sphi 0, %s34
      %s51 = sphi 0, %s35
      %s57 = sphi 0, %s59
      %s60 = sphi 0, %s57
      %s61 = sphi 0, %s60
      %s77 = sphi 0, %s61
      %s83 = sphi 0, %s85
      %s86 = sphi 0, %s83
      %s87 = sphi 0, %s86
      %s103 = sphi 0, %s87
      %s109 = sphi 0, %s111
      %s112 = sphi 0, %s109
      %s113 = sphi 0, %s112
      %s129 = sphi 0, %s113
    $region4: #{_fwd.1} parent=1 // loop_header_branch
      %12 = sbr.rel (%p10) target = $region8
    $region5: #{_fwd.1} parent=1 // loop_body
      %s14 = ssub.s32 %s9, 1
      %s15 = ssub.s32 %s9, 2
      %s22 = sadd.s32 1, %s17
      %p23 = scmp.ge.s32.totalorder %s22, 2
      %s24 = scalar_select %p23, 0, %s22
      %s25 = sadd.s32 1, %s16
      %s26 = scalar_select %p23, %s25, %s16
      %p27 = scmp.ge.s32.totalorder %s26, 1
      %s28 = scalar_select %p27, 0, %s26
      %s29 = ssub.s32 %s16, %s28
      %p30 = scmp.eq.s32.totalorder %s29, 0
      %s32 = sadd.s32 %s31, 1
      %s33 = scalar_select %p30, %s31, %s32
      %p36 = pneg %p30
      %p37 = scmp.eq.s32.totalorder %s9, 1
      %p38 = por %p36, %p37
      %p39 = scmp.ne.s32.totalorder %s31, %s34
      %p40 = scmp.eq.s32.totalorder %s9, 0
      %p41 = por %p39, %p40
      %p42 = scmp.ne.s32.totalorder %s31, %s34
      %p43 = scmp.eq.s32.totalorder %s14, 1
      %p44 = por %p42, %p43
      %p45 = scmp.ne.s32.totalorder %s34, %s35
      %p46 = scmp.eq.s32.totalorder %s14, 0
      %p47 = por %p45, %p46
      %p48 = scmp.ne.s32.totalorder %s34, %s35
      %p49 = scmp.eq.s32.totalorder %s15, 1
      %p50 = por %p48, %p49
      %p52 = scmp.ne.s32.totalorder %s35, %s51
      %p53 = scmp.eq.s32.totalorder %s15, 0
      %p54 = por %p52, %p53
      %s55 = ssub.s32 %s17, %s24
      %p56 = scmp.eq.s32.totalorder %s55, 0
      %s58 = sadd.s32 %s57, 1
      %s59 = scalar_select %p56, %s57, %s58
      %p62 = pneg %p56
      %p63 = scmp.eq.s32.totalorder %s9, 1
      %p64 = por %p62, %p63
      %p65 = scmp.ne.s32.totalorder %s57, %s60
      %p66 = scmp.eq.s32.totalorder %s9, 0
      %p67 = por %p65, %p66
      %p68 = scmp.ne.s32.totalorder %s57, %s60
      %p69 = scmp.eq.s32.totalorder %s14, 1
      %p70 = por %p68, %p69
      %p71 = scmp.ne.s32.totalorder %s60, %s61
      %p72 = scmp.eq.s32.totalorder %s14, 0
      %p73 = por %p71, %p72
      %p74 = scmp.ne.s32.totalorder %s60, %s61
      %p75 = scmp.eq.s32.totalorder %s15, 1
      %p76 = por %p74, %p75
      %p78 = scmp.ne.s32.totalorder %s61, %s77
      %p79 = scmp.eq.s32.totalorder %s15, 0
      %p80 = por %p78, %p79
      %s81 = ssub.s32 %s17, %s24
      %p82 = scmp.eq.s32.totalorder %s81, 0
      %s84 = sadd.s32 %s83, 1
      %s85 = scalar_select %p82, %s83, %s84
      %p88 = pneg %p82
      %p89 = scmp.eq.s32.totalorder %s9, 1
      %p90 = por %p88, %p89
      %p91 = scmp.ne.s32.totalorder %s83, %s86
      %p92 = scmp.eq.s32.totalorder %s9, 0
      %p93 = por %p91, %p92
      %p94 = scmp.ne.s32.totalorder %s83, %s86
      %p95 = scmp.eq.s32.totalorder %s14, 1
      %p96 = por %p94, %p95
      %p97 = scmp.ne.s32.totalorder %s86, %s87
      %p98 = scmp.eq.s32.totalorder %s14, 0
      %p99 = por %p97, %p98
      %p100 = scmp.ne.s32.totalorder %s86, %s87
      %p101 = scmp.eq.s32.totalorder %s15, 1
      %p102 = por %p100, %p101
      %p104 = scmp.ne.s32.totalorder %s87, %s103
      %p105 = scmp.eq.s32.totalorder %s15, 0
      %p106 = por %p104, %p105
      %s107 = ssub.s32 %s16, %s28
      %p108 = scmp.eq.s32.totalorder %s107, 0
      %s110 = sadd.s32 %s109, 1
      %s111 = scalar_select %p108, %s109, %s110
      %p114 = pneg %p108
      %p115 = scmp.eq.s32.totalorder %s9, 1
      %p116 = por %p114, %p115
      %p117 = scmp.ne.s32.totalorder %s109, %s112
      %p118 = scmp.eq.s32.totalorder %s9, 0
      %p119 = por %p117, %p118
      %p120 = scmp.ne.s32.totalorder %s109, %s112
      %p121 = scmp.eq.s32.totalorder %s14, 1
      %p122 = por %p120, %p121
      %p123 = scmp.ne.s32.totalorder %s112, %s113
      %p124 = scmp.eq.s32.totalorder %s14, 0
      %p125 = por %p123, %p124
      %p126 = scmp.ne.s32.totalorder %s112, %s113
      %p127 = scmp.eq.s32.totalorder %s15, 1
      %p128 = por %p126, %p127
      %p130 = scmp.ne.s32.totalorder %s113, %s129
      %p131 = scmp.eq.s32.totalorder %s15, 0
      %p132 = por %p130, %p131
      %p133 = scmp.le.s32.totalorder 1, %s9
      %p134 = scmp.lt.s32.totalorder %s9, 3
      %p135 = pnand %p133, %p134
      %p136 = pneg %p135
      // Predicated region
      $region9: #{_fwd.1} parent=5 // pred_check
        _
      $region10: #{_fwd.1} parent=5 // pred_check_branch
        %138 = sbr.rel (%p135) target = $region12
      $region11: #{_fwd.1} parent=5 // pred_region
        %s139 = ssub.s32 %s9, 1
        // Predicated region
        $region13: #{_fwd.1} parent=11 // pred_check
          %p140 = pneg %p47
        $region14: #{_fwd.1} parent=11 // pred_check_branch
          %142 = sbr.rel (%p140) target = $region16
        $region15: #{_fwd.1} parent=11 // pred_region
          %s143 = smul.u32 16, %s18
          %p144 = scmp.lt.s32.totalorder %s143, 15
          %s145 = scalar_select %p144, %s143, 15
          %s146 = smul.addr %s145, 4
          %s147 = scalar_lea.vmem %s0, %s146
          %s148 = smul.u32 16, %s18
        $region16: #{_fwd.1} parent=11 // pred_fallthru
          _
      $region12: #{_fwd.1} parent=5 // pred_fallthru
        _
      %p149 = scmp.lt.s32.totalorder %s9, 2
      // Predicated region
      $region17: #{_fwd.1} parent=5 // pred_check
        %p150 = pneg %p149
      $region18: #{_fwd.1} parent=5 // pred_check_branch
        %152 = sbr.rel (%p150) target = $region20
      $region19: #{_fwd.1} parent=5 // pred_region
        // Predicated region
        $region21: #{_fwd.1} parent=19 // pred_check
          %p153 = pneg %p67
        $region22: #{_fwd.1} parent=19 // pred_check_branch
          %155 = sbr.rel (%p153) target = $region24
        $region23: #{_fwd.1} parent=19 // pred_region
          %s156 = sand.u32 %s57, 1
          %s157 = sand.u32 %s57, 1
          %s158 = smul.addr %s157, 20
          %s159 = scalar_lea.vmem [#allocation4], %s158
          %s160 = smul.addr %s17, 4
          %s161 = scalar_lea.vmem %s1, %s160
          // Predicated region
          $region25: #{_fwd.1} parent=23 // pred_check
            _
          $region26: #{_fwd.1} parent=23 // pred_check_branch
            %163 = sbr.rel (0) target = $region28
          $region27: #{_fwd.1} parent=23 // pred_region
            // Predicated region
            $region29: #{_fwd.1} parent=27 // pred_check
              _
            $region30: #{_fwd.1} parent=27 // pred_check_branch
              %165 = sbr.rel target = $region32
            $region31: #{_fwd.1} parent=27 // pred_region
              // Predicated region
              $region44: #{_fwd.1} parent=31 // pred_check
                _
              $region45: #{_fwd.1} parent=31 // pred_check_branch
                %188 = sbr.rel (0) target = $region47
              $region46: #{_fwd.1} parent=31 // pred_region
                loop: start=0, step=1, limit=1
                $region48: #{_fwd.1} parent=46 // loop_pre_header
                  _
                $region49: #{_fwd.1} parent=46 // loop_header
                  %s190 = sphi 0, %s194
                  %p191 = scmp.ge.s32.totalorder %s190, 1
                  %s195 = sphi %s161, %s161
                  %s196 = sphi %s159, %s159
                $region50: #{_fwd.1} parent=46 // loop_header_branch
                  %193 = sbr.rel (%p191) target = $region54
                $region51: #{_fwd.1} parent=46 // loop_body
                  _
                $region52: #{_fwd.1} parent=46 // loop_footer
                  %s194 = sadd.s32 1, %s190
                $region53: #{_fwd.1} parent=46 // loop_footer_branch
                  %189 = sbr.rel target = $region49
                $region54: #{_fwd.1} parent=46 // loop_exit
                  _
                loop: start=0, step=1, limit=1
                $region55: #{_fwd.1} parent=46 // loop_pre_header
                  _
                $region56: #{_fwd.1} parent=46 // loop_header
                  %s199 = sphi 0, %s203
                  %p200 = scmp.ge.s32.totalorder %s199, 1
                  %s204 = sphi %s161, %s161
                  %s205 = sphi %s159, %s159
                $region57: #{_fwd.1} parent=46 // loop_header_branch
                  %202 = sbr.rel (%p200) target = $region61
                $region58: #{_fwd.1} parent=46 // loop_body
                  %v206 = vld [vmem:[%s204] sm:$0xf]
                  %207 = vst [vmem:[%s205] sm:$0xf] %v206
                  %v208 = vld [vmem:[%s204 + $0x8] sm:$0xf]
                  %209 = vst [vmem:[%s205 + $0x4] sm:$0xf] %v208
                  %v210 = vld [vmem:[%s204 + $0x10] sm:$0xf]
                  %211 = vst [vmem:[%s205 + $0x8] sm:$0xf] %v210
                  %v212 = vld [vmem:[%s204 + $0x18] sm:$0xf]
                  %213 = vst [vmem:[%s205 + $0xc] sm:$0xf] %v212
                  %v214 = vld [vmem:[%s204 + $0x20] sm:$0xf]
                  %215 = vst [vmem:[%s205 + $0x10] sm:$0xf] %v214
                $region59: #{_fwd.1} parent=46 // loop_footer
                  %s203 = sadd.s32 1, %s199
                $region60: #{_fwd.1} parent=46 // loop_footer_branch
                  %198 = sbr.rel target = $region56
                $region61: #{_fwd.1} parent=46 // loop_exit
                  _
              $region47: #{_fwd.1} parent=31 // pred_fallthru
                _
            $region32: #{_fwd.1} parent=27 // pred_fallthru
              _
            // Predicated region
            $region33: #{_fwd.1} parent=27 // pred_check
              _
            $region34: #{_fwd.1} parent=27 // pred_check_branch
              %167 = sbr.rel (0) target = $region36
            $region35: #{_fwd.1} parent=27 // pred_region
              loop: start=0, step=1, limit=1
              $region37: #{_fwd.1} parent=35 // loop_pre_header
                _
              $region38: #{_fwd.1} parent=35 // loop_header
                %s170 = sphi 0, %s174
                %p171 = scmp.ge.s32.totalorder %s170, 1
                %s175 = sphi %s161, %s161
                %s176 = sphi %s159, %s159
              $region39: #{_fwd.1} parent=35 // loop_header_branch
                %173 = sbr.rel (%p171) target = $region43
              $region40: #{_fwd.1} parent=35 // loop_body
                %v177 = vld [vmem:[%s175] sm:$0xf]
                %178 = vst [vmem:[%s176] sm:$0xf] %v177
                %v179 = vld [vmem:[%s175 + $0x8] sm:$0xf]
                %180 = vst [vmem:[%s176 + $0x4] sm:$0xf] %v179
                %v181 = vld [vmem:[%s175 + $0x10] sm:$0xf]
                %182 = vst [vmem:[%s176 + $0x8] sm:$0xf] %v181
                %v183 = vld [vmem:[%s175 + $0x18] sm:$0xf]
                %184 = vst [vmem:[%s176 + $0xc] sm:$0xf] %v183
                %v185 = vld [vmem:[%s175 + $0x20] sm:$0xf]
                %186 = vst [vmem:[%s176 + $0x10] sm:$0xf] %v185
              $region41: #{_fwd.1} parent=35 // loop_footer
                %s174 = sadd.s32 1, %s170
              $region42: #{_fwd.1} parent=35 // loop_footer_branch
                %169 = sbr.rel target = $region38
              $region43: #{_fwd.1} parent=35 // loop_exit
                _
            $region36: #{_fwd.1} parent=27 // pred_fallthru
              _
          $region28: #{_fwd.1} parent=23 // pred_fallthru
            _
          %216 = vnop
        $region24: #{_fwd.1} parent=19 // pred_fallthru
          _
        // Predicated region
        $region62: #{_fwd.1} parent=19 // pred_check
          %p217 = pneg %p93
        $region63: #{_fwd.1} parent=19 // pred_check_branch
          %219 = sbr.rel (%p217) target = $region65
        $region64: #{_fwd.1} parent=19 // pred_region
          %p220 = scmp.lt.s32.totalorder %s17, 1
          %s221 = scalar_select %p220, %s17, 1
          %s222 = scalar_lea.vmem %s2, %s221
        $region65: #{_fwd.1} parent=19 // pred_fallthru
          _
      $region20: #{_fwd.1} parent=5 // pred_fallthru
        _
      %p223 = scmp.le.s32.totalorder 1, %s9
      %p224 = scmp.lt.s32.totalorder %s9, 3
      %p225 = pnand %p223, %p224
      %p226 = pneg %p225
      // Predicated region
      $region66: #{_fwd.1} parent=5 // pred_check
        _
      $region67: #{_fwd.1} parent=5 // pred_check_branch
        %228 = sbr.rel (%p225) target = $region69
      $region68: #{_fwd.1} parent=5 // pred_region
        %s229 = ssub.s32 %s9, 1
        %s230 = sand.u32 %s60, 1
        %s231 = sand.u32 %s60, 1
        %s232 = smul.addr %s231, 20
        %s233 = scalar_lea.vmem [#allocation4], %s232
        // Predicated region
        $region70: #{_fwd.1} parent=68 // pred_check
          %p234 = pneg %p73
        $region71: #{_fwd.1} parent=68 // pred_check_branch
          %236 = sbr.rel (%p234) target = $region73
        $region72: #{_fwd.1} parent=68 // pred_region
          _
        $region73: #{_fwd.1} parent=68 // pred_fallthru
          _
        %s237 = smul.u32 16, %s18
        %p238 = scmp.lt.s32.totalorder %s237, 15
        %s239 = scalar_select %p238, %s237, 15
        %s240 = smul.addr %s239, 4
        %s241 = scalar_lea.vmem %s0, %s240
        %p242 = pneg %p47
        %p243 = pneg %p44
        %s244 = sand.u32 %s60, 1
        %s245 = sand.u32 %s60, 1
        %s246 = smul.addr %s245, 20
        %s247 = scalar_lea.vmem [#allocation4], %s246
        %p248 = pneg %p73
        %p249 = pneg %p70
        %p250 = scmp.lt.s32.totalorder %s19, 1
        %s251 = scalar_select %p250, %s19, 1
        %s252 = scalar_lea.vmem %s2, %s251
        %p253 = pneg %p99
        %p254 = pneg %p96
        %p255 = pneg %p125
        %p256 = pneg %p122
        %s257 = smul.u32 16, %s18
        %p258 = scmp.lt.s32.totalorder %s257, 15
        %s259 = scalar_select %p258, %s257, 15
        %s260 = smul.addr %s259, 8
        %s261 = scalar_lea.vmem %s3, %s260
        %s262 = smul.u32 16, %s18
        %p263 = scmp.lt.s32.totalorder %s262, 15
        %s264 = scalar_select %p263, %s262, 15
        %s265 = smul.addr %s264, 4
        %s266 = scalar_lea.vmem %s0, %s265
        %s267 = smul.u32 16, %s18
        %p268 = scmp.lt.s32.totalorder %s19, 1
        %s269 = scalar_select %p268, %s19, 1
        %s270 = scalar_lea.vmem %s2, %s269
        %s271 = smul.u32 16, %s18
        %p272 = scmp.lt.s32.totalorder %s271, 15
        %s273 = scalar_select %p272, %s271, 15
        %s274 = smul.addr %s273, 8
        %s275 = scalar_lea.vmem %s3, %s274
        %s276 = smul.u32 16, %s18
        %p278 = scmp.eq.s32.totalorder %s19, 0
        // Predicated region
        $region74: #{_fwd.1} parent=68 // pred_check
          %p279 = pneg %p278
        $region75: #{_fwd.1} parent=68 // pred_check_branch
          %281 = sbr.rel (%p279) target = $region77
        $region76: #{_fwd.1} parent=68 // pred_region
          %282 = vst [vmem:[#allocation2] sm:$0xff] -inf
          %283 = vst [vmem:[#allocation2 + $0x8] sm:$0xff] -inf
          %284 = vst [vmem:[#allocation2 + $0x10] sm:$0xff] -inf
          %285 = vst [vmem:[#allocation2 + $0x18] sm:$0xff] -inf
          %286 = vst [vmem:[#allocation2 + $0x20] sm:$0xff] -inf
          %287 = vst [vmem:[#allocation2 + $0x28] sm:$0xff] -inf
          %288 = vst [vmem:[#allocation2 + $0x30] sm:$0xff] -inf
          %289 = vst [vmem:[#allocation2 + $0x38] sm:$0xff] -inf
          %290 = vst [vmem:[#allocation2 + $0x40] sm:$0xff] -inf
          %291 = vst [vmem:[#allocation2 + $0x48] sm:$0xff] -inf
          %292 = vst [vmem:[#allocation2 + $0x50] sm:$0xff] -inf
          %293 = vst [vmem:[#allocation2 + $0x58] sm:$0xff] -inf
          %294 = vst [vmem:[#allocation2 + $0x60] sm:$0xff] -inf
          %295 = vst [vmem:[#allocation2 + $0x68] sm:$0xff] -inf
          %296 = vst [vmem:[#allocation2 + $0x70] sm:$0xff] -inf
          %297 = vst [vmem:[#allocation2 + $0x78] sm:$0xff] -inf
          %298 = vst [vmem:[#allocation3] sm:$0xff] 0
          %299 = vst [vmem:[#allocation3 + $0x8] sm:$0xff] 0
          %300 = vst [vmem:[#allocation3 + $0x10] sm:$0xff] 0
          %301 = vst [vmem:[#allocation3 + $0x18] sm:$0xff] 0
          %302 = vst [vmem:[#allocation3 + $0x20] sm:$0xff] 0
          %303 = vst [vmem:[#allocation3 + $0x28] sm:$0xff] 0
          %304 = vst [vmem:[#allocation3 + $0x30] sm:$0xff] 0
          %305 = vst [vmem:[#allocation3 + $0x38] sm:$0xff] 0
          %306 = vst [vmem:[#allocation3 + $0x40] sm:$0xff] 0
          %307 = vst [vmem:[#allocation3 + $0x48] sm:$0xff] 0
          %308 = vst [vmem:[#allocation3 + $0x50] sm:$0xff] 0
          %309 = vst [vmem:[#allocation3 + $0x58] sm:$0xff] 0
          %310 = vst [vmem:[#allocation3 + $0x60] sm:$0xff] 0
          %311 = vst [vmem:[#allocation3 + $0x68] sm:$0xff] 0
          %312 = vst [vmem:[#allocation3 + $0x70] sm:$0xff] 0
          %313 = vst [vmem:[#allocation3 + $0x78] sm:$0xff] 0
        $region77: #{_fwd.1} parent=68 // pred_fallthru
          _
        %v314 = vld [vmem:[%s266] sm:$0xf]
        %v315 = vld [vmem:[%s266 + $0x4] sm:$0xf]
        %v316 = vld [vmem:[%s266 + $0x8] sm:$0xf]
        %v317 = vld [vmem:[%s266 + $0xc] sm:$0xf]
        %v318 = vld [vmem:[%s266 + $0x10] sm:$0xf]
        %v319 = vld [vmem:[%s266 + $0x14] sm:$0xf]
        %v320 = vld [vmem:[%s266 + $0x18] sm:$0xf]
        %v321 = vld [vmem:[%s266 + $0x1c] sm:$0xf]
        %v322 = vld [vmem:[%s266 + $0x20] sm:$0xf]
        %v323 = vld [vmem:[%s266 + $0x24] sm:$0xf]
        %v324 = vld [vmem:[%s266 + $0x28] sm:$0xf]
        %v325 = vld [vmem:[%s266 + $0x2c] sm:$0xf]
        %v326 = vld [vmem:[%s266 + $0x30] sm:$0xf]
        %v327 = vld [vmem:[%s266 + $0x34] sm:$0xf]
        %v328 = vld [vmem:[%s266 + $0x38] sm:$0xf]
        %v329 = vld [vmem:[%s266 + $0x3c] sm:$0xf]
        %v330 = vld [vmem:[%s233] sm:$0xf]
        %v331 = vld [vmem:[%s233 + $0x4] sm:$0xf]
        %v332 = vld [vmem:[%s233 + $0x8] sm:$0xf]
        %v333 = vld [vmem:[%s233 + $0xc] sm:$0xf]
        %v334 = vld [vmem:[%s233 + $0x10] sm:$0x1]
        %v351 = vunpack.c.l.b16 %v314
        %v352 = vunpack.c.l.b16 %v315
        %v353 = vunpack.c.l.b16 %v316
        %v354 = vunpack.c.l.b16 %v317
        %v355 = vunpack.c.l.b16 %v318
        %v356 = vunpack.c.l.b16 %v319
        %v357 = vunpack.c.l.b16 %v320
        %v358 = vunpack.c.l.b16 %v321
        %v359 = vunpack.c.l.b16 %v322
        %v360 = vunpack.c.l.b16 %v323
        %v361 = vunpack.c.l.b16 %v324
        %v362 = vunpack.c.l.b16 %v325
        %v363 = vunpack.c.l.b16 %v326
        %v364 = vunpack.c.l.b16 %v327
        %v365 = vunpack.c.l.b16 %v328
        %v366 = vunpack.c.l.b16 %v329
        %v367 = vpack.c.b16 %v352, %v351
        %v368 = vpack.c.b16 %v354, %v353
        %v369 = vpack.c.b16 %v356, %v355
        %v370 = vpack.c.b16 %v358, %v357
        %v371 = vpack.c.b16 %v360, %v359
        %v372 = vpack.c.b16 %v362, %v361
        %v373 = vpack.c.b16 %v364, %v363
        %v374 = vpack.c.b16 %v366, %v365
        %v380 = vunpack.c.l.b16 %v330
        %v381 = vunpack.c.l.b16 %v331
        %v382 = vunpack.c.l.b16 %v332
        %v383 = vunpack.c.l.b16 %v333
        %v384 = vunpack.c.l.b16 %v334
        %v385 = vpack.c.b16 %v381, %v380
        %v386 = vpack.c.b16 %v383, %v382
        %v387 = vpack.c.b16 %v384, %v384
        %vm390 = vcmask 269312
        %v392 = vsel %vm390, %v367, 0
        %v395 = vsel %vm390, %v368, 0
        %v398 = vsel %vm390, %v369, 0
        %v401 = vsel %vm390, %v370, 0
        %v404 = vsel %vm390, %v371, 0
        %v407 = vsel %vm390, %v372, 0
        %v410 = vsel %vm390, %v373, 0
        %v413 = vsel %vm390, %v374, 0
        %vm415 = vcmask 1040384
        %v416 = vsel 0, 4294967295, 65535
        %v417 = vsel %vm415, %v416, 0
        %v419 = vand.u32 %v387, %v417
        %421 = vmatprep.subr.bf16.mxu0 0
        %422 = vmatpush1.bf16.msra.mxu0 %v385
        %423 = vmatprep.subr.bf16.mxu0 0
        %424 = vmatpush1.bf16.msra.mxu0 %v386
        %425 = vmatprep.subr.bf16.mxu0 0
        %426 = vmatpush1.bf16.msra.mxu0 %v419
        %427 = vmatprep.subr.bf16.mxu0 0
        %428 = vmatpush1.bf16.msra.mxu0 0
        %429 = vmatprep.subr.bf16.mxu0 0
        %430 = vmatpush1.bf16.msra.mxu0 0
        %431 = vmatprep.subr.bf16.mxu0 0
        %432 = vmatpush1.bf16.msra.mxu0 0
        %433 = vmatprep.subr.bf16.mxu0 0
        %434 = vmatpush1.bf16.msra.mxu0 0
        %435 = vmatprep.subr.bf16.mxu0 0
        %436 = vmatpush1.bf16.msra.mxu0 0
        %437 = vmatprep.subr.bf16.mxu0 0
        %438 = vmatpush1.bf16.msra.mxu0 0
        %439 = vmatprep.subr.bf16.mxu0 0
        %440 = vmatpush1.bf16.msra.mxu0 0
        %441 = vmatprep.subr.bf16.mxu0 0
        %442 = vmatpush1.bf16.msra.mxu0 0
        %443 = vmatprep.subr.bf16.mxu0 0
        %444 = vmatpush1.bf16.msra.mxu0 0
        %445 = vmatprep.subr.bf16.mxu0 0
        %446 = vmatpush1.bf16.msra.mxu0 0
        %447 = vmatprep.subr.bf16.mxu0 0
        %448 = vmatpush1.bf16.msra.mxu0 0
        %449 = vmatprep.subr.bf16.mxu0 0
        %450 = vmatpush1.bf16.msra.mxu0 0
        %451 = vmatprep.subr.bf16.mxu0 0
        %452 = vmatpush1.bf16.msra.mxu0 0
        %453 = vmatprep.mubr.bf16.mxu0 0
        %454 = vmatmul.mubr.bf16.gmra.mrb[0].mxu0 %v392
        %v455 = vpop.f32.mrb[0].mxu0
        %v456 = vadd.f32 0.0, %v455
        %v457 = vpop.f32.mrb[0].mxu0
        %v458 = vpop.f32.mrb[0].mxu0
        %v459 = vadd.f32 0.0, %v458
        %v460 = vpop.f32.mrb[0].mxu0
        %461 = vmatprep.mubr.bf16.mxu0 0
        %462 = vmatmul.mubr.bf16.gmra.mrb[0].mxu0 %v395
        %v463 = vpop.f32.mrb[0].mxu0
        %v464 = vadd.f32 0.0, %v463
        %v465 = vpop.f32.mrb[0].mxu0
        %v466 = vpop.f32.mrb[0].mxu0
        %v467 = vadd.f32 0.0, %v466
        %v468 = vpop.f32.mrb[0].mxu0
        %469 = vmatprep.mubr.bf16.mxu0 0
        %470 = vmatmul.mubr.bf16.gmra.mrb[0].mxu0 %v398
        %v471 = vpop.f32.mrb[0].mxu0
        %v472 = vadd.f32 0.0, %v471
        %v473 = vpop.f32.mrb[0].mxu0
        %v474 = vpop.f32.mrb[0].mxu0
        %v475 = vadd.f32 0.0, %v474
        %v476 = vpop.f32.mrb[0].mxu0
        %477 = vmatprep.mubr.bf16.mxu0 0
        %478 = vmatmul.mubr.bf16.gmra.mrb[0].mxu0 %v401
        %v479 = vpop.f32.mrb[0].mxu0
        %v480 = vadd.f32 0.0, %v479
        %v481 = vpop.f32.mrb[0].mxu0
        %v482 = vpop.f32.mrb[0].mxu0
        %v483 = vadd.f32 0.0, %v482
        %v484 = vpop.f32.mrb[0].mxu0
        %485 = vmatprep.mubr.bf16.mxu0 0
        %486 = vmatmul.mubr.bf16.gmra.mrb[0].mxu0 %v404
        %v487 = vpop.f32.mrb[0].mxu0
        %v488 = vadd.f32 0.0, %v487
        %v489 = vpop.f32.mrb[0].mxu0
        %v490 = vpop.f32.mrb[0].mxu0
        %v491 = vadd.f32 0.0, %v490
        %v492 = vpop.f32.mrb[0].mxu0
        %493 = vmatprep.mubr.bf16.mxu0 0
        %494 = vmatmul.mubr.bf16.gmra.mrb[0].mxu0 %v407
        %v495 = vpop.f32.mrb[0].mxu0
        %v496 = vadd.f32 0.0, %v495
        %v497 = vpop.f32.mrb[0].mxu0
        %v498 = vpop.f32.mrb[0].mxu0
        %v499 = vadd.f32 0.0, %v498
        %v500 = vpop.f32.mrb[0].mxu0
        %501 = vmatprep.mubr.bf16.mxu0 0
        %502 = vmatmul.mubr.bf16.gmra.mrb[0].mxu0 %v410
        %v503 = vpop.f32.mrb[0].mxu0
        %v504 = vadd.f32 0.0, %v503
        %v505 = vpop.f32.mrb[0].mxu0
        %v506 = vpop.f32.mrb[0].mxu0
        %v507 = vadd.f32 0.0, %v506
        %v508 = vpop.f32.mrb[0].mxu0
        %509 = vmatprep.mubr.bf16.mxu0 0
        %510 = vmatmul.mubr.bf16.gmra.mrb[0].mxu0 %v413
        %v511 = vpop.f32.mrb[0].mxu0
        %v512 = vadd.f32 0.0, %v511
        %v513 = vpop.f32.mrb[0].mxu0
        %v514 = vpop.f32.mrb[0].mxu0
        %v515 = vadd.f32 0.0, %v514
        %v516 = vpop.f32.mrb[0].mxu0
        %517 = vdwg.mxu0
        %v518 = vld [vmem:[#allocation2] sm:$0xff]
        %v519 = vld [vmem:[#allocation2 + $0x8] sm:$0xff]
        %v520 = vld [vmem:[#allocation2 + $0x10] sm:$0xff]
        %v521 = vld [vmem:[#allocation2 + $0x18] sm:$0xff]
        %v522 = vld [vmem:[#allocation2 + $0x20] sm:$0xff]
        %v523 = vld [vmem:[#allocation2 + $0x28] sm:$0xff]
        %v524 = vld [vmem:[#allocation2 + $0x30] sm:$0xff]
        %v525 = vld [vmem:[#allocation2 + $0x38] sm:$0xff]
        %v526 = vld [vmem:[#allocation2 + $0x40] sm:$0xff]
        %v527 = vld [vmem:[#allocation2 + $0x48] sm:$0xff]
        %v528 = vld [vmem:[#allocation2 + $0x50] sm:$0xff]
        %v529 = vld [vmem:[#allocation2 + $0x58] sm:$0xff]
        %v530 = vld [vmem:[#allocation2 + $0x60] sm:$0xff]
        %v531 = vld [vmem:[#allocation2 + $0x68] sm:$0xff]
        %v532 = vld [vmem:[#allocation2 + $0x70] sm:$0xff]
        %v533 = vld [vmem:[#allocation2 + $0x78] sm:$0xff]
        %535 = vset.pattern.permute.xlu0 3
        %536 = vperm.xlu0 %535, %v518
        %v537 = vpop.permute.xlu0 %536
        %540 = vset.pattern.permute.xlu0 3
        %541 = vperm.xlu0 %540, %v519
        %v542 = vpop.permute.xlu0 %541
        %545 = vset.pattern.permute.xlu0 3
        %546 = vperm.xlu0 %545, %v520
        %v547 = vpop.permute.xlu0 %546
        %550 = vset.pattern.permute.xlu0 3
        %551 = vperm.xlu0 %550, %v521
        %v552 = vpop.permute.xlu0 %551
        %555 = vset.pattern.permute.xlu0 3
        %556 = vperm.xlu0 %555, %v522
        %v557 = vpop.permute.xlu0 %556
        %560 = vset.pattern.permute.xlu0 3
        %561 = vperm.xlu0 %560, %v523
        %v562 = vpop.permute.xlu0 %561
        %565 = vset.pattern.permute.xlu0 3
        %566 = vperm.xlu0 %565, %v524
        %v567 = vpop.permute.xlu0 %566
        %570 = vset.pattern.permute.xlu0 3
        %571 = vperm.xlu0 %570, %v525
        %v572 = vpop.permute.xlu0 %571
        %575 = vset.pattern.permute.xlu0 3
        %576 = vperm.xlu0 %575, %v526
        %v577 = vpop.permute.xlu0 %576
        %580 = vset.pattern.permute.xlu0 3
        %581 = vperm.xlu0 %580, %v527
        %v582 = vpop.permute.xlu0 %581
        %585 = vset.pattern.permute.xlu0 3
        %586 = vperm.xlu0 %585, %v528
        %v587 = vpop.permute.xlu0 %586
        %590 = vset.pattern.permute.xlu0 3
        %591 = vperm.xlu0 %590, %v529
        %v592 = vpop.permute.xlu0 %591
        %595 = vset.pattern.permute.xlu0 3
        %596 = vperm.xlu0 %595, %v530
        %v597 = vpop.permute.xlu0 %596
        %600 = vset.pattern.permute.xlu0 3
        %601 = vperm.xlu0 %600, %v531
        %v602 = vpop.permute.xlu0 %601
        %605 = vset.pattern.permute.xlu0 3
        %606 = vperm.xlu0 %605, %v532
        %v607 = vpop.permute.xlu0 %606
        %610 = vset.pattern.permute.xlu0 3
        %611 = vperm.xlu0 %610, %v533
        %v612 = vpop.permute.xlu0 %611
        %vm614 = vcmp.gt.f32.partialorder %v456, %v537
        %vm615 = vcmp.gt.f32.partialorder %v459, %v542
        %vm616 = vcmp.gt.f32.partialorder %v464, %v547
        %vm617 = vcmp.gt.f32.partialorder %v467, %v552
        %vm618 = vcmp.gt.f32.partialorder %v472, %v557
        %vm619 = vcmp.gt.f32.partialorder %v475, %v562
        %vm620 = vcmp.gt.f32.partialorder %v480, %v567
        %vm621 = vcmp.gt.f32.partialorder %v483, %v572
        %vm622 = vcmp.gt.f32.partialorder %v488, %v577
        %vm623 = vcmp.gt.f32.partialorder %v491, %v582
        %vm624 = vcmp.gt.f32.partialorder %v496, %v587
        %vm625 = vcmp.gt.f32.partialorder %v499, %v592
        %vm626 = vcmp.gt.f32.partialorder %v504, %v597
        %vm627 = vcmp.gt.f32.partialorder %v507, %v602
        %vm628 = vcmp.gt.f32.partialorder %v512, %v607
        %vm629 = vcmp.gt.f32.partialorder %v515, %v612
        %v630 = vsel %vm614, 1.0, 0.0
        %v631 = vsel %vm615, 1.0, 0.0
        %v632 = vsel %vm616, 1.0, 0.0
        %v633 = vsel %vm617, 1.0, 0.0
        %v634 = vsel %vm618, 1.0, 0.0
        %v635 = vsel %vm619, 1.0, 0.0
        %v636 = vsel %vm620, 1.0, 0.0
        %v637 = vsel %vm621, 1.0, 0.0
        %v638 = vsel %vm622, 1.0, 0.0
        %v639 = vsel %vm623, 1.0, 0.0
        %v640 = vsel %vm624, 1.0, 0.0
        %v641 = vsel %vm625, 1.0, 0.0
        %v642 = vsel %vm626, 1.0, 0.0
        %v643 = vsel %vm627, 1.0, 0.0
        %v644 = vsel %vm628, 1.0, 0.0
        %v645 = vsel %vm629, 1.0, 0.0
        %v646 = vmax.f32 %v630, %v634
        %v647 = vmax.f32 %v631, %v635
        %v648 = vmax.f32 %v632, %v636
        %v649 = vmax.f32 %v633, %v637
        %v650 = vmax.f32 %v646, %v638
        %v651 = vmax.f32 %v647, %v639
        %v652 = vmax.f32 %v648, %v640
        %v653 = vmax.f32 %v649, %v641
        %v654 = vmax.f32 %v650, %v642
        %v655 = vmax.f32 %v651, %v643
        %v656 = vmax.f32 %v652, %v644
        %v657 = vmax.f32 %v653, %v645
        %v658 = vmax.f32 %v654, %v655
        %v659 = vmax.f32 %v656, %v657
        %v660 = vmax.f32 %v658, %v659
        %661 = vmax.xlane.f32.xlu0 %v660
        %v662 = vpop.xlane.xlu0 %661
        %v663 = vrot.slane %v662, 4
        %v664 = vmax.f32 %v662, %v663
        %v665 = vrot.slane %v664, 2
        %v666 = vmax.f32 %v664, %v665
        %v667 = vrot.slane %v666, 1
        %v668 = vmax.f32 %v666, %v667
        %s669 = vtos %v668
        %p670 = scmp.gt.f32.partialorder %s669, 0.0
        // Predicated region
        $region78: #{_fwd.1} parent=68 // pred_check
          %p671 = pneg %p670
        $region79: #{_fwd.1} parent=68 // pred_check_branch
          %673 = sbr.rel (%p671) target = $region81
        $region80: #{_fwd.1} parent=68 // pred_region
          %v674 = vld [vmem:[#allocation2] sm:$0xff]
          %v675 = vld [vmem:[#allocation2 + $0x8] sm:$0xff]
          %v676 = vld [vmem:[#allocation2 + $0x10] sm:$0xff]
          %v677 = vld [vmem:[#allocation2 + $0x18] sm:$0xff]
          %v678 = vld [vmem:[#allocation2 + $0x20] sm:$0xff]
          %v679 = vld [vmem:[#allocation2 + $0x28] sm:$0xff]
          %v680 = vld [vmem:[#allocation2 + $0x30] sm:$0xff]
          %v681 = vld [vmem:[#allocation2 + $0x38] sm:$0xff]
          %v682 = vld [vmem:[#allocation2 + $0x40] sm:$0xff]
          %v683 = vld [vmem:[#allocation2 + $0x48] sm:$0xff]
          %v684 = vld [vmem:[#allocation2 + $0x50] sm:$0xff]
          %v685 = vld [vmem:[#allocation2 + $0x58] sm:$0xff]
          %v686 = vld [vmem:[#allocation2 + $0x60] sm:$0xff]
          %v687 = vld [vmem:[#allocation2 + $0x68] sm:$0xff]
          %v688 = vld [vmem:[#allocation2 + $0x70] sm:$0xff]
          %v689 = vld [vmem:[#allocation2 + $0x78] sm:$0xff]
          %v690 = vld [vmem:[#allocation3] sm:$0xff]
          %v691 = vld [vmem:[#allocation3 + $0x8] sm:$0xff]
          %v692 = vld [vmem:[#allocation3 + $0x10] sm:$0xff]
          %v693 = vld [vmem:[#allocation3 + $0x18] sm:$0xff]
          %v694 = vld [vmem:[#allocation3 + $0x20] sm:$0xff]
          %v695 = vld [vmem:[#allocation3 + $0x28] sm:$0xff]
          %v696 = vld [vmem:[#allocation3 + $0x30] sm:$0xff]
          %v697 = vld [vmem:[#allocation3 + $0x38] sm:$0xff]
          %v698 = vld [vmem:[#allocation3 + $0x40] sm:$0xff]
          %v699 = vld [vmem:[#allocation3 + $0x48] sm:$0xff]
          %v700 = vld [vmem:[#allocation3 + $0x50] sm:$0xff]
          %v701 = vld [vmem:[#allocation3 + $0x58] sm:$0xff]
          %v702 = vld [vmem:[#allocation3 + $0x60] sm:$0xff]
          %v703 = vld [vmem:[#allocation3 + $0x68] sm:$0xff]
          %v704 = vld [vmem:[#allocation3 + $0x70] sm:$0xff]
          %v705 = vld [vmem:[#allocation3 + $0x78] sm:$0xff]
          %v706 = vld [vmem:[%s270] sm:$0x1]
          %v707 = vlaneseq
          %v708 = vshrl.u32 %v707, 7
          %v709 = vsub.s32 0, %v708
          %v710 = vrot.slane %v706, %v709
          %v711 = vlaneseq
          %v712 = vand.u32 %v711, 127
          %v713 = vadd.s32 %v712, 128
          %v714 = vmul.u32 %v712, 16
          %v715 = vmul.u32 %v713, 16
          %v716 = vadd.s32 %v714, %v690
          %v717 = vadd.s32 %v715, %v710
          %v718 = vadd.s32 %v714, %v691
          %v719 = vadd.s32 %v714, %v692
          %v720 = vadd.s32 %v714, %v693
          %v721 = vadd.s32 %v714, %v694
          %v722 = vadd.s32 %v714, %v695
          %v723 = vadd.s32 %v714, %v696
          %v724 = vadd.s32 %v714, %v697
          %v725 = vadd.s32 %v714, %v698
          %v726 = vadd.s32 %v714, %v699
          %v727 = vadd.s32 %v714, %v700
          %v728 = vadd.s32 %v714, %v701
          %v729 = vadd.s32 %v714, %v702
          %v730 = vadd.s32 %v714, %v703
          %v731 = vadd.s32 %v714, %v704
          %v732 = vadd.s32 %v714, %v705
          %v733 = vmax.f32 %v674, %v456
          %734 = vmax.xlane.f32.xlu0 %v733
          %v735 = vpop.xlane.xlu0 %734
          %v736 = vmax.f32 %v675, %v459
          %737 = vmax.xlane.f32.xlu0 %v736
          %v738 = vpop.xlane.xlu0 %737
          %v739 = vmax.f32 %v676, %v464
          %740 = vmax.xlane.f32.xlu0 %v739
          %v741 = vpop.xlane.xlu0 %740
          %v742 = vmax.f32 %v677, %v467
          %743 = vmax.xlane.f32.xlu0 %v742
          %v744 = vpop.xlane.xlu0 %743
          %v745 = vmax.f32 %v678, %v472
          %746 = vmax.xlane.f32.xlu0 %v745
          %v747 = vpop.xlane.xlu0 %746
          %v748 = vmax.f32 %v679, %v475
          %749 = vmax.xlane.f32.xlu0 %v748
          %v750 = vpop.xlane.xlu0 %749
          %v751 = vmax.f32 %v680, %v480
          %752 = vmax.xlane.f32.xlu0 %v751
          %v753 = vpop.xlane.xlu0 %752
          %v754 = vmax.f32 %v681, %v483
          %755 = vmax.xlane.f32.xlu0 %v754
          %v756 = vpop.xlane.xlu0 %755
          %v757 = vmax.f32 %v682, %v488
          %758 = vmax.xlane.f32.xlu0 %v757
          %v759 = vpop.xlane.xlu0 %758
          %v760 = vmax.f32 %v683, %v491
          %761 = vmax.xlane.f32.xlu0 %v760
          %v762 = vpop.xlane.xlu0 %761
          %v763 = vmax.f32 %v684, %v496
          %764 = vmax.xlane.f32.xlu0 %v763
          %v765 = vpop.xlane.xlu0 %764
          %v766 = vmax.f32 %v685, %v499
          %767 = vmax.xlane.f32.xlu0 %v766
          %v768 = vpop.xlane.xlu0 %767
          %v769 = vmax.f32 %v686, %v504
          %770 = vmax.xlane.f32.xlu0 %v769
          %v771 = vpop.xlane.xlu0 %770
          %v772 = vmax.f32 %v687, %v507
          %773 = vmax.xlane.f32.xlu0 %v772
          %v774 = vpop.xlane.xlu0 %773
          %v775 = vmax.f32 %v688, %v512
          %776 = vmax.xlane.f32.xlu0 %v775
          %v777 = vpop.xlane.xlu0 %776
          %v778 = vmax.f32 %v689, %v515
          %779 = vmax.xlane.f32.xlu0 %v778
          %v780 = vpop.xlane.xlu0 %779
          %vm781 = vcmp.eq.f32.partialorder %v674, %v735
          %vm782 = vcmp.eq.f32.partialorder %v456, %v735
          %vm783 = vcmp.eq.f32.partialorder %v675, %v738
          %vm784 = vcmp.eq.f32.partialorder %v459, %v738
          %vm785 = vcmp.eq.f32.partialorder %v676, %v741
          %vm786 = vcmp.eq.f32.partialorder %v464, %v741
          %vm787 = vcmp.eq.f32.partialorder %v677, %v744
          %vm788 = vcmp.eq.f32.partialorder %v467, %v744
          %vm789 = vcmp.eq.f32.partialorder %v678, %v747
          %vm790 = vcmp.eq.f32.partialorder %v472, %v747
          %vm791 = vcmp.eq.f32.partialorder %v679, %v750
          %vm792 = vcmp.eq.f32.partialorder %v475, %v750
          %vm793 = vcmp.eq.f32.partialorder %v680, %v753
          %vm794 = vcmp.eq.f32.partialorder %v480, %v753
          %vm795 = vcmp.eq.f32.partialorder %v681, %v756
          %vm796 = vcmp.eq.f32.partialorder %v483, %v756
          %vm797 = vcmp.eq.f32.partialorder %v682, %v759
          %vm798 = vcmp.eq.f32.partialorder %v488, %v759
          %vm799 = vcmp.eq.f32.partialorder %v683, %v762
          %vm800 = vcmp.eq.f32.partialorder %v491, %v762
          %vm801 = vcmp.eq.f32.partialorder %v684, %v765
          %vm802 = vcmp.eq.f32.partialorder %v496, %v765
          %vm803 = vcmp.eq.f32.partialorder %v685, %v768
          %vm804 = vcmp.eq.f32.partialorder %v499, %v768
          %vm805 = vcmp.eq.f32.partialorder %v686, %v771
          %vm806 = vcmp.eq.f32.partialorder %v504, %v771
          %vm807 = vcmp.eq.f32.partialorder %v687, %v774
          %vm808 = vcmp.eq.f32.partialorder %v507, %v774
          %vm809 = vcmp.eq.f32.partialorder %v688, %v777
          %vm810 = vcmp.eq.f32.partialorder %v512, %v777
          %vm811 = vcmp.eq.f32.partialorder %v689, %v780
          %vm812 = vcmp.eq.f32.partialorder %v515, %v780
          %v813 = vsel %vm781, %v716, 4096
          %v814 = vsel %vm782, %v717, 4096
          %v815 = vsel %vm783, %v718, 4096
          %v816 = vsel %vm784, %v717, 4096
          %v817 = vsel %vm785, %v719, 4096
          %v818 = vsel %vm786, %v717, 4096
          %v819 = vsel %vm787, %v720, 4096
          %v820 = vsel %vm788, %v717, 4096
          %v821 = vsel %vm789, %v721, 4096
          %v822 = vsel %vm790, %v717, 4096
          %v823 = vsel %vm791, %v722, 4096
          %v824 = vsel %vm792, %v717, 4096
          %v825 = vsel %vm793, %v723, 4096
          %v826 = vsel %vm794, %v717, 4096
          %v827 = vsel %vm795, %v724, 4096
          %v828 = vsel %vm796, %v717, 4096
          %v829 = vsel %vm797, %v725, 4096
          %v830 = vsel %vm798, %v717, 4096
          %v831 = vsel %vm799, %v726, 4096
          %v832 = vsel %vm800, %v717, 4096
          %v833 = vsel %vm801, %v727, 4096
          %v834 = vsel %vm802, %v717, 4096
          %v835 = vsel %vm803, %v728, 4096
          %v836 = vsel %vm804, %v717, 4096
          %v837 = vsel %vm805, %v729, 4096
          %v838 = vsel %vm806, %v717, 4096
          %v839 = vsel %vm807, %v730, 4096
          %v840 = vsel %vm808, %v717, 4096
          %v841 = vsel %vm809, %v731, 4096
          %v842 = vsel %vm810, %v717, 4096
          %v843 = vsel %vm811, %v732, 4096
          %v844 = vsel %vm812, %v717, 4096
          %vm845 = vcmp.lt.s32.totalorder %v813, %v814
          %v846 = vsel %vm845, %v813, %v814
          %v847 = vand.u32 %v846, 65535
          %v848 = vshra.s32 %v846, 16
          %v849 = vcvt.s32.f32 %v847
          %v850 = vcvt.s32.f32 %v848
          %851 = vmin.xlane.f32.xlu0 %v850
          %v852 = vpop.xlane.xlu0 %851
          %vm853 = vcmp.eq.f32.partialorder %v850, %v852
          %v854 = vsel %vm853, %v849, inf
          %855 = vmin.xlane.f32.xlu0 %v854
          %v856 = vpop.xlane.xlu0 %855
          %v857 = vcvt.f32.s32 %v856
          %v858 = vcvt.f32.s32 %v852
          %v859 = vshll.u32 %v858, 16
          %v860 = vadd.s32 %v859, %v857
          %vm861 = vcmp.lt.s32.totalorder %v815, %v816
          %v862 = vsel %vm861, %v815, %v816
          %v863 = vand.u32 %v862, 65535
          %v864 = vshra.s32 %v862, 16
          %v865 = vcvt.s32.f32 %v863
          %v866 = vcvt.s32.f32 %v864
          %867 = vmin.xlane.f32.xlu0 %v866
          %v868 = vpop.xlane.xlu0 %867
          %vm869 = vcmp.eq.f32.partialorder %v866, %v868
          %v870 = vsel %vm869, %v865, inf
          %871 = vmin.xlane.f32.xlu0 %v870
          %v872 = vpop.xlane.xlu0 %871
          %v873 = vcvt.f32.s32 %v872
          %v874 = vcvt.f32.s32 %v868
          %v875 = vshll.u32 %v874, 16
          %v876 = vadd.s32 %v875, %v873
          %vm877 = vcmp.lt.s32.totalorder %v817, %v818
          %v878 = vsel %vm877, %v817, %v818
          %v879 = vand.u32 %v878, 65535
          %v880 = vshra.s32 %v878, 16
          %v881 = vcvt.s32.f32 %v879
          %v882 = vcvt.s32.f32 %v880
          %883 = vmin.xlane.f32.xlu0 %v882
          %v884 = vpop.xlane.xlu0 %883
          %vm885 = vcmp.eq.f32.partialorder %v882, %v884
          %v886 = vsel %vm885, %v881, inf
          %887 = vmin.xlane.f32.xlu0 %v886
          %v888 = vpop.xlane.xlu0 %887
          %v889 = vcvt.f32.s32 %v888
          %v890 = vcvt.f32.s32 %v884
          %v891 = vshll.u32 %v890, 16
          %v892 = vadd.s32 %v891, %v889
          %vm893 = vcmp.lt.s32.totalorder %v819, %v820
          %v894 = vsel %vm893, %v819, %v820
          %v895 = vand.u32 %v894, 65535
          %v896 = vshra.s32 %v894, 16
          %v897 = vcvt.s32.f32 %v895
          %v898 = vcvt.s32.f32 %v896
          %899 = vmin.xlane.f32.xlu0 %v898
          %v900 = vpop.xlane.xlu0 %899
          %vm901 = vcmp.eq.f32.partialorder %v898, %v900
          %v902 = vsel %vm901, %v897, inf
          %903 = vmin.xlane.f32.xlu0 %v902
          %v904 = vpop.xlane.xlu0 %903
          %v905 = vcvt.f32.s32 %v904
          %v906 = vcvt.f32.s32 %v900
          %v907 = vshll.u32 %v906, 16
          %v908 = vadd.s32 %v907, %v905
          %vm909 = vcmp.lt.s32.totalorder %v821, %v822
          %v910 = vsel %vm909, %v821, %v822
          %v911 = vand.u32 %v910, 65535
          %v912 = vshra.s32 %v910, 16
          %v913 = vcvt.s32.f32 %v911
          %v914 = vcvt.s32.f32 %v912
          %915 = vmin.xlane.f32.xlu0 %v914
          %v916 = vpop.xlane.xlu0 %915
          %vm917 = vcmp.eq.f32.partialorder %v914, %v916
          %v918 = vsel %vm917, %v913, inf
          %919 = vmin.xlane.f32.xlu0 %v918
          %v920 = vpop.xlane.xlu0 %919
          %v921 = vcvt.f32.s32 %v920
          %v922 = vcvt.f32.s32 %v916
          %v923 = vshll.u32 %v922, 16
          %v924 = vadd.s32 %v923, %v921
          %vm925 = vcmp.lt.s32.totalorder %v823, %v824
          %v926 = vsel %vm925, %v823, %v824
          %v927 = vand.u32 %v926, 65535
          %v928 = vshra.s32 %v926, 16
          %v929 = vcvt.s32.f32 %v927
          %v930 = vcvt.s32.f32 %v928
          %931 = vmin.xlane.f32.xlu0 %v930
          %v932 = vpop.xlane.xlu0 %931
          %vm933 = vcmp.eq.f32.partialorder %v930, %v932
          %v934 = vsel %vm933, %v929, inf
          %935 = vmin.xlane.f32.xlu0 %v934
          %v936 = vpop.xlane.xlu0 %935
          %v937 = vcvt.f32.s32 %v936
          %v938 = vcvt.f32.s32 %v932
          %v939 = vshll.u32 %v938, 16
          %v940 = vadd.s32 %v939, %v937
          %vm941 = vcmp.lt.s32.totalorder %v825, %v826
          %v942 = vsel %vm941, %v825, %v826
          %v943 = vand.u32 %v942, 65535
          %v944 = vshra.s32 %v942, 16
          %v945 = vcvt.s32.f32 %v943
          %v946 = vcvt.s32.f32 %v944
          %947 = vmin.xlane.f32.xlu0 %v946
          %v948 = vpop.xlane.xlu0 %947
          %vm949 = vcmp.eq.f32.partialorder %v946, %v948
          %v950 = vsel %vm949, %v945, inf
          %951 = vmin.xlane.f32.xlu0 %v950
          %v952 = vpop.xlane.xlu0 %951
          %v953 = vcvt.f32.s32 %v952
          %v954 = vcvt.f32.s32 %v948
          %v955 = vshll.u32 %v954, 16
          %v956 = vadd.s32 %v955, %v953
          %vm957 = vcmp.lt.s32.totalorder %v827, %v828
          %v958 = vsel %vm957, %v827, %v828
          %v959 = vand.u32 %v958, 65535
          %v960 = vshra.s32 %v958, 16
          %v961 = vcvt.s32.f32 %v959
          %v962 = vcvt.s32.f32 %v960
          %963 = vmin.xlane.f32.xlu0 %v962
          %v964 = vpop.xlane.xlu0 %963
          %vm965 = vcmp.eq.f32.partialorder %v962, %v964
          %v966 = vsel %vm965, %v961, inf
          %967 = vmin.xlane.f32.xlu0 %v966
          %v968 = vpop.xlane.xlu0 %967
          %v969 = vcvt.f32.s32 %v968
          %v970 = vcvt.f32.s32 %v964
          %v971 = vshll.u32 %v970, 16
          %v972 = vadd.s32 %v971, %v969
          %vm973 = vcmp.lt.s32.totalorder %v829, %v830
          %v974 = vsel %vm973, %v829, %v830
          %v975 = vand.u32 %v974, 65535
          %v976 = vshra.s32 %v974, 16
          %v977 = vcvt.s32.f32 %v975
          %v978 = vcvt.s32.f32 %v976
          %979 = vmin.xlane.f32.xlu0 %v978
          %v980 = vpop.xlane.xlu0 %979
          %vm981 = vcmp.eq.f32.partialorder %v978, %v980
          %v982 = vsel %vm981, %v977, inf
          %983 = vmin.xlane.f32.xlu0 %v982
          %v984 = vpop.xlane.xlu0 %983
          %v985 = vcvt.f32.s32 %v984
          %v986 = vcvt.f32.s32 %v980
          %v987 = vshll.u32 %v986, 16
          %v988 = vadd.s32 %v987, %v985
          %vm989 = vcmp.lt.s32.totalorder %v831, %v832
          %v990 = vsel %vm989, %v831, %v832
          %v991 = vand.u32 %v990, 65535
          %v992 = vshra.s32 %v990, 16
          %v993 = vcvt.s32.f32 %v991
          %v994 = vcvt.s32.f32 %v992
          %995 = vmin.xlane.f32.xlu0 %v994
          %v996 = vpop.xlane.xlu0 %995
          %vm997 = vcmp.eq.f32.partialorder %v994, %v996
          %v998 = vsel %vm997, %v993, inf
          %999 = vmin.xlane.f32.xlu0 %v998
          %v1000 = vpop.xlane.xlu0 %999
          %v1001 = vcvt.f32.s32 %v1000
          %v1002 = vcvt.f32.s32 %v996
          %v1003 = vshll.u32 %v1002, 16
          %v1004 = vadd.s32 %v1003, %v1001
          %vm1005 = vcmp.lt.s32.totalorder %v833, %v834
          %v1006 = vsel %vm1005, %v833, %v834
          %v1007 = vand.u32 %v1006, 65535
          %v1008 = vshra.s32 %v1006, 16
          %v1009 = vcvt.s32.f32 %v1007
          %v1010 = vcvt.s32.f32 %v1008
          %1011 = vmin.xlane.f32.xlu0 %v1010
          %v1012 = vpop.xlane.xlu0 %1011
          %vm1013 = vcmp.eq.f32.partialorder %v1010, %v1012
          %v1014 = vsel %vm1013, %v1009, inf
          %1015 = vmin.xlane.f32.xlu0 %v1014
          %v1016 = vpop.xlane.xlu0 %1015
          %v1017 = vcvt.f32.s32 %v1016
          %v1018 = vcvt.f32.s32 %v1012
          %v1019 = vshll.u32 %v1018, 16
          %v1020 = vadd.s32 %v1019, %v1017
          %vm1021 = vcmp.lt.s32.totalorder %v835, %v836
          %v1022 = vsel %vm1021, %v835, %v836
          %v1023 = vand.u32 %v1022, 65535
          %v1024 = vshra.s32 %v1022, 16
          %v1025 = vcvt.s32.f32 %v1023
          %v1026 = vcvt.s32.f32 %v1024
          %1027 = vmin.xlane.f32.xlu0 %v1026
          %v1028 = vpop.xlane.xlu0 %1027
          %vm1029 = vcmp.eq.f32.partialorder %v1026, %v1028
          %v1030 = vsel %vm1029, %v1025, inf
          %1031 = vmin.xlane.f32.xlu0 %v1030
          %v1032 = vpop.xlane.xlu0 %1031
          %v1033 = vcvt.f32.s32 %v1032
          %v1034 = vcvt.f32.s32 %v1028
          %v1035 = vshll.u32 %v1034, 16
          %v1036 = vadd.s32 %v1035, %v1033
          %vm1037 = vcmp.lt.s32.totalorder %v837, %v838
          %v1038 = vsel %vm1037, %v837, %v838
          %v1039 = vand.u32 %v1038, 65535
          %v1040 = vshra.s32 %v1038, 16
          %v1041 = vcvt.s32.f32 %v1039
          %v1042 = vcvt.s32.f32 %v1040
          %1043 = vmin.xlane.f32.xlu0 %v1042
          %v1044 = vpop.xlane.xlu0 %1043
          %vm1045 = vcmp.eq.f32.partialorder %v1042, %v1044
          %v1046 = vsel %vm1045, %v1041, inf
          %1047 = vmin.xlane.f32.xlu0 %v1046
          %v1048 = vpop.xlane.xlu0 %1047
          %v1049 = vcvt.f32.s32 %v1048
          %v1050 = vcvt.f32.s32 %v1044
          %v1051 = vshll.u32 %v1050, 16
          %v1052 = vadd.s32 %v1051, %v1049
          %vm1053 = vcmp.lt.s32.totalorder %v839, %v840
          %v1054 = vsel %vm1053, %v839, %v840
          %v1055 = vand.u32 %v1054, 65535
          %v1056 = vshra.s32 %v1054, 16
          %v1057 = vcvt.s32.f32 %v1055
          %v1058 = vcvt.s32.f32 %v1056
          %1059 = vmin.xlane.f32.xlu0 %v1058
          %v1060 = vpop.xlane.xlu0 %1059
          %vm1061 = vcmp.eq.f32.partialorder %v1058, %v1060
          %v1062 = vsel %vm1061, %v1057, inf
          %1063 = vmin.xlane.f32.xlu0 %v1062
          %v1064 = vpop.xlane.xlu0 %1063
          %v1065 = vcvt.f32.s32 %v1064
          %v1066 = vcvt.f32.s32 %v1060
          %v1067 = vshll.u32 %v1066, 16
          %v1068 = vadd.s32 %v1067, %v1065
          %vm1069 = vcmp.lt.s32.totalorder %v841, %v842
          %v1070 = vsel %vm1069, %v841, %v842
          %v1071 = vand.u32 %v1070, 65535
          %v1072 = vshra.s32 %v1070, 16
          %v1073 = vcvt.s32.f32 %v1071
          %v1074 = vcvt.s32.f32 %v1072
          %1075 = vmin.xlane.f32.xlu0 %v1074
          %v1076 = vpop.xlane.xlu0 %1075
          %vm1077 = vcmp.eq.f32.partialorder %v1074, %v1076
          %v1078 = vsel %vm1077, %v1073, inf
          %1079 = vmin.xlane.f32.xlu0 %v1078
          %v1080 = vpop.xlane.xlu0 %1079
          %v1081 = vcvt.f32.s32 %v1080
          %v1082 = vcvt.f32.s32 %v1076
          %v1083 = vshll.u32 %v1082, 16
          %v1084 = vadd.s32 %v1083, %v1081
          %vm1085 = vcmp.lt.s32.totalorder %v843, %v844
          %v1086 = vsel %vm1085, %v843, %v844
          %v1087 = vand.u32 %v1086, 65535
          %v1088 = vshra.s32 %v1086, 16
          %v1089 = vcvt.s32.f32 %v1087
          %v1090 = vcvt.s32.f32 %v1088
          %1091 = vmin.xlane.f32.xlu0 %v1090
          %v1092 = vpop.xlane.xlu0 %1091
          %vm1093 = vcmp.eq.f32.partialorder %v1090, %v1092
          %v1094 = vsel %vm1093, %v1089, inf
          %1095 = vmin.xlane.f32.xlu0 %v1094
          %v1096 = vpop.xlane.xlu0 %1095
          %v1097 = vcvt.f32.s32 %v1096
          %v1098 = vcvt.f32.s32 %v1092
          %v1099 = vshll.u32 %v1098, 16
          %v1100 = vadd.s32 %v1099, %v1097
          %vm1101 = vcmask 7168
          %1102 = vst.msk [vmem:[#allocation2] sm:$0xff] %vm1101, %v735
          %1103 = vst.msk [vmem:[#allocation2 + $0x8] sm:$0xff] %vm1101, %v738
          %1104 = vst.msk [vmem:[#allocation2 + $0x10] sm:$0xff] %vm1101, %v741
          %1105 = vst.msk [vmem:[#allocation2 + $0x18] sm:$0xff] %vm1101, %v744
          %1106 = vst.msk [vmem:[#allocation2 + $0x20] sm:$0xff] %vm1101, %v747
          %1107 = vst.msk [vmem:[#allocation2 + $0x28] sm:$0xff] %vm1101, %v750
          %1108 = vst.msk [vmem:[#allocation2 + $0x30] sm:$0xff] %vm1101, %v753
          %1109 = vst.msk [vmem:[#allocation2 + $0x38] sm:$0xff] %vm1101, %v756
          %1110 = vst.msk [vmem:[#allocation2 + $0x40] sm:$0xff] %vm1101, %v759
          %1111 = vst.msk [vmem:[#allocation2 + $0x48] sm:$0xff] %vm1101, %v762
          %1112 = vst.msk [vmem:[#allocation2 + $0x50] sm:$0xff] %vm1101, %v765
          %1113 = vst.msk [vmem:[#allocation2 + $0x58] sm:$0xff] %vm1101, %v768
          %1114 = vst.msk [vmem:[#allocation2 + $0x60] sm:$0xff] %vm1101, %v771
          %1115 = vst.msk [vmem:[#allocation2 + $0x68] sm:$0xff] %vm1101, %v774
          %1116 = vst.msk [vmem:[#allocation2 + $0x70] sm:$0xff] %vm1101, %v777
          %1117 = vst.msk [vmem:[#allocation2 + $0x78] sm:$0xff] %vm1101, %v780
          %v1118 = vand.u32 %v860, 15
          %v1119 = vand.u32 %v876, 15
          %v1120 = vand.u32 %v892, 15
          %v1121 = vand.u32 %v908, 15
          %v1122 = vand.u32 %v924, 15
          %v1123 = vand.u32 %v940, 15
          %v1124 = vand.u32 %v956, 15
          %v1125 = vand.u32 %v972, 15
          %v1126 = vand.u32 %v988, 15
          %v1127 = vand.u32 %v1004, 15
          %v1128 = vand.u32 %v1020, 15
          %v1129 = vand.u32 %v1036, 15
          %v1130 = vand.u32 %v1052, 15
          %v1131 = vand.u32 %v1068, 15
          %v1132 = vand.u32 %v1084, 15
          %v1133 = vand.u32 %v1100, 15
          %1134 = vst.msk [vmem:[#allocation3] sm:$0xff] %vm1101, %v1118
          %1135 = vst.msk [vmem:[#allocation3 + $0x8] sm:$0xff] %vm1101, %v1119
          %1136 = vst.msk [vmem:[#allocation3 + $0x10] sm:$0xff] %vm1101, %v1120
          %1137 = vst.msk [vmem:[#allocation3 + $0x18] sm:$0xff] %vm1101, %v1121
          %1138 = vst.msk [vmem:[#allocation3 + $0x20] sm:$0xff] %vm1101, %v1122
          %1139 = vst.msk [vmem:[#allocation3 + $0x28] sm:$0xff] %vm1101, %v1123
          %1140 = vst.msk [vmem:[#allocation3 + $0x30] sm:$0xff] %vm1101, %v1124
          %1141 = vst.msk [vmem:[#allocation3 + $0x38] sm:$0xff] %vm1101, %v1125
          %1142 = vst.msk [vmem:[#allocation3 + $0x40] sm:$0xff] %vm1101, %v1126
          %1143 = vst.msk [vmem:[#allocation3 + $0x48] sm:$0xff] %vm1101, %v1127
          %1144 = vst.msk [vmem:[#allocation3 + $0x50] sm:$0xff] %vm1101, %v1128
          %1145 = vst.msk [vmem:[#allocation3 + $0x58] sm:$0xff] %vm1101, %v1129
          %1146 = vst.msk [vmem:[#allocation3 + $0x60] sm:$0xff] %vm1101, %v1130
          %1147 = vst.msk [vmem:[#allocation3 + $0x68] sm:$0xff] %vm1101, %v1131
          %1148 = vst.msk [vmem:[#allocation3 + $0x70] sm:$0xff] %vm1101, %v1132
          %1149 = vst.msk [vmem:[#allocation3 + $0x78] sm:$0xff] %vm1101, %v1133
          %vm1150 = vcmp.eq.s32.totalorder %v716, %v860
          %vm1151 = vcmp.eq.s32.totalorder %v717, %v860
          %vm1152 = vcmp.eq.s32.totalorder %v718, %v876
          %vm1153 = vcmp.eq.s32.totalorder %v717, %v876
          %vm1154 = vcmp.eq.s32.totalorder %v719, %v892
          %vm1155 = vcmp.eq.s32.totalorder %v717, %v892
          %vm1156 = vcmp.eq.s32.totalorder %v720, %v908
          %vm1157 = vcmp.eq.s32.totalorder %v717, %v908
          %vm1158 = vcmp.eq.s32.totalorder %v721, %v924
          %vm1159 = vcmp.eq.s32.totalorder %v717, %v924
          %vm1160 = vcmp.eq.s32.totalorder %v722, %v940
          %vm1161 = vcmp.eq.s32.totalorder %v717, %v940
          %vm1162 = vcmp.eq.s32.totalorder %v723, %v956
          %vm1163 = vcmp.eq.s32.totalorder %v717, %v956
          %vm1164 = vcmp.eq.s32.totalorder %v724, %v972
          %vm1165 = vcmp.eq.s32.totalorder %v717, %v972
          %vm1166 = vcmp.eq.s32.totalorder %v725, %v988
          %vm1167 = vcmp.eq.s32.totalorder %v717, %v988
          %vm1168 = vcmp.eq.s32.totalorder %v726, %v1004
          %vm1169 = vcmp.eq.s32.totalorder %v717, %v1004
          %vm1170 = vcmp.eq.s32.totalorder %v727, %v1020
          %vm1171 = vcmp.eq.s32.totalorder %v717, %v1020
          %vm1172 = vcmp.eq.s32.totalorder %v728, %v1036
          %vm1173 = vcmp.eq.s32.totalorder %v717, %v1036
          %vm1174 = vcmp.eq.s32.totalorder %v729, %v1052
          %vm1175 = vcmp.eq.s32.totalorder %v717, %v1052
          %vm1176 = vcmp.eq.s32.totalorder %v730, %v1068
          %vm1177 = vcmp.eq.s32.totalorder %v717, %v1068
          %vm1178 = vcmp.eq.s32.totalorder %v731, %v1084
          %vm1179 = vcmp.eq.s32.totalorder %v717, %v1084
          %vm1180 = vcmp.eq.s32.totalorder %v732, %v1100
          %vm1181 = vcmp.eq.s32.totalorder %v717, %v1100
          %v1182 = vsel %vm1150, -inf, %v674
          %v1183 = vsel %vm1151, -inf, %v456
          %v1184 = vsel %vm1152, -inf, %v675
          %v1185 = vsel %vm1153, -inf, %v459
          %v1186 = vsel %vm1154, -inf, %v676
          %v1187 = vsel %vm1155, -inf, %v464
          %v1188 = vsel %vm1156, -inf, %v677
          %v1189 = vsel %vm1157, -inf, %v467
          %v1190 = vsel %vm1158, -inf, %v678
          %v1191 = vsel %vm1159, -inf, %v472
          %v1192 = vsel %vm1160, -inf, %v679
          %v1193 = vsel %vm1161, -inf, %v475
          %v1194 = vsel %vm1162, -inf, %v680
          %v1195 = vsel %vm1163, -inf, %v480
          %v1196 = vsel %vm1164, -inf, %v681
          %v1197 = vsel %vm1165, -inf, %v483
          %v1198 = vsel %vm1166, -inf, %v682
          %v1199 = vsel %vm1167, -inf, %v488
          %v1200 = vsel %vm1168, -inf, %v683
          %v1201 = vsel %vm1169, -inf, %v491
          %v1202 = vsel %vm1170, -inf, %v684
          %v1203 = vsel %vm1171, -inf, %v496
          %v1204 = vsel %vm1172, -inf, %v685
          %v1205 = vsel %vm1173, -inf, %v499
          %v1206 = vsel %vm1174, -inf, %v686
          %v1207 = vsel %vm1175, -inf, %v504
          %v1208 = vsel %vm1176, -inf, %v687
          %v1209 = vsel %vm1177, -inf, %v507
          %v1210 = vsel %vm1178, -inf, %v688
          %v1211 = vsel %vm1179, -inf, %v512
          %v1212 = vsel %vm1180, -inf, %v689
          %v1213 = vsel %vm1181, -inf, %v515
          %v1214 = vmax.f32 %v1182, %v1183
          %1215 = vmax.xlane.f32.xlu0 %v1214
          %v1216 = vpop.xlane.xlu0 %1215
          %v1217 = vmax.f32 %v1184, %v1185
          %1218 = vmax.xlane.f32.xlu0 %v1217
          %v1219 = vpop.xlane.xlu0 %1218
          %v1220 = vmax.f32 %v1186, %v1187
          %1221 = vmax.xlane.f32.xlu0 %v1220
          %v1222 = vpop.xlane.xlu0 %1221
          %v1223 = vmax.f32 %v1188, %v1189
          %1224 = vmax.xlane.f32.xlu0 %v1223
          %v1225 = vpop.xlane.xlu0 %1224
          %v1226 = vmax.f32 %v1190, %v1191
          %1227 = vmax.xlane.f32.xlu0 %v1226
          %v1228 = vpop.xlane.xlu0 %1227
          %v1229 = vmax.f32 %v1192, %v1193
          %1230 = vmax.xlane.f32.xlu0 %v1229
          %v1231 = vpop.xlane.xlu0 %1230
          %v1232 = vmax.f32 %v1194, %v1195
          %1233 = vmax.xlane.f32.xlu0 %v1232
          %v1234 = vpop.xlane.xlu0 %1233
          %v1235 = vmax.f32 %v1196, %v1197
          %1236 = vmax.xlane.f32.xlu0 %v1235
          %v1237 = vpop.xlane.xlu0 %1236
          %v1238 = vmax.f32 %v1198, %v1199
          %1239 = vmax.xlane.f32.xlu0 %v1238
          %v1240 = vpop.xlane.xlu0 %1239
          %v1241 = vmax.f32 %v1200, %v1201
          %1242 = vmax.xlane.f32.xlu0 %v1241
          %v1243 = vpop.xlane.xlu0 %1242
          %v1244 = vmax.f32 %v1202, %v1203
          %1245 = vmax.xlane.f32.xlu0 %v1244
          %v1246 = vpop.xlane.xlu0 %1245
          %v1247 = vmax.f32 %v1204, %v1205
          %1248 = vmax.xlane.f32.xlu0 %v1247
          %v1249 = vpop.xlane.xlu0 %1248
          %v1250 = vmax.f32 %v1206, %v1207
          %1251 = vmax.xlane.f32.xlu0 %v1250
          %v1252 = vpop.xlane.xlu0 %1251
          %v1253 = vmax.f32 %v1208, %v1209
          %1254 = vmax.xlane.f32.xlu0 %v1253
          %v1255 = vpop.xlane.xlu0 %1254
          %v1256 = vmax.f32 %v1210, %v1211
          %1257 = vmax.xlane.f32.xlu0 %v1256
          %v1258 = vpop.xlane.xlu0 %1257
          %v1259 = vmax.f32 %v1212, %v1213
          %1260 = vmax.xlane.f32.xlu0 %v1259
          %v1261 = vpop.xlane.xlu0 %1260
          %vm1262 = vcmp.eq.f32.partialorder %v1182, %v1216
          %vm1263 = vcmp.eq.f32.partialorder %v1183, %v1216
          %vm1264 = vcmp.eq.f32.partialorder %v1184, %v1219
          %vm1265 = vcmp.eq.f32.partialorder %v1185, %v1219
          %vm1266 = vcmp.eq.f32.partialorder %v1186, %v1222
          %vm1267 = vcmp.eq.f32.partialorder %v1187, %v1222
          %vm1268 = vcmp.eq.f32.partialorder %v1188, %v1225
          %vm1269 = vcmp.eq.f32.partialorder %v1189, %v1225
          %vm1270 = vcmp.eq.f32.partialorder %v1190, %v1228
          %vm1271 = vcmp.eq.f32.partialorder %v1191, %v1228
          %vm1272 = vcmp.eq.f32.partialorder %v1192, %v1231
          %vm1273 = vcmp.eq.f32.partialorder %v1193, %v1231
          %vm1274 = vcmp.eq.f32.partialorder %v1194, %v1234
          %vm1275 = vcmp.eq.f32.partialorder %v1195, %v1234
          %vm1276 = vcmp.eq.f32.partialorder %v1196, %v1237
          %vm1277 = vcmp.eq.f32.partialorder %v1197, %v1237
          %vm1278 = vcmp.eq.f32.partialorder %v1198, %v1240
          %vm1279 = vcmp.eq.f32.partialorder %v1199, %v1240
          %vm1280 = vcmp.eq.f32.partialorder %v1200, %v1243
          %vm1281 = vcmp.eq.f32.partialorder %v1201, %v1243
          %vm1282 = vcmp.eq.f32.partialorder %v1202, %v1246
          %vm1283 = vcmp.eq.f32.partialorder %v1203, %v1246
          %vm1284 = vcmp.eq.f32.partialorder %v1204, %v1249
          %vm1285 = vcmp.eq.f32.partialorder %v1205, %v1249
          %vm1286 = vcmp.eq.f32.partialorder %v1206, %v1252
          %vm1287 = vcmp.eq.f32.partialorder %v1207, %v1252
          %vm1288 = vcmp.eq.f32.partialorder %v1208, %v1255
          %vm1289 = vcmp.eq.f32.partialorder %v1209, %v1255
          %vm1290 = vcmp.eq.f32.partialorder %v1210, %v1258
          %vm1291 = vcmp.eq.f32.partialorder %v1211, %v1258
          %vm1292 = vcmp.eq.f32.partialorder %v1212, %v1261
          %vm1293 = vcmp.eq.f32.partialorder %v1213, %v1261
          %v1294 = vsel %vm1262, %v716, 4096
          %v1295 = vsel %vm1263, %v717, 4096
          %v1296 = vsel %vm1264, %v718, 4096
          %v1297 = vsel %vm1265, %v717, 4096
          %v1298 = vsel %vm1266, %v719, 4096
          %v1299 = vsel %vm1267, %v717, 4096
          %v1300 = vsel %vm1268, %v720, 4096
          %v1301 = vsel %vm1269, %v717, 4096
          %v1302 = vsel %vm1270, %v721, 4096
          %v1303 = vsel %vm1271, %v717, 4096
          %v1304 = vsel %vm1272, %v722, 4096
          %v1305 = vsel %vm1273, %v717, 4096
          %v1306 = vsel %vm1274, %v723, 4096
          %v1307 = vsel %vm1275, %v717, 4096
          %v1308 = vsel %vm1276, %v724, 4096
          %v1309 = vsel %vm1277, %v717, 4096
          %v1310 = vsel %vm1278, %v725, 4096
          %v1311 = vsel %vm1279, %v717, 4096
          %v1312 = vsel %vm1280, %v726, 4096
          %v1313 = vsel %vm1281, %v717, 4096
          %v1314 = vsel %vm1282, %v727, 4096
          %v1315 = vsel %vm1283, %v717, 4096
          %v1316 = vsel %vm1284, %v728, 4096
          %v1317 = vsel %vm1285, %v717, 4096
          %v1318 = vsel %vm1286, %v729, 4096
          %v1319 = vsel %vm1287, %v717, 4096
          %v1320 = vsel %vm1288, %v730, 4096
          %v1321 = vsel %vm1289, %v717, 4096
          %v1322 = vsel %vm1290, %v731, 4096
          %v1323 = vsel %vm1291, %v717, 4096
          %v1324 = vsel %vm1292, %v732, 4096
          %v1325 = vsel %vm1293, %v717, 4096
          %vm1326 = vcmp.lt.s32.totalorder %v1294, %v1295
          %v1327 = vsel %vm1326, %v1294, %v1295
          %v1328 = vand.u32 %v1327, 65535
          %v1329 = vshra.s32 %v1327, 16
          %v1330 = vcvt.s32.f32 %v1328
          %v1331 = vcvt.s32.f32 %v1329
          %1332 = vmin.xlane.f32.xlu0 %v1331
          %v1333 = vpop.xlane.xlu0 %1332
          %vm1334 = vcmp.eq.f32.partialorder %v1331, %v1333
          %v1335 = vsel %vm1334, %v1330, inf
          %1336 = vmin.xlane.f32.xlu0 %v1335
          %v1337 = vpop.xlane.xlu0 %1336
          %v1338 = vcvt.f32.s32 %v1337
          %v1339 = vcvt.f32.s32 %v1333
          %v1340 = vshll.u32 %v1339, 16
          %v1341 = vadd.s32 %v1340, %v1338
          %vm1342 = vcmp.lt.s32.totalorder %v1296, %v1297
          %v1343 = vsel %vm1342, %v1296, %v1297
          %v1344 = vand.u32 %v1343, 65535
          %v1345 = vshra.s32 %v1343, 16
          %v1346 = vcvt.s32.f32 %v1344
          %v1347 = vcvt.s32.f32 %v1345
          %1348 = vmin.xlane.f32.xlu0 %v1347
          %v1349 = vpop.xlane.xlu0 %1348
          %vm1350 = vcmp.eq.f32.partialorder %v1347, %v1349
          %v1351 = vsel %vm1350, %v1346, inf
          %1352 = vmin.xlane.f32.xlu0 %v1351
          %v1353 = vpop.xlane.xlu0 %1352
          %v1354 = vcvt.f32.s32 %v1353
          %v1355 = vcvt.f32.s32 %v1349
          %v1356 = vshll.u32 %v1355, 16
          %v1357 = vadd.s32 %v1356, %v1354
          %vm1358 = vcmp.lt.s32.totalorder %v1298, %v1299
          %v1359 = vsel %vm1358, %v1298, %v1299
          %v1360 = vand.u32 %v1359, 65535
          %v1361 = vshra.s32 %v1359, 16
          %v1362 = vcvt.s32.f32 %v1360
          %v1363 = vcvt.s32.f32 %v1361
          %1364 = vmin.xlane.f32.xlu0 %v1363
          %v1365 = vpop.xlane.xlu0 %1364
          %vm1366 = vcmp.eq.f32.partialorder %v1363, %v1365
          %v1367 = vsel %vm1366, %v1362, inf
          %1368 = vmin.xlane.f32.xlu0 %v1367
          %v1369 = vpop.xlane.xlu0 %1368
          %v1370 = vcvt.f32.s32 %v1369
          %v1371 = vcvt.f32.s32 %v1365
          %v1372 = vshll.u32 %v1371, 16
          %v1373 = vadd.s32 %v1372, %v1370
          %vm1374 = vcmp.lt.s32.totalorder %v1300, %v1301
          %v1375 = vsel %vm1374, %v1300, %v1301
          %v1376 = vand.u32 %v1375, 65535
          %v1377 = vshra.s32 %v1375, 16
          %v1378 = vcvt.s32.f32 %v1376
          %v1379 = vcvt.s32.f32 %v1377
          %1380 = vmin.xlane.f32.xlu0 %v1379
          %v1381 = vpop.xlane.xlu0 %1380
          %vm1382 = vcmp.eq.f32.partialorder %v1379, %v1381
          %v1383 = vsel %vm1382, %v1378, inf
          %1384 = vmin.xlane.f32.xlu0 %v1383
          %v1385 = vpop.xlane.xlu0 %1384
          %v1386 = vcvt.f32.s32 %v1385
          %v1387 = vcvt.f32.s32 %v1381
          %v1388 = vshll.u32 %v1387, 16
          %v1389 = vadd.s32 %v1388, %v1386
          %vm1390 = vcmp.lt.s32.totalorder %v1302, %v1303
          %v1391 = vsel %vm1390, %v1302, %v1303
          %v1392 = vand.u32 %v1391, 65535
          %v1393 = vshra.s32 %v1391, 16
          %v1394 = vcvt.s32.f32 %v1392
          %v1395 = vcvt.s32.f32 %v1393
          %1396 = vmin.xlane.f32.xlu0 %v1395
          %v1397 = vpop.xlane.xlu0 %1396
          %vm1398 = vcmp.eq.f32.partialorder %v1395, %v1397
          %v1399 = vsel %vm1398, %v1394, inf
          %1400 = vmin.xlane.f32.xlu0 %v1399
          %v1401 = vpop.xlane.xlu0 %1400
          %v1402 = vcvt.f32.s32 %v1401
          %v1403 = vcvt.f32.s32 %v1397
          %v1404 = vshll.u32 %v1403, 16
          %v1405 = vadd.s32 %v1404, %v1402
          %vm1406 = vcmp.lt.s32.totalorder %v1304, %v1305
          %v1407 = vsel %vm1406, %v1304, %v1305
          %v1408 = vand.u32 %v1407, 65535
          %v1409 = vshra.s32 %v1407, 16
          %v1410 = vcvt.s32.f32 %v1408
          %v1411 = vcvt.s32.f32 %v1409
          %1412 = vmin.xlane.f32.xlu0 %v1411
          %v1413 = vpop.xlane.xlu0 %1412
          %vm1414 = vcmp.eq.f32.partialorder %v1411, %v1413
          %v1415 = vsel %vm1414, %v1410, inf
          %1416 = vmin.xlane.f32.xlu0 %v1415
          %v1417 = vpop.xlane.xlu0 %1416
          %v1418 = vcvt.f32.s32 %v1417
          %v1419 = vcvt.f32.s32 %v1413
          %v1420 = vshll.u32 %v1419, 16
          %v1421 = vadd.s32 %v1420, %v1418
          %vm1422 = vcmp.lt.s32.totalorder %v1306, %v1307
          %v1423 = vsel %vm1422, %v1306, %v1307
          %v1424 = vand.u32 %v1423, 65535
          %v1425 = vshra.s32 %v1423, 16
          %v1426 = vcvt.s32.f32 %v1424
          %v1427 = vcvt.s32.f32 %v1425
          %1428 = vmin.xlane.f32.xlu0 %v1427
          %v1429 = vpop.xlane.xlu0 %1428
          %vm1430 = vcmp.eq.f32.partialorder %v1427, %v1429
          %v1431 = vsel %vm1430, %v1426, inf
          %1432 = vmin.xlane.f32.xlu0 %v1431
          %v1433 = vpop.xlane.xlu0 %1432
          %v1434 = vcvt.f32.s32 %v1433
          %v1435 = vcvt.f32.s32 %v1429
          %v1436 = vshll.u32 %v1435, 16
          %v1437 = vadd.s32 %v1436, %v1434
          %vm1438 = vcmp.lt.s32.totalorder %v1308, %v1309
          %v1439 = vsel %vm1438, %v1308, %v1309
          %v1440 = vand.u32 %v1439, 65535
          %v1441 = vshra.s32 %v1439, 16
          %v1442 = vcvt.s32.f32 %v1440
          %v1443 = vcvt.s32.f32 %v1441
          %1444 = vmin.xlane.f32.xlu0 %v1443
          %v1445 = vpop.xlane.xlu0 %1444
          %vm1446 = vcmp.eq.f32.partialorder %v1443, %v1445
          %v1447 = vsel %vm1446, %v1442, inf
          %1448 = vmin.xlane.f32.xlu0 %v1447
          %v1449 = vpop.xlane.xlu0 %1448
          %v1450 = vcvt.f32.s32 %v1449
          %v1451 = vcvt.f32.s32 %v1445
          %v1452 = vshll.u32 %v1451, 16
          %v1453 = vadd.s32 %v1452, %v1450
          %vm1454 = vcmp.lt.s32.totalorder %v1310, %v1311
          %v1455 = vsel %vm1454, %v1310, %v1311
          %v1456 = vand.u32 %v1455, 65535
          %v1457 = vshra.s32 %v1455, 16
          %v1458 = vcvt.s32.f32 %v1456
          %v1459 = vcvt.s32.f32 %v1457
          %1460 = vmin.xlane.f32.xlu0 %v1459
          %v1461 = vpop.xlane.xlu0 %1460
          %vm1462 = vcmp.eq.f32.partialorder %v1459, %v1461
          %v1463 = vsel %vm1462, %v1458, inf
          %1464 = vmin.xlane.f32.xlu0 %v1463
          %v1465 = vpop.xlane.xlu0 %1464
          %v1466 = vcvt.f32.s32 %v1465
          %v1467 = vcvt.f32.s32 %v1461
          %v1468 = vshll.u32 %v1467, 16
          %v1469 = vadd.s32 %v1468, %v1466
          %vm1470 = vcmp.lt.s32.totalorder %v1312, %v1313
          %v1471 = vsel %vm1470, %v1312, %v1313
          %v1472 = vand.u32 %v1471, 65535
          %v1473 = vshra.s32 %v1471, 16
          %v1474 = vcvt.s32.f32 %v1472
          %v1475 = vcvt.s32.f32 %v1473
          %1476 = vmin.xlane.f32.xlu0 %v1475
          %v1477 = vpop.xlane.xlu0 %1476
          %vm1478 = vcmp.eq.f32.partialorder %v1475, %v1477
          %v1479 = vsel %vm1478, %v1474, inf
          %1480 = vmin.xlane.f32.xlu0 %v1479
          %v1481 = vpop.xlane.xlu0 %1480
          %v1482 = vcvt.f32.s32 %v1481
          %v1483 = vcvt.f32.s32 %v1477
          %v1484 = vshll.u32 %v1483, 16
          %v1485 = vadd.s32 %v1484, %v1482
          %vm1486 = vcmp.lt.s32.totalorder %v1314, %v1315
          %v1487 = vsel %vm1486, %v1314, %v1315
          %v1488 = vand.u32 %v1487, 65535
          %v1489 = vshra.s32 %v1487, 16
          %v1490 = vcvt.s32.f32 %v1488
          %v1491 = vcvt.s32.f32 %v1489
          %1492 = vmin.xlane.f32.xlu0 %v1491
          %v1493 = vpop.xlane.xlu0 %1492
          %vm1494 = vcmp.eq.f32.partialorder %v1491, %v1493
          %v1495 = vsel %vm1494, %v1490, inf
          %1496 = vmin.xlane.f32.xlu0 %v1495
          %v1497 = vpop.xlane.xlu0 %1496
          %v1498 = vcvt.f32.s32 %v1497
          %v1499 = vcvt.f32.s32 %v1493
          %v1500 = vshll.u32 %v1499, 16
          %v1501 = vadd.s32 %v1500, %v1498
          %vm1502 = vcmp.lt.s32.totalorder %v1316, %v1317
          %v1503 = vsel %vm1502, %v1316, %v1317
          %v1504 = vand.u32 %v1503, 65535
          %v1505 = vshra.s32 %v1503, 16
          %v1506 = vcvt.s32.f32 %v1504
          %v1507 = vcvt.s32.f32 %v1505
          %1508 = vmin.xlane.f32.xlu0 %v1507
          %v1509 = vpop.xlane.xlu0 %1508
          %vm1510 = vcmp.eq.f32.partialorder %v1507, %v1509
          %v1511 = vsel %vm1510, %v1506, inf
          %1512 = vmin.xlane.f32.xlu0 %v1511
          %v1513 = vpop.xlane.xlu0 %1512
          %v1514 = vcvt.f32.s32 %v1513
          %v1515 = vcvt.f32.s32 %v1509
          %v1516 = vshll.u32 %v1515, 16
          %v1517 = vadd.s32 %v1516, %v1514
          %vm1518 = vcmp.lt.s32.totalorder %v1318, %v1319
          %v1519 = vsel %vm1518, %v1318, %v1319
          %v1520 = vand.u32 %v1519, 65535
          %v1521 = vshra.s32 %v1519, 16
          %v1522 = vcvt.s32.f32 %v1520
          %v1523 = vcvt.s32.f32 %v1521
          %1524 = vmin.xlane.f32.xlu0 %v1523
          %v1525 = vpop.xlane.xlu0 %1524
          %vm1526 = vcmp.eq.f32.partialorder %v1523, %v1525
          %v1527 = vsel %vm1526, %v1522, inf
          %1528 = vmin.xlane.f32.xlu0 %v1527
          %v1529 = vpop.xlane.xlu0 %1528
          %v1530 = vcvt.f32.s32 %v1529
          %v1531 = vcvt.f32.s32 %v1525
          %v1532 = vshll.u32 %v1531, 16
          %v1533 = vadd.s32 %v1532, %v1530
          %vm1534 = vcmp.lt.s32.totalorder %v1320, %v1321
          %v1535 = vsel %vm1534, %v1320, %v1321
          %v1536 = vand.u32 %v1535, 65535
          %v1537 = vshra.s32 %v1535, 16
          %v1538 = vcvt.s32.f32 %v1536
          %v1539 = vcvt.s32.f32 %v1537
          %1540 = vmin.xlane.f32.xlu0 %v1539
          %v1541 = vpop.xlane.xlu0 %1540
          %vm1542 = vcmp.eq.f32.partialorder %v1539, %v1541
          %v1543 = vsel %vm1542, %v1538, inf
          %1544 = vmin.xlane.f32.xlu0 %v1543
          %v1545 = vpop.xlane.xlu0 %1544
          %v1546 = vcvt.f32.s32 %v1545
          %v1547 = vcvt.f32.s32 %v1541
          %v1548 = vshll.u32 %v1547, 16
          %v1549 = vadd.s32 %v1548, %v1546
          %vm1550 = vcmp.lt.s32.totalorder %v1322, %v1323
          %v1551 = vsel %vm1550, %v1322, %v1323
          %v1552 = vand.u32 %v1551, 65535
          %v1553 = vshra.s32 %v1551, 16
          %v1554 = vcvt.s32.f32 %v1552
          %v1555 = vcvt.s32.f32 %v1553
          %1556 = vmin.xlane.f32.xlu0 %v1555
          %v1557 = vpop.xlane.xlu0 %1556
          %vm1558 = vcmp.eq.f32.partialorder %v1555, %v1557
          %v1559 = vsel %vm1558, %v1554, inf
          %1560 = vmin.xlane.f32.xlu0 %v1559
          %v1561 = vpop.xlane.xlu0 %1560
          %v1562 = vcvt.f32.s32 %v1561
          %v1563 = vcvt.f32.s32 %v1557
          %v1564 = vshll.u32 %v1563, 16
          %v1565 = vadd.s32 %v1564, %v1562
          %vm1566 = vcmp.lt.s32.totalorder %v1324, %v1325
          %v1567 = vsel %vm1566, %v1324, %v1325
          %v1568 = vand.u32 %v1567, 65535
          %v1569 = vshra.s32 %v1567, 16
          %v1570 = vcvt.s32.f32 %v1568
          %v1571 = vcvt.s32.f32 %v1569
          %1572 = vmin.xlane.f32.xlu0 %v1571
          %v1573 = vpop.xlane.xlu0 %1572
          %vm1574 = vcmp.eq.f32.partialorder %v1571, %v1573
          %v1575 = vsel %vm1574, %v1570, inf
          %1576 = vmin.xlane.f32.xlu0 %v1575
          %v1577 = vpop.xlane.xlu0 %1576
          %v1578 = vcvt.f32.s32 %v1577
          %v1579 = vcvt.f32.s32 %v1573
          %v1580 = vshll.u32 %v1579, 16
          %v1581 = vadd.s32 %v1580, %v1578
          %vm1582 = vcmask 15368
          %1583 = vst.msk [vmem:[#allocation2] sm:$0xff] %vm1582, %v1216
          %1584 = vst.msk [vmem:[#allocation2 + $0x8] sm:$0xff] %vm1582, %v1219
          %1585 = vst.msk [vmem:[#allocation2 + $0x10] sm:$0xff] %vm1582, %v1222
          %1586 = vst.msk [vmem:[#allocation2 + $0x18] sm:$0xff] %vm1582, %v1225
          %1587 = vst.msk [vmem:[#allocation2 + $0x20] sm:$0xff] %vm1582, %v1228
          %1588 = vst.msk [vmem:[#allocation2 + $0x28] sm:$0xff] %vm1582, %v1231
          %1589 = vst.msk [vmem:[#allocation2 + $0x30] sm:$0xff] %vm1582, %v1234
          %1590 = vst.msk [vmem:[#allocation2 + $0x38] sm:$0xff] %vm1582, %v1237
          %1591 = vst.msk [vmem:[#allocation2 + $0x40] sm:$0xff] %vm1582, %v1240
          %1592 = vst.msk [vmem:[#allocation2 + $0x48] sm:$0xff] %vm1582, %v1243
          %1593 = vst.msk [vmem:[#allocation2 + $0x50] sm:$0xff] %vm1582, %v1246
          %1594 = vst.msk [vmem:[#allocation2 + $0x58] sm:$0xff] %vm1582, %v1249
          %1595 = vst.msk [vmem:[#allocation2 + $0x60] sm:$0xff] %vm1582, %v1252
          %1596 = vst.msk [vmem:[#allocation2 + $0x68] sm:$0xff] %vm1582, %v1255
          %1597 = vst.msk [vmem:[#allocation2 + $0x70] sm:$0xff] %vm1582, %v1258
          %1598 = vst.msk [vmem:[#allocation2 + $0x78] sm:$0xff] %vm1582, %v1261
          %v1599 = vand.u32 %v1341, 15
          %v1600 = vand.u32 %v1357, 15
          %v1601 = vand.u32 %v1373, 15
          %v1602 = vand.u32 %v1389, 15
          %v1603 = vand.u32 %v1405, 15
          %v1604 = vand.u32 %v1421, 15
          %v1605 = vand.u32 %v1437, 15
          %v1606 = vand.u32 %v1453, 15
          %v1607 = vand.u32 %v1469, 15
          %v1608 = vand.u32 %v1485, 15
          %v1609 = vand.u32 %v1501, 15
          %v1610 = vand.u32 %v1517, 15
          %v1611 = vand.u32 %v1533, 15
          %v1612 = vand.u32 %v1549, 15
          %v1613 = vand.u32 %v1565, 15
          %v1614 = vand.u32 %v1581, 15
          %1615 = vst.msk [vmem:[#allocation3] sm:$0xff] %vm1582, %v1599
          %1616 = vst.msk [vmem:[#allocation3 + $0x8] sm:$0xff] %vm1582, %v1600
          %1617 = vst.msk [vmem:[#allocation3 + $0x10] sm:$0xff] %vm1582, %v1601
          %1618 = vst.msk [vmem:[#allocation3 + $0x18] sm:$0xff] %vm1582, %v1602
          %1619 = vst.msk [vmem:[#allocation3 + $0x20] sm:$0xff] %vm1582, %v1603
          %1620 = vst.msk [vmem:[#allocation3 + $0x28] sm:$0xff] %vm1582, %v1604
          %1621 = vst.msk [vmem:[#allocation3 + $0x30] sm:$0xff] %vm1582, %v1605
          %1622 = vst.msk [vmem:[#allocation3 + $0x38] sm:$0xff] %vm1582, %v1606
          %1623 = vst.msk [vmem:[#allocation3 + $0x40] sm:$0xff] %vm1582, %v1607
          %1624 = vst.msk [vmem:[#allocation3 + $0x48] sm:$0xff] %vm1582, %v1608
          %1625 = vst.msk [vmem:[#allocation3 + $0x50] sm:$0xff] %vm1582, %v1609
          %1626 = vst.msk [vmem:[#allocation3 + $0x58] sm:$0xff] %vm1582, %v1610
          %1627 = vst.msk [vmem:[#allocation3 + $0x60] sm:$0xff] %vm1582, %v1611
          %1628 = vst.msk [vmem:[#allocation3 + $0x68] sm:$0xff] %vm1582, %v1612
          %1629 = vst.msk [vmem:[#allocation3 + $0x70] sm:$0xff] %vm1582, %v1613
          %1630 = vst.msk [vmem:[#allocation3 + $0x78] sm:$0xff] %vm1582, %v1614
          %vm1631 = vcmp.eq.s32.totalorder %v716, %v1341
          %vm1632 = vcmp.eq.s32.totalorder %v717, %v1341
          %vm1633 = vcmp.eq.s32.totalorder %v718, %v1357
          %vm1634 = vcmp.eq.s32.totalorder %v717, %v1357
          %vm1635 = vcmp.eq.s32.totalorder %v719, %v1373
          %vm1636 = vcmp.eq.s32.totalorder %v717, %v1373
          %vm1637 = vcmp.eq.s32.totalorder %v720, %v1389
          %vm1638 = vcmp.eq.s32.totalorder %v717, %v1389
          %vm1639 = vcmp.eq.s32.totalorder %v721, %v1405
          %vm1640 = vcmp.eq.s32.totalorder %v717, %v1405
          %vm1641 = vcmp.eq.s32.totalorder %v722, %v1421
          %vm1642 = vcmp.eq.s32.totalorder %v717, %v1421
          %vm1643 = vcmp.eq.s32.totalorder %v723, %v1437
          %vm1644 = vcmp.eq.s32.totalorder %v717, %v1437
          %vm1645 = vcmp.eq.s32.totalorder %v724, %v1453
          %vm1646 = vcmp.eq.s32.totalorder %v717, %v1453
          %vm1647 = vcmp.eq.s32.totalorder %v725, %v1469
          %vm1648 = vcmp.eq.s32.totalorder %v717, %v1469
          %vm1649 = vcmp.eq.s32.totalorder %v726, %v1485
          %vm1650 = vcmp.eq.s32.totalorder %v717, %v1485
          %vm1651 = vcmp.eq.s32.totalorder %v727, %v1501
          %vm1652 = vcmp.eq.s32.totalorder %v717, %v1501
          %vm1653 = vcmp.eq.s32.totalorder %v728, %v1517
          %vm1654 = vcmp.eq.s32.totalorder %v717, %v1517
          %vm1655 = vcmp.eq.s32.totalorder %v729, %v1533
          %vm1656 = vcmp.eq.s32.totalorder %v717, %v1533
          %vm1657 = vcmp.eq.s32.totalorder %v730, %v1549
          %vm1658 = vcmp.eq.s32.totalorder %v717, %v1549
          %vm1659 = vcmp.eq.s32.totalorder %v731, %v1565
          %vm1660 = vcmp.eq.s32.totalorder %v717, %v1565
          %vm1661 = vcmp.eq.s32.totalorder %v732, %v1581
          %vm1662 = vcmp.eq.s32.totalorder %v717, %v1581
          %v1663 = vsel %vm1631, -inf, %v1182
          %v1664 = vsel %vm1632, -inf, %v1183
          %v1665 = vsel %vm1633, -inf, %v1184
          %v1666 = vsel %vm1634, -inf, %v1185
          %v1667 = vsel %vm1635, -inf, %v1186
          %v1668 = vsel %vm1636, -inf, %v1187
          %v1669 = vsel %vm1637, -inf, %v1188
          %v1670 = vsel %vm1638, -inf, %v1189
          %v1671 = vsel %vm1639, -inf, %v1190
          %v1672 = vsel %vm1640, -inf, %v1191
          %v1673 = vsel %vm1641, -inf, %v1192
          %v1674 = vsel %vm1642, -inf, %v1193
          %v1675 = vsel %vm1643, -inf, %v1194
          %v1676 = vsel %vm1644, -inf, %v1195
          %v1677 = vsel %vm1645, -inf, %v1196
          %v1678 = vsel %vm1646, -inf, %v1197
          %v1679 = vsel %vm1647, -inf, %v1198
          %v1680 = vsel %vm1648, -inf, %v1199
          %v1681 = vsel %vm1649, -inf, %v1200
          %v1682 = vsel %vm1650, -inf, %v1201
          %v1683 = vsel %vm1651, -inf, %v1202
          %v1684 = vsel %vm1652, -inf, %v1203
          %v1685 = vsel %vm1653, -inf, %v1204
          %v1686 = vsel %vm1654, -inf, %v1205
          %v1687 = vsel %vm1655, -inf, %v1206
          %v1688 = vsel %vm1656, -inf, %v1207
          %v1689 = vsel %vm1657, -inf, %v1208
          %v1690 = vsel %vm1658, -inf, %v1209
          %v1691 = vsel %vm1659, -inf, %v1210
          %v1692 = vsel %vm1660, -inf, %v1211
          %v1693 = vsel %vm1661, -inf, %v1212
          %v1694 = vsel %vm1662, -inf, %v1213
          %v1695 = vmax.f32 %v1663, %v1664
          %1696 = vmax.xlane.f32.xlu0 %v1695
          %v1697 = vpop.xlane.xlu0 %1696
          %v1698 = vmax.f32 %v1665, %v1666
          %1699 = vmax.xlane.f32.xlu0 %v1698
          %v1700 = vpop.xlane.xlu0 %1699
          %v1701 = vmax.f32 %v1667, %v1668
          %1702 = vmax.xlane.f32.xlu0 %v1701
          %v1703 = vpop.xlane.xlu0 %1702
          %v1704 = vmax.f32 %v1669, %v1670
          %1705 = vmax.xlane.f32.xlu0 %v1704
          %v1706 = vpop.xlane.xlu0 %1705
          %v1707 = vmax.f32 %v1671, %v1672
          %1708 = vmax.xlane.f32.xlu0 %v1707
          %v1709 = vpop.xlane.xlu0 %1708
          %v1710 = vmax.f32 %v1673, %v1674
          %1711 = vmax.xlane.f32.xlu0 %v1710
          %v1712 = vpop.xlane.xlu0 %1711
          %v1713 = vmax.f32 %v1675, %v1676
          %1714 = vmax.xlane.f32.xlu0 %v1713
          %v1715 = vpop.xlane.xlu0 %1714
          %v1716 = vmax.f32 %v1677, %v1678
          %1717 = vmax.xlane.f32.xlu0 %v1716
          %v1718 = vpop.xlane.xlu0 %1717
          %v1719 = vmax.f32 %v1679, %v1680
          %1720 = vmax.xlane.f32.xlu0 %v1719
          %v1721 = vpop.xlane.xlu0 %1720
          %v1722 = vmax.f32 %v1681, %v1682
          %1723 = vmax.xlane.f32.xlu0 %v1722
          %v1724 = vpop.xlane.xlu0 %1723
          %v1725 = vmax.f32 %v1683, %v1684
          %1726 = vmax.xlane.f32.xlu0 %v1725
          %v1727 = vpop.xlane.xlu0 %1726
          %v1728 = vmax.f32 %v1685, %v1686
          %1729 = vmax.xlane.f32.xlu0 %v1728
          %v1730 = vpop.xlane.xlu0 %1729
          %v1731 = vmax.f32 %v1687, %v1688
          %1732 = vmax.xlane.f32.xlu0 %v1731
          %v1733 = vpop.xlane.xlu0 %1732
          %v1734 = vmax.f32 %v1689, %v1690
          %1735 = vmax.xlane.f32.xlu0 %v1734
          %v1736 = vpop.xlane.xlu0 %1735
          %v1737 = vmax.f32 %v1691, %v1692
          %1738 = vmax.xlane.f32.xlu0 %v1737
          %v1739 = vpop.xlane.xlu0 %1738
          %v1740 = vmax.f32 %v1693, %v1694
          %1741 = vmax.xlane.f32.xlu0 %v1740
          %v1742 = vpop.xlane.xlu0 %1741
          %vm1743 = vcmp.eq.f32.partialorder %v1663, %v1697
          %vm1744 = vcmp.eq.f32.partialorder %v1664, %v1697
          %vm1745 = vcmp.eq.f32.partialorder %v1665, %v1700
          %vm1746 = vcmp.eq.f32.partialorder %v1666, %v1700
          %vm1747 = vcmp.eq.f32.partialorder %v1667, %v1703
          %vm1748 = vcmp.eq.f32.partialorder %v1668, %v1703
          %vm1749 = vcmp.eq.f32.partialorder %v1669, %v1706
          %vm1750 = vcmp.eq.f32.partialorder %v1670, %v1706
          %vm1751 = vcmp.eq.f32.partialorder %v1671, %v1709
          %vm1752 = vcmp.eq.f32.partialorder %v1672, %v1709
          %vm1753 = vcmp.eq.f32.partialorder %v1673, %v1712
          %vm1754 = vcmp.eq.f32.partialorder %v1674, %v1712
          %vm1755 = vcmp.eq.f32.partialorder %v1675, %v1715
          %vm1756 = vcmp.eq.f32.partialorder %v1676, %v1715
          %vm1757 = vcmp.eq.f32.partialorder %v1677, %v1718
          %vm1758 = vcmp.eq.f32.partialorder %v1678, %v1718
          %vm1759 = vcmp.eq.f32.partialorder %v1679, %v1721
          %vm1760 = vcmp.eq.f32.partialorder %v1680, %v1721
          %vm1761 = vcmp.eq.f32.partialorder %v1681, %v1724
          %vm1762 = vcmp.eq.f32.partialorder %v1682, %v1724
          %vm1763 = vcmp.eq.f32.partialorder %v1683, %v1727
          %vm1764 = vcmp.eq.f32.partialorder %v1684, %v1727
          %vm1765 = vcmp.eq.f32.partialorder %v1685, %v1730
          %vm1766 = vcmp.eq.f32.partialorder %v1686, %v1730
          %vm1767 = vcmp.eq.f32.partialorder %v1687, %v1733
          %vm1768 = vcmp.eq.f32.partialorder %v1688, %v1733
          %vm1769 = vcmp.eq.f32.partialorder %v1689, %v1736
          %vm1770 = vcmp.eq.f32.partialorder %v1690, %v1736
          %vm1771 = vcmp.eq.f32.partialorder %v1691, %v1739
          %vm1772 = vcmp.eq.f32.partialorder %v1692, %v1739
          %vm1773 = vcmp.eq.f32.partialorder %v1693, %v1742
          %vm1774 = vcmp.eq.f32.partialorder %v1694, %v1742
          %v1775 = vsel %vm1743, %v716, 4096
          %v1776 = vsel %vm1744, %v717, 4096
          %v1777 = vsel %vm1745, %v718, 4096
          %v1778 = vsel %vm1746, %v717, 4096
          %v1779 = vsel %vm1747, %v719, 4096
          %v1780 = vsel %vm1748, %v717, 4096
          %v1781 = vsel %vm1749, %v720, 4096
          %v1782 = vsel %vm1750, %v717, 4096
          %v1783 = vsel %vm1751, %v721, 4096
          %v1784 = vsel %vm1752, %v717, 4096
          %v1785 = vsel %vm1753, %v722, 4096
          %v1786 = vsel %vm1754, %v717, 4096
          %v1787 = vsel %vm1755, %v723, 4096
          %v1788 = vsel %vm1756, %v717, 4096
          %v1789 = vsel %vm1757, %v724, 4096
          %v1790 = vsel %vm1758, %v717, 4096
          %v1791 = vsel %vm1759, %v725, 4096
          %v1792 = vsel %vm1760, %v717, 4096
          %v1793 = vsel %vm1761, %v726, 4096
          %v1794 = vsel %vm1762, %v717, 4096
          %v1795 = vsel %vm1763, %v727, 4096
          %v1796 = vsel %vm1764, %v717, 4096
          %v1797 = vsel %vm1765, %v728, 4096
          %v1798 = vsel %vm1766, %v717, 4096
          %v1799 = vsel %vm1767, %v729, 4096
          %v1800 = vsel %vm1768, %v717, 4096
          %v1801 = vsel %vm1769, %v730, 4096
          %v1802 = vsel %vm1770, %v717, 4096
          %v1803 = vsel %vm1771, %v731, 4096
          %v1804 = vsel %vm1772, %v717, 4096
          %v1805 = vsel %vm1773, %v732, 4096
          %v1806 = vsel %vm1774, %v717, 4096
          %vm1807 = vcmp.lt.s32.totalorder %v1775, %v1776
          %v1808 = vsel %vm1807, %v1775, %v1776
          %v1809 = vand.u32 %v1808, 65535
          %v1810 = vshra.s32 %v1808, 16
          %v1811 = vcvt.s32.f32 %v1809
          %v1812 = vcvt.s32.f32 %v1810
          %1813 = vmin.xlane.f32.xlu0 %v1812
          %v1814 = vpop.xlane.xlu0 %1813
          %vm1815 = vcmp.eq.f32.partialorder %v1812, %v1814
          %v1816 = vsel %vm1815, %v1811, inf
          %1817 = vmin.xlane.f32.xlu0 %v1816
          %v1818 = vpop.xlane.xlu0 %1817
          %v1819 = vcvt.f32.s32 %v1818
          %v1820 = vcvt.f32.s32 %v1814
          %v1821 = vshll.u32 %v1820, 16
          %v1822 = vadd.s32 %v1821, %v1819
          %vm1823 = vcmp.lt.s32.totalorder %v1777, %v1778
          %v1824 = vsel %vm1823, %v1777, %v1778
          %v1825 = vand.u32 %v1824, 65535
          %v1826 = vshra.s32 %v1824, 16
          %v1827 = vcvt.s32.f32 %v1825
          %v1828 = vcvt.s32.f32 %v1826
          %1829 = vmin.xlane.f32.xlu0 %v1828
          %v1830 = vpop.xlane.xlu0 %1829
          %vm1831 = vcmp.eq.f32.partialorder %v1828, %v1830
          %v1832 = vsel %vm1831, %v1827, inf
          %1833 = vmin.xlane.f32.xlu0 %v1832
          %v1834 = vpop.xlane.xlu0 %1833
          %v1835 = vcvt.f32.s32 %v1834
          %v1836 = vcvt.f32.s32 %v1830
          %v1837 = vshll.u32 %v1836, 16
          %v1838 = vadd.s32 %v1837, %v1835
          %vm1839 = vcmp.lt.s32.totalorder %v1779, %v1780
          %v1840 = vsel %vm1839, %v1779, %v1780
          %v1841 = vand.u32 %v1840, 65535
          %v1842 = vshra.s32 %v1840, 16
          %v1843 = vcvt.s32.f32 %v1841
          %v1844 = vcvt.s32.f32 %v1842
          %1845 = vmin.xlane.f32.xlu0 %v1844
          %v1846 = vpop.xlane.xlu0 %1845
          %vm1847 = vcmp.eq.f32.partialorder %v1844, %v1846
          %v1848 = vsel %vm1847, %v1843, inf
          %1849 = vmin.xlane.f32.xlu0 %v1848
          %v1850 = vpop.xlane.xlu0 %1849
          %v1851 = vcvt.f32.s32 %v1850
          %v1852 = vcvt.f32.s32 %v1846
          %v1853 = vshll.u32 %v1852, 16
          %v1854 = vadd.s32 %v1853, %v1851
          %vm1855 = vcmp.lt.s32.totalorder %v1781, %v1782
          %v1856 = vsel %vm1855, %v1781, %v1782
          %v1857 = vand.u32 %v1856, 65535
          %v1858 = vshra.s32 %v1856, 16
          %v1859 = vcvt.s32.f32 %v1857
          %v1860 = vcvt.s32.f32 %v1858
          %1861 = vmin.xlane.f32.xlu0 %v1860
          %v1862 = vpop.xlane.xlu0 %1861
          %vm1863 = vcmp.eq.f32.partialorder %v1860, %v1862
          %v1864 = vsel %vm1863, %v1859, inf
          %1865 = vmin.xlane.f32.xlu0 %v1864
          %v1866 = vpop.xlane.xlu0 %1865
          %v1867 = vcvt.f32.s32 %v1866
          %v1868 = vcvt.f32.s32 %v1862
          %v1869 = vshll.u32 %v1868, 16
          %v1870 = vadd.s32 %v1869, %v1867
          %vm1871 = vcmp.lt.s32.totalorder %v1783, %v1784
          %v1872 = vsel %vm1871, %v1783, %v1784
          %v1873 = vand.u32 %v1872, 65535
          %v1874 = vshra.s32 %v1872, 16
          %v1875 = vcvt.s32.f32 %v1873
          %v1876 = vcvt.s32.f32 %v1874
          %1877 = vmin.xlane.f32.xlu0 %v1876
          %v1878 = vpop.xlane.xlu0 %1877
          %vm1879 = vcmp.eq.f32.partialorder %v1876, %v1878
          %v1880 = vsel %vm1879, %v1875, inf
          %1881 = vmin.xlane.f32.xlu0 %v1880
          %v1882 = vpop.xlane.xlu0 %1881
          %v1883 = vcvt.f32.s32 %v1882
          %v1884 = vcvt.f32.s32 %v1878
          %v1885 = vshll.u32 %v1884, 16
          %v1886 = vadd.s32 %v1885, %v1883
          %vm1887 = vcmp.lt.s32.totalorder %v1785, %v1786
          %v1888 = vsel %vm1887, %v1785, %v1786
          %v1889 = vand.u32 %v1888, 65535
          %v1890 = vshra.s32 %v1888, 16
          %v1891 = vcvt.s32.f32 %v1889
          %v1892 = vcvt.s32.f32 %v1890
          %1893 = vmin.xlane.f32.xlu0 %v1892
          %v1894 = vpop.xlane.xlu0 %1893
          %vm1895 = vcmp.eq.f32.partialorder %v1892, %v1894
          %v1896 = vsel %vm1895, %v1891, inf
          %1897 = vmin.xlane.f32.xlu0 %v1896
          %v1898 = vpop.xlane.xlu0 %1897
          %v1899 = vcvt.f32.s32 %v1898
          %v1900 = vcvt.f32.s32 %v1894
          %v1901 = vshll.u32 %v1900, 16
          %v1902 = vadd.s32 %v1901, %v1899
          %vm1903 = vcmp.lt.s32.totalorder %v1787, %v1788
          %v1904 = vsel %vm1903, %v1787, %v1788
          %v1905 = vand.u32 %v1904, 65535
          %v1906 = vshra.s32 %v1904, 16
          %v1907 = vcvt.s32.f32 %v1905
          %v1908 = vcvt.s32.f32 %v1906
          %1909 = vmin.xlane.f32.xlu0 %v1908
          %v1910 = vpop.xlane.xlu0 %1909
          %vm1911 = vcmp.eq.f32.partialorder %v1908, %v1910
          %v1912 = vsel %vm1911, %v1907, inf
          %1913 = vmin.xlane.f32.xlu0 %v1912
          %v1914 = vpop.xlane.xlu0 %1913
          %v1915 = vcvt.f32.s32 %v1914
          %v1916 = vcvt.f32.s32 %v1910
          %v1917 = vshll.u32 %v1916, 16
          %v1918 = vadd.s32 %v1917, %v1915
          %vm1919 = vcmp.lt.s32.totalorder %v1789, %v1790
          %v1920 = vsel %vm1919, %v1789, %v1790
          %v1921 = vand.u32 %v1920, 65535
          %v1922 = vshra.s32 %v1920, 16
          %v1923 = vcvt.s32.f32 %v1921
          %v1924 = vcvt.s32.f32 %v1922
          %1925 = vmin.xlane.f32.xlu0 %v1924
          %v1926 = vpop.xlane.xlu0 %1925
          %vm1927 = vcmp.eq.f32.partialorder %v1924, %v1926
          %v1928 = vsel %vm1927, %v1923, inf
          %1929 = vmin.xlane.f32.xlu0 %v1928
          %v1930 = vpop.xlane.xlu0 %1929
          %v1931 = vcvt.f32.s32 %v1930
          %v1932 = vcvt.f32.s32 %v1926
          %v1933 = vshll.u32 %v1932, 16
          %v1934 = vadd.s32 %v1933, %v1931
          %vm1935 = vcmp.lt.s32.totalorder %v1791, %v1792
          %v1936 = vsel %vm1935, %v1791, %v1792
          %v1937 = vand.u32 %v1936, 65535
          %v1938 = vshra.s32 %v1936, 16
          %v1939 = vcvt.s32.f32 %v1937
          %v1940 = vcvt.s32.f32 %v1938
          %1941 = vmin.xlane.f32.xlu0 %v1940
          %v1942 = vpop.xlane.xlu0 %1941
          %vm1943 = vcmp.eq.f32.partialorder %v1940, %v1942
          %v1944 = vsel %vm1943, %v1939, inf
          %1945 = vmin.xlane.f32.xlu0 %v1944
          %v1946 = vpop.xlane.xlu0 %1945
          %v1947 = vcvt.f32.s32 %v1946
          %v1948 = vcvt.f32.s32 %v1942
          %v1949 = vshll.u32 %v1948, 16
          %v1950 = vadd.s32 %v1949, %v1947
          %vm1951 = vcmp.lt.s32.totalorder %v1793, %v1794
          %v1952 = vsel %vm1951, %v1793, %v1794
          %v1953 = vand.u32 %v1952, 65535
          %v1954 = vshra.s32 %v1952, 16
          %v1955 = vcvt.s32.f32 %v1953
          %v1956 = vcvt.s32.f32 %v1954
          %1957 = vmin.xlane.f32.xlu0 %v1956
          %v1958 = vpop.xlane.xlu0 %1957
          %vm1959 = vcmp.eq.f32.partialorder %v1956, %v1958
          %v1960 = vsel %vm1959, %v1955, inf
          %1961 = vmin.xlane.f32.xlu0 %v1960
          %v1962 = vpop.xlane.xlu0 %1961
          %v1963 = vcvt.f32.s32 %v1962
          %v1964 = vcvt.f32.s32 %v1958
          %v1965 = vshll.u32 %v1964, 16
          %v1966 = vadd.s32 %v1965, %v1963
          %vm1967 = vcmp.lt.s32.totalorder %v1795, %v1796
          %v1968 = vsel %vm1967, %v1795, %v1796
          %v1969 = vand.u32 %v1968, 65535
          %v1970 = vshra.s32 %v1968, 16
          %v1971 = vcvt.s32.f32 %v1969
          %v1972 = vcvt.s32.f32 %v1970
          %1973 = vmin.xlane.f32.xlu0 %v1972
          %v1974 = vpop.xlane.xlu0 %1973
          %vm1975 = vcmp.eq.f32.partialorder %v1972, %v1974
          %v1976 = vsel %vm1975, %v1971, inf
          %1977 = vmin.xlane.f32.xlu0 %v1976
          %v1978 = vpop.xlane.xlu0 %1977
          %v1979 = vcvt.f32.s32 %v1978
          %v1980 = vcvt.f32.s32 %v1974
          %v1981 = vshll.u32 %v1980, 16
          %v1982 = vadd.s32 %v1981, %v1979
          %vm1983 = vcmp.lt.s32.totalorder %v1797, %v1798
          %v1984 = vsel %vm1983, %v1797, %v1798
          %v1985 = vand.u32 %v1984, 65535
          %v1986 = vshra.s32 %v1984, 16
          %v1987 = vcvt.s32.f32 %v1985
          %v1988 = vcvt.s32.f32 %v1986
          %1989 = vmin.xlane.f32.xlu0 %v1988
          %v1990 = vpop.xlane.xlu0 %1989
          %vm1991 = vcmp.eq.f32.partialorder %v1988, %v1990
          %v1992 = vsel %vm1991, %v1987, inf
          %1993 = vmin.xlane.f32.xlu0 %v1992
          %v1994 = vpop.xlane.xlu0 %1993
          %v1995 = vcvt.f32.s32 %v1994
          %v1996 = vcvt.f32.s32 %v1990
          %v1997 = vshll.u32 %v1996, 16
          %v1998 = vadd.s32 %v1997, %v1995
          %vm1999 = vcmp.lt.s32.totalorder %v1799, %v1800
          %v2000 = vsel %vm1999, %v1799, %v1800
          %v2001 = vand.u32 %v2000, 65535
          %v2002 = vshra.s32 %v2000, 16
          %v2003 = vcvt.s32.f32 %v2001
          %v2004 = vcvt.s32.f32 %v2002
          %2005 = vmin.xlane.f32.xlu0 %v2004
          %v2006 = vpop.xlane.xlu0 %2005
          %vm2007 = vcmp.eq.f32.partialorder %v2004, %v2006
          %v2008 = vsel %vm2007, %v2003, inf
          %2009 = vmin.xlane.f32.xlu0 %v2008
          %v2010 = vpop.xlane.xlu0 %2009
          %v2011 = vcvt.f32.s32 %v2010
          %v2012 = vcvt.f32.s32 %v2006
          %v2013 = vshll.u32 %v2012, 16
          %v2014 = vadd.s32 %v2013, %v2011
          %vm2015 = vcmp.lt.s32.totalorder %v1801, %v1802
          %v2016 = vsel %vm2015, %v1801, %v1802
          %v2017 = vand.u32 %v2016, 65535
          %v2018 = vshra.s32 %v2016, 16
          %v2019 = vcvt.s32.f32 %v2017
          %v2020 = vcvt.s32.f32 %v2018
          %2021 = vmin.xlane.f32.xlu0 %v2020
          %v2022 = vpop.xlane.xlu0 %2021
          %vm2023 = vcmp.eq.f32.partialorder %v2020, %v2022
          %v2024 = vsel %vm2023, %v2019, inf
          %2025 = vmin.xlane.f32.xlu0 %v2024
          %v2026 = vpop.xlane.xlu0 %2025
          %v2027 = vcvt.f32.s32 %v2026
          %v2028 = vcvt.f32.s32 %v2022
          %v2029 = vshll.u32 %v2028, 16
          %v2030 = vadd.s32 %v2029, %v2027
          %vm2031 = vcmp.lt.s32.totalorder %v1803, %v1804
          %v2032 = vsel %vm2031, %v1803, %v1804
          %v2033 = vand.u32 %v2032, 65535
          %v2034 = vshra.s32 %v2032, 16
          %v2035 = vcvt.s32.f32 %v2033
          %v2036 = vcvt.s32.f32 %v2034
          %2037 = vmin.xlane.f32.xlu0 %v2036
          %v2038 = vpop.xlane.xlu0 %2037
          %vm2039 = vcmp.eq.f32.partialorder %v2036, %v2038
          %v2040 = vsel %vm2039, %v2035, inf
          %2041 = vmin.xlane.f32.xlu0 %v2040
          %v2042 = vpop.xlane.xlu0 %2041
          %v2043 = vcvt.f32.s32 %v2042
          %v2044 = vcvt.f32.s32 %v2038
          %v2045 = vshll.u32 %v2044, 16
          %v2046 = vadd.s32 %v2045, %v2043
          %vm2047 = vcmp.lt.s32.totalorder %v1805, %v1806
          %v2048 = vsel %vm2047, %v1805, %v1806
          %v2049 = vand.u32 %v2048, 65535
          %v2050 = vshra.s32 %v2048, 16
          %v2051 = vcvt.s32.f32 %v2049
          %v2052 = vcvt.s32.f32 %v2050
          %2053 = vmin.xlane.f32.xlu0 %v2052
          %v2054 = vpop.xlane.xlu0 %2053
          %vm2055 = vcmp.eq.f32.partialorder %v2052, %v2054
          %v2056 = vsel %vm2055, %v2051, inf
          %2057 = vmin.xlane.f32.xlu0 %v2056
          %v2058 = vpop.xlane.xlu0 %2057
          %v2059 = vcvt.f32.s32 %v2058
          %v2060 = vcvt.f32.s32 %v2054
          %v2061 = vshll.u32 %v2060, 16
          %v2062 = vadd.s32 %v2061, %v2059
          %vm2063 = vcmask 23568
          %2064 = vst.msk [vmem:[#allocation2] sm:$0xff] %vm2063, %v1697
          %2065 = vst.msk [vmem:[#allocation2 + $0x8] sm:$0xff] %vm2063, %v1700
          %2066 = vst.msk [vmem:[#allocation2 + $0x10] sm:$0xff] %vm2063, %v1703
          %2067 = vst.msk [vmem:[#allocation2 + $0x18] sm:$0xff] %vm2063, %v1706
          %2068 = vst.msk [vmem:[#allocation2 + $0x20] sm:$0xff] %vm2063, %v1709
          %2069 = vst.msk [vmem:[#allocation2 + $0x28] sm:$0xff] %vm2063, %v1712
          %2070 = vst.msk [vmem:[#allocation2 + $0x30] sm:$0xff] %vm2063, %v1715
          %2071 = vst.msk [vmem:[#allocation2 + $0x38] sm:$0xff] %vm2063, %v1718
          %2072 = vst.msk [vmem:[#allocation2 + $0x40] sm:$0xff] %vm2063, %v1721
          %2073 = vst.msk [vmem:[#allocation2 + $0x48] sm:$0xff] %vm2063, %v1724
          %2074 = vst.msk [vmem:[#allocation2 + $0x50] sm:$0xff] %vm2063, %v1727
          %2075 = vst.msk [vmem:[#allocation2 + $0x58] sm:$0xff] %vm2063, %v1730
          %2076 = vst.msk [vmem:[#allocation2 + $0x60] sm:$0xff] %vm2063, %v1733
          %2077 = vst.msk [vmem:[#allocation2 + $0x68] sm:$0xff] %vm2063, %v1736
          %2078 = vst.msk [vmem:[#allocation2 + $0x70] sm:$0xff] %vm2063, %v1739
          %2079 = vst.msk [vmem:[#allocation2 + $0x78] sm:$0xff] %vm2063, %v1742
          %v2080 = vand.u32 %v1822, 15
          %v2081 = vand.u32 %v1838, 15
          %v2082 = vand.u32 %v1854, 15
          %v2083 = vand.u32 %v1870, 15
          %v2084 = vand.u32 %v1886, 15
          %v2085 = vand.u32 %v1902, 15
          %v2086 = vand.u32 %v1918, 15
          %v2087 = vand.u32 %v1934, 15
          %v2088 = vand.u32 %v1950, 15
          %v2089 = vand.u32 %v1966, 15
          %v2090 = vand.u32 %v1982, 15
          %v2091 = vand.u32 %v1998, 15
          %v2092 = vand.u32 %v2014, 15
          %v2093 = vand.u32 %v2030, 15
          %v2094 = vand.u32 %v2046, 15
          %v2095 = vand.u32 %v2062, 15
          %2096 = vst.msk [vmem:[#allocation3] sm:$0xff] %vm2063, %v2080
          %2097 = vst.msk [vmem:[#allocation3 + $0x8] sm:$0xff] %vm2063, %v2081
          %2098 = vst.msk [vmem:[#allocation3 + $0x10] sm:$0xff] %vm2063, %v2082
          %2099 = vst.msk [vmem:[#allocation3 + $0x18] sm:$0xff] %vm2063, %v2083
          %2100 = vst.msk [vmem:[#allocation3 + $0x20] sm:$0xff] %vm2063, %v2084
          %2101 = vst.msk [vmem:[#allocation3 + $0x28] sm:$0xff] %vm2063, %v2085
          %2102 = vst.msk [vmem:[#allocation3 + $0x30] sm:$0xff] %vm2063, %v2086
          %2103 = vst.msk [vmem:[#allocation3 + $0x38] sm:$0xff] %vm2063, %v2087
          %2104 = vst.msk [vmem:[#allocation3 + $0x40] sm:$0xff] %vm2063, %v2088
          %2105 = vst.msk [vmem:[#allocation3 + $0x48] sm:$0xff] %vm2063, %v2089
          %2106 = vst.msk [vmem:[#allocation3 + $0x50] sm:$0xff] %vm2063, %v2090
          %2107 = vst.msk [vmem:[#allocation3 + $0x58] sm:$0xff] %vm2063, %v2091
          %2108 = vst.msk [vmem:[#allocation3 + $0x60] sm:$0xff] %vm2063, %v2092
          %2109 = vst.msk [vmem:[#allocation3 + $0x68] sm:$0xff] %vm2063, %v2093
          %2110 = vst.msk [vmem:[#allocation3 + $0x70] sm:$0xff] %vm2063, %v2094
          %2111 = vst.msk [vmem:[#allocation3 + $0x78] sm:$0xff] %vm2063, %v2095
          %vm2112 = vcmp.eq.s32.totalorder %v716, %v1822
          %vm2113 = vcmp.eq.s32.totalorder %v717, %v1822
          %vm2114 = vcmp.eq.s32.totalorder %v718, %v1838
          %vm2115 = vcmp.eq.s32.totalorder %v717, %v1838
          %vm2116 = vcmp.eq.s32.totalorder %v719, %v1854
          %vm2117 = vcmp.eq.s32.totalorder %v717, %v1854
          %vm2118 = vcmp.eq.s32.totalorder %v720, %v1870
          %vm2119 = vcmp.eq.s32.totalorder %v717, %v1870
          %vm2120 = vcmp.eq.s32.totalorder %v721, %v1886
          %vm2121 = vcmp.eq.s32.totalorder %v717, %v1886
          %vm2122 = vcmp.eq.s32.totalorder %v722, %v1902
          %vm2123 = vcmp.eq.s32.totalorder %v717, %v1902
          %vm2124 = vcmp.eq.s32.totalorder %v723, %v1918
          %vm2125 = vcmp.eq.s32.totalorder %v717, %v1918
          %vm2126 = vcmp.eq.s32.totalorder %v724, %v1934
          %vm2127 = vcmp.eq.s32.totalorder %v717, %v1934
          %vm2128 = vcmp.eq.s32.totalorder %v725, %v1950
          %vm2129 = vcmp.eq.s32.totalorder %v717, %v1950
          %vm2130 = vcmp.eq.s32.totalorder %v726, %v1966
          %vm2131 = vcmp.eq.s32.totalorder %v717, %v1966
          %vm2132 = vcmp.eq.s32.totalorder %v727, %v1982
          %vm2133 = vcmp.eq.s32.totalorder %v717, %v1982
          %vm2134 = vcmp.eq.s32.totalorder %v728, %v1998
          %vm2135 = vcmp.eq.s32.totalorder %v717, %v1998
          %vm2136 = vcmp.eq.s32.totalorder %v729, %v2014
          %vm2137 = vcmp.eq.s32.totalorder %v717, %v2014
          %vm2138 = vcmp.eq.s32.totalorder %v730, %v2030
          %vm2139 = vcmp.eq.s32.totalorder %v717, %v2030
          %vm2140 = vcmp.eq.s32.totalorder %v731, %v2046
          %vm2141 = vcmp.eq.s32.totalorder %v717, %v2046
          %vm2142 = vcmp.eq.s32.totalorder %v732, %v2062
          %vm2143 = vcmp.eq.s32.totalorder %v717, %v2062
          %v2144 = vsel %vm2112, -inf, %v1663
          %v2145 = vsel %vm2113, -inf, %v1664
          %v2146 = vsel %vm2114, -inf, %v1665
          %v2147 = vsel %vm2115, -inf, %v1666
          %v2148 = vsel %vm2116, -inf, %v1667
          %v2149 = vsel %vm2117, -inf, %v1668
          %v2150 = vsel %vm2118, -inf, %v1669
          %v2151 = vsel %vm2119, -inf, %v1670
          %v2152 = vsel %vm2120, -inf, %v1671
          %v2153 = vsel %vm2121, -inf, %v1672
          %v2154 = vsel %vm2122, -inf, %v1673
          %v2155 = vsel %vm2123, -inf, %v1674
          %v2156 = vsel %vm2124, -inf, %v1675
          %v2157 = vsel %vm2125, -inf, %v1676
          %v2158 = vsel %vm2126, -inf, %v1677
          %v2159 = vsel %vm2127, -inf, %v1678
          %v2160 = vsel %vm2128, -inf, %v1679
          %v2161 = vsel %vm2129, -inf, %v1680
          %v2162 = vsel %vm2130, -inf, %v1681
          %v2163 = vsel %vm2131, -inf, %v1682
          %v2164 = vsel %vm2132, -inf, %v1683
          %v2165 = vsel %vm2133, -inf, %v1684
          %v2166 = vsel %vm2134, -inf, %v1685
          %v2167 = vsel %vm2135, -inf, %v1686
          %v2168 = vsel %vm2136, -inf, %v1687
          %v2169 = vsel %vm2137, -inf, %v1688
          %v2170 = vsel %vm2138, -inf, %v1689
          %v2171 = vsel %vm2139, -inf, %v1690
          %v2172 = vsel %vm2140, -inf, %v1691
          %v2173 = vsel %vm2141, -inf, %v1692
          %v2174 = vsel %vm2142, -inf, %v1693
          %v2175 = vsel %vm2143, -inf, %v1694
          %v2176 = vmax.f32 %v2144, %v2145
          %2177 = vmax.xlane.f32.xlu0 %v2176
          %v2178 = vpop.xlane.xlu0 %2177
          %v2179 = vmax.f32 %v2146, %v2147
          %2180 = vmax.xlane.f32.xlu0 %v2179
          %v2181 = vpop.xlane.xlu0 %2180
          %v2182 = vmax.f32 %v2148, %v2149
          %2183 = vmax.xlane.f32.xlu0 %v2182
          %v2184 = vpop.xlane.xlu0 %2183
          %v2185 = vmax.f32 %v2150, %v2151
          %2186 = vmax.xlane.f32.xlu0 %v2185
          %v2187 = vpop.xlane.xlu0 %2186
          %v2188 = vmax.f32 %v2152, %v2153
          %2189 = vmax.xlane.f32.xlu0 %v2188
          %v2190 = vpop.xlane.xlu0 %2189
          %v2191 = vmax.f32 %v2154, %v2155
          %2192 = vmax.xlane.f32.xlu0 %v2191
          %v2193 = vpop.xlane.xlu0 %2192
          %v2194 = vmax.f32 %v2156, %v2157
          %2195 = vmax.xlane.f32.xlu0 %v2194
          %v2196 = vpop.xlane.xlu0 %2195
          %v2197 = vmax.f32 %v2158, %v2159
          %2198 = vmax.xlane.f32.xlu0 %v2197
          %v2199 = vpop.xlane.xlu0 %2198
          %v2200 = vmax.f32 %v2160, %v2161
          %2201 = vmax.xlane.f32.xlu0 %v2200
          %v2202 = vpop.xlane.xlu0 %2201
          %v2203 = vmax.f32 %v2162, %v2163
          %2204 = vmax.xlane.f32.xlu0 %v2203
          %v2205 = vpop.xlane.xlu0 %2204
          %v2206 = vmax.f32 %v2164, %v2165
          %2207 = vmax.xlane.f32.xlu0 %v2206
          %v2208 = vpop.xlane.xlu0 %2207
          %v2209 = vmax.f32 %v2166, %v2167
          %2210 = vmax.xlane.f32.xlu0 %v2209
          %v2211 = vpop.xlane.xlu0 %2210
          %v2212 = vmax.f32 %v2168, %v2169
          %2213 = vmax.xlane.f32.xlu0 %v2212
          %v2214 = vpop.xlane.xlu0 %2213
          %v2215 = vmax.f32 %v2170, %v2171
          %2216 = vmax.xlane.f32.xlu0 %v2215
          %v2217 = vpop.xlane.xlu0 %2216
          %v2218 = vmax.f32 %v2172, %v2173
          %2219 = vmax.xlane.f32.xlu0 %v2218
          %v2220 = vpop.xlane.xlu0 %2219
          %v2221 = vmax.f32 %v2174, %v2175
          %2222 = vmax.xlane.f32.xlu0 %v2221
          %v2223 = vpop.xlane.xlu0 %2222
          %vm2224 = vcmp.eq.f32.partialorder %v2144, %v2178
          %vm2225 = vcmp.eq.f32.partialorder %v2145, %v2178
          %vm2226 = vcmp.eq.f32.partialorder %v2146, %v2181
          %vm2227 = vcmp.eq.f32.partialorder %v2147, %v2181
          %vm2228 = vcmp.eq.f32.partialorder %v2148, %v2184
          %vm2229 = vcmp.eq.f32.partialorder %v2149, %v2184
          %vm2230 = vcmp.eq.f32.partialorder %v2150, %v2187
          %vm2231 = vcmp.eq.f32.partialorder %v2151, %v2187
          %vm2232 = vcmp.eq.f32.partialorder %v2152, %v2190
          %vm2233 = vcmp.eq.f32.partialorder %v2153, %v2190
          %vm2234 = vcmp.eq.f32.partialorder %v2154, %v2193
          %vm2235 = vcmp.eq.f32.partialorder %v2155, %v2193
          %vm2236 = vcmp.eq.f32.partialorder %v2156, %v2196
          %vm2237 = vcmp.eq.f32.partialorder %v2157, %v2196
          %vm2238 = vcmp.eq.f32.partialorder %v2158, %v2199
          %vm2239 = vcmp.eq.f32.partialorder %v2159, %v2199
          %vm2240 = vcmp.eq.f32.partialorder %v2160, %v2202
          %vm2241 = vcmp.eq.f32.partialorder %v2161, %v2202
          %vm2242 = vcmp.eq.f32.partialorder %v2162, %v2205
          %vm2243 = vcmp.eq.f32.partialorder %v2163, %v2205
          %vm2244 = vcmp.eq.f32.partialorder %v2164, %v2208
          %vm2245 = vcmp.eq.f32.partialorder %v2165, %v2208
          %vm2246 = vcmp.eq.f32.partialorder %v2166, %v2211
          %vm2247 = vcmp.eq.f32.partialorder %v2167, %v2211
          %vm2248 = vcmp.eq.f32.partialorder %v2168, %v2214
          %vm2249 = vcmp.eq.f32.partialorder %v2169, %v2214
          %vm2250 = vcmp.eq.f32.partialorder %v2170, %v2217
          %vm2251 = vcmp.eq.f32.partialorder %v2171, %v2217
          %vm2252 = vcmp.eq.f32.partialorder %v2172, %v2220
          %vm2253 = vcmp.eq.f32.partialorder %v2173, %v2220
          %vm2254 = vcmp.eq.f32.partialorder %v2174, %v2223
          %vm2255 = vcmp.eq.f32.partialorder %v2175, %v2223
          %v2256 = vsel %vm2224, %v716, 4096
          %v2257 = vsel %vm2225, %v717, 4096
          %v2258 = vsel %vm2226, %v718, 4096
          %v2259 = vsel %vm2227, %v717, 4096
          %v2260 = vsel %vm2228, %v719, 4096
          %v2261 = vsel %vm2229, %v717, 4096
          %v2262 = vsel %vm2230, %v720, 4096
          %v2263 = vsel %vm2231, %v717, 4096
          %v2264 = vsel %vm2232, %v721, 4096
          %v2265 = vsel %vm2233, %v717, 4096
          %v2266 = vsel %vm2234, %v722, 4096
          %v2267 = vsel %vm2235, %v717, 4096
          %v2268 = vsel %vm2236, %v723, 4096
          %v2269 = vsel %vm2237, %v717, 4096
          %v2270 = vsel %vm2238, %v724, 4096
          %v2271 = vsel %vm2239, %v717, 4096
          %v2272 = vsel %vm2240, %v725, 4096
          %v2273 = vsel %vm2241, %v717, 4096
          %v2274 = vsel %vm2242, %v726, 4096
          %v2275 = vsel %vm2243, %v717, 4096
          %v2276 = vsel %vm2244, %v727, 4096
          %v2277 = vsel %vm2245, %v717, 4096
          %v2278 = vsel %vm2246, %v728, 4096
          %v2279 = vsel %vm2247, %v717, 4096
          %v2280 = vsel %vm2248, %v729, 4096
          %v2281 = vsel %vm2249, %v717, 4096
          %v2282 = vsel %vm2250, %v730, 4096
          %v2283 = vsel %vm2251, %v717, 4096
          %v2284 = vsel %vm2252, %v731, 4096
          %v2285 = vsel %vm2253, %v717, 4096
          %v2286 = vsel %vm2254, %v732, 4096
          %v2287 = vsel %vm2255, %v717, 4096
          %vm2288 = vcmp.lt.s32.totalorder %v2256, %v2257
          %v2289 = vsel %vm2288, %v2256, %v2257
          %v2290 = vand.u32 %v2289, 65535
          %v2291 = vshra.s32 %v2289, 16
          %v2292 = vcvt.s32.f32 %v2290
          %v2293 = vcvt.s32.f32 %v2291
          %2294 = vmin.xlane.f32.xlu0 %v2293
          %v2295 = vpop.xlane.xlu0 %2294
          %vm2296 = vcmp.eq.f32.partialorder %v2293, %v2295
          %v2297 = vsel %vm2296, %v2292, inf
          %2298 = vmin.xlane.f32.xlu0 %v2297
          %v2299 = vpop.xlane.xlu0 %2298
          %v2300 = vcvt.f32.s32 %v2299
          %v2301 = vcvt.f32.s32 %v2295
          %v2302 = vshll.u32 %v2301, 16
          %v2303 = vadd.s32 %v2302, %v2300
          %vm2304 = vcmp.lt.s32.totalorder %v2258, %v2259
          %v2305 = vsel %vm2304, %v2258, %v2259
          %v2306 = vand.u32 %v2305, 65535
          %v2307 = vshra.s32 %v2305, 16
          %v2308 = vcvt.s32.f32 %v2306
          %v2309 = vcvt.s32.f32 %v2307
          %2310 = vmin.xlane.f32.xlu0 %v2309
          %v2311 = vpop.xlane.xlu0 %2310
          %vm2312 = vcmp.eq.f32.partialorder %v2309, %v2311
          %v2313 = vsel %vm2312, %v2308, inf
          %2314 = vmin.xlane.f32.xlu0 %v2313
          %v2315 = vpop.xlane.xlu0 %2314
          %v2316 = vcvt.f32.s32 %v2315
          %v2317 = vcvt.f32.s32 %v2311
          %v2318 = vshll.u32 %v2317, 16
          %v2319 = vadd.s32 %v2318, %v2316
          %vm2320 = vcmp.lt.s32.totalorder %v2260, %v2261
          %v2321 = vsel %vm2320, %v2260, %v2261
          %v2322 = vand.u32 %v2321, 65535
          %v2323 = vshra.s32 %v2321, 16
          %v2324 = vcvt.s32.f32 %v2322
          %v2325 = vcvt.s32.f32 %v2323
          %2326 = vmin.xlane.f32.xlu0 %v2325
          %v2327 = vpop.xlane.xlu0 %2326
          %vm2328 = vcmp.eq.f32.partialorder %v2325, %v2327
          %v2329 = vsel %vm2328, %v2324, inf
          %2330 = vmin.xlane.f32.xlu0 %v2329
          %v2331 = vpop.xlane.xlu0 %2330
          %v2332 = vcvt.f32.s32 %v2331
          %v2333 = vcvt.f32.s32 %v2327
          %v2334 = vshll.u32 %v2333, 16
          %v2335 = vadd.s32 %v2334, %v2332
          %vm2336 = vcmp.lt.s32.totalorder %v2262, %v2263
          %v2337 = vsel %vm2336, %v2262, %v2263
          %v2338 = vand.u32 %v2337, 65535
          %v2339 = vshra.s32 %v2337, 16
          %v2340 = vcvt.s32.f32 %v2338
          %v2341 = vcvt.s32.f32 %v2339
          %2342 = vmin.xlane.f32.xlu0 %v2341
          %v2343 = vpop.xlane.xlu0 %2342
          %vm2344 = vcmp.eq.f32.partialorder %v2341, %v2343
          %v2345 = vsel %vm2344, %v2340, inf
          %2346 = vmin.xlane.f32.xlu0 %v2345
          %v2347 = vpop.xlane.xlu0 %2346
          %v2348 = vcvt.f32.s32 %v2347
          %v2349 = vcvt.f32.s32 %v2343
          %v2350 = vshll.u32 %v2349, 16
          %v2351 = vadd.s32 %v2350, %v2348
          %vm2352 = vcmp.lt.s32.totalorder %v2264, %v2265
          %v2353 = vsel %vm2352, %v2264, %v2265
          %v2354 = vand.u32 %v2353, 65535
          %v2355 = vshra.s32 %v2353, 16
          %v2356 = vcvt.s32.f32 %v2354
          %v2357 = vcvt.s32.f32 %v2355
          %2358 = vmin.xlane.f32.xlu0 %v2357
          %v2359 = vpop.xlane.xlu0 %2358
          %vm2360 = vcmp.eq.f32.partialorder %v2357, %v2359
          %v2361 = vsel %vm2360, %v2356, inf
          %2362 = vmin.xlane.f32.xlu0 %v2361
          %v2363 = vpop.xlane.xlu0 %2362
          %v2364 = vcvt.f32.s32 %v2363
          %v2365 = vcvt.f32.s32 %v2359
          %v2366 = vshll.u32 %v2365, 16
          %v2367 = vadd.s32 %v2366, %v2364
          %vm2368 = vcmp.lt.s32.totalorder %v2266, %v2267
          %v2369 = vsel %vm2368, %v2266, %v2267
          %v2370 = vand.u32 %v2369, 65535
          %v2371 = vshra.s32 %v2369, 16
          %v2372 = vcvt.s32.f32 %v2370
          %v2373 = vcvt.s32.f32 %v2371
          %2374 = vmin.xlane.f32.xlu0 %v2373
          %v2375 = vpop.xlane.xlu0 %2374
          %vm2376 = vcmp.eq.f32.partialorder %v2373, %v2375
          %v2377 = vsel %vm2376, %v2372, inf
          %2378 = vmin.xlane.f32.xlu0 %v2377
          %v2379 = vpop.xlane.xlu0 %2378
          %v2380 = vcvt.f32.s32 %v2379
          %v2381 = vcvt.f32.s32 %v2375
          %v2382 = vshll.u32 %v2381, 16
          %v2383 = vadd.s32 %v2382, %v2380
          %vm2384 = vcmp.lt.s32.totalorder %v2268, %v2269
          %v2385 = vsel %vm2384, %v2268, %v2269
          %v2386 = vand.u32 %v2385, 65535
          %v2387 = vshra.s32 %v2385, 16
          %v2388 = vcvt.s32.f32 %v2386
          %v2389 = vcvt.s32.f32 %v2387
          %2390 = vmin.xlane.f32.xlu0 %v2389
          %v2391 = vpop.xlane.xlu0 %2390
          %vm2392 = vcmp.eq.f32.partialorder %v2389, %v2391
          %v2393 = vsel %vm2392, %v2388, inf
          %2394 = vmin.xlane.f32.xlu0 %v2393
          %v2395 = vpop.xlane.xlu0 %2394
          %v2396 = vcvt.f32.s32 %v2395
          %v2397 = vcvt.f32.s32 %v2391
          %v2398 = vshll.u32 %v2397, 16
          %v2399 = vadd.s32 %v2398, %v2396
          %vm2400 = vcmp.lt.s32.totalorder %v2270, %v2271
          %v2401 = vsel %vm2400, %v2270, %v2271
          %v2402 = vand.u32 %v2401, 65535
          %v2403 = vshra.s32 %v2401, 16
          %v2404 = vcvt.s32.f32 %v2402
          %v2405 = vcvt.s32.f32 %v2403
          %2406 = vmin.xlane.f32.xlu0 %v2405
          %v2407 = vpop.xlane.xlu0 %2406
          %vm2408 = vcmp.eq.f32.partialorder %v2405, %v2407
          %v2409 = vsel %vm2408, %v2404, inf
          %2410 = vmin.xlane.f32.xlu0 %v2409
          %v2411 = vpop.xlane.xlu0 %2410
          %v2412 = vcvt.f32.s32 %v2411
          %v2413 = vcvt.f32.s32 %v2407
          %v2414 = vshll.u32 %v2413, 16
          %v2415 = vadd.s32 %v2414, %v2412
          %vm2416 = vcmp.lt.s32.totalorder %v2272, %v2273
          %v2417 = vsel %vm2416, %v2272, %v2273
          %v2418 = vand.u32 %v2417, 65535
          %v2419 = vshra.s32 %v2417, 16
          %v2420 = vcvt.s32.f32 %v2418
          %v2421 = vcvt.s32.f32 %v2419
          %2422 = vmin.xlane.f32.xlu0 %v2421
          %v2423 = vpop.xlane.xlu0 %2422
          %vm2424 = vcmp.eq.f32.partialorder %v2421, %v2423
          %v2425 = vsel %vm2424, %v2420, inf
          %2426 = vmin.xlane.f32.xlu0 %v2425
          %v2427 = vpop.xlane.xlu0 %2426
          %v2428 = vcvt.f32.s32 %v2427
          %v2429 = vcvt.f32.s32 %v2423
          %v2430 = vshll.u32 %v2429, 16
          %v2431 = vadd.s32 %v2430, %v2428
          %vm2432 = vcmp.lt.s32.totalorder %v2274, %v2275
          %v2433 = vsel %vm2432, %v2274, %v2275
          %v2434 = vand.u32 %v2433, 65535
          %v2435 = vshra.s32 %v2433, 16
          %v2436 = vcvt.s32.f32 %v2434
          %v2437 = vcvt.s32.f32 %v2435
          %2438 = vmin.xlane.f32.xlu0 %v2437
          %v2439 = vpop.xlane.xlu0 %2438
          %vm2440 = vcmp.eq.f32.partialorder %v2437, %v2439
          %v2441 = vsel %vm2440, %v2436, inf
          %2442 = vmin.xlane.f32.xlu0 %v2441
          %v2443 = vpop.xlane.xlu0 %2442
          %v2444 = vcvt.f32.s32 %v2443
          %v2445 = vcvt.f32.s32 %v2439
          %v2446 = vshll.u32 %v2445, 16
          %v2447 = vadd.s32 %v2446, %v2444
          %vm2448 = vcmp.lt.s32.totalorder %v2276, %v2277
          %v2449 = vsel %vm2448, %v2276, %v2277
          %v2450 = vand.u32 %v2449, 65535
          %v2451 = vshra.s32 %v2449, 16
          %v2452 = vcvt.s32.f32 %v2450
          %v2453 = vcvt.s32.f32 %v2451
          %2454 = vmin.xlane.f32.xlu0 %v2453
          %v2455 = vpop.xlane.xlu0 %2454
          %vm2456 = vcmp.eq.f32.partialorder %v2453, %v2455
          %v2457 = vsel %vm2456, %v2452, inf
          %2458 = vmin.xlane.f32.xlu0 %v2457
          %v2459 = vpop.xlane.xlu0 %2458
          %v2460 = vcvt.f32.s32 %v2459
          %v2461 = vcvt.f32.s32 %v2455
          %v2462 = vshll.u32 %v2461, 16
          %v2463 = vadd.s32 %v2462, %v2460
          %vm2464 = vcmp.lt.s32.totalorder %v2278, %v2279
          %v2465 = vsel %vm2464, %v2278, %v2279
          %v2466 = vand.u32 %v2465, 65535
          %v2467 = vshra.s32 %v2465, 16
          %v2468 = vcvt.s32.f32 %v2466
          %v2469 = vcvt.s32.f32 %v2467
          %2470 = vmin.xlane.f32.xlu0 %v2469
          %v2471 = vpop.xlane.xlu0 %2470
          %vm2472 = vcmp.eq.f32.partialorder %v2469, %v2471
          %v2473 = vsel %vm2472, %v2468, inf
          %2474 = vmin.xlane.f32.xlu0 %v2473
          %v2475 = vpop.xlane.xlu0 %2474
          %v2476 = vcvt.f32.s32 %v2475
          %v2477 = vcvt.f32.s32 %v2471
          %v2478 = vshll.u32 %v2477, 16
          %v2479 = vadd.s32 %v2478, %v2476
          %vm2480 = vcmp.lt.s32.totalorder %v2280, %v2281
          %v2481 = vsel %vm2480, %v2280, %v2281
          %v2482 = vand.u32 %v2481, 65535
          %v2483 = vshra.s32 %v2481, 16
          %v2484 = vcvt.s32.f32 %v2482
          %v2485 = vcvt.s32.f32 %v2483
          %2486 = vmin.xlane.f32.xlu0 %v2485
          %v2487 = vpop.xlane.xlu0 %2486
          %vm2488 = vcmp.eq.f32.partialorder %v2485, %v2487
          %v2489 = vsel %vm2488, %v2484, inf
          %2490 = vmin.xlane.f32.xlu0 %v2489
          %v2491 = vpop.xlane.xlu0 %2490
          %v2492 = vcvt.f32.s32 %v2491
          %v2493 = vcvt.f32.s32 %v2487
          %v2494 = vshll.u32 %v2493, 16
          %v2495 = vadd.s32 %v2494, %v2492
          %vm2496 = vcmp.lt.s32.totalorder %v2282, %v2283
          %v2497 = vsel %vm2496, %v2282, %v2283
          %v2498 = vand.u32 %v2497, 65535
          %v2499 = vshra.s32 %v2497, 16
          %v2500 = vcvt.s32.f32 %v2498
          %v2501 = vcvt.s32.f32 %v2499
          %2502 = vmin.xlane.f32.xlu0 %v2501
          %v2503 = vpop.xlane.xlu0 %2502
          %vm2504 = vcmp.eq.f32.partialorder %v2501, %v2503
          %v2505 = vsel %vm2504, %v2500, inf
          %2506 = vmin.xlane.f32.xlu0 %v2505
          %v2507 = vpop.xlane.xlu0 %2506
          %v2508 = vcvt.f32.s32 %v2507
          %v2509 = vcvt.f32.s32 %v2503
          %v2510 = vshll.u32 %v2509, 16
          %v2511 = vadd.s32 %v2510, %v2508
          %vm2512 = vcmp.lt.s32.totalorder %v2284, %v2285
          %v2513 = vsel %vm2512, %v2284, %v2285
          %v2514 = vand.u32 %v2513, 65535
          %v2515 = vshra.s32 %v2513, 16
          %v2516 = vcvt.s32.f32 %v2514
          %v2517 = vcvt.s32.f32 %v2515
          %2518 = vmin.xlane.f32.xlu0 %v2517
          %v2519 = vpop.xlane.xlu0 %2518
          %vm2520 = vcmp.eq.f32.partialorder %v2517, %v2519
          %v2521 = vsel %vm2520, %v2516, inf
          %2522 = vmin.xlane.f32.xlu0 %v2521
          %v2523 = vpop.xlane.xlu0 %2522
          %v2524 = vcvt.f32.s32 %v2523
          %v2525 = vcvt.f32.s32 %v2519
          %v2526 = vshll.u32 %v2525, 16
          %v2527 = vadd.s32 %v2526, %v2524
          %vm2528 = vcmp.lt.s32.totalorder %v2286, %v2287
          %v2529 = vsel %vm2528, %v2286, %v2287
          %v2530 = vand.u32 %v2529, 65535
          %v2531 = vshra.s32 %v2529, 16
          %v2532 = vcvt.s32.f32 %v2530
          %v2533 = vcvt.s32.f32 %v2531
          %2534 = vmin.xlane.f32.xlu0 %v2533
          %v2535 = vpop.xlane.xlu0 %2534
          %vm2536 = vcmp.eq.f32.partialorder %v2533, %v2535
          %v2537 = vsel %vm2536, %v2532, inf
          %2538 = vmin.xlane.f32.xlu0 %v2537
          %v2539 = vpop.xlane.xlu0 %2538
          %v2540 = vcvt.f32.s32 %v2539
          %v2541 = vcvt.f32.s32 %v2535
          %v2542 = vshll.u32 %v2541, 16
          %v2543 = vadd.s32 %v2542, %v2540
          %vm2544 = vcmask 31768
          %2545 = vst.msk [vmem:[#allocation2] sm:$0xff] %vm2544, %v2178
          %2546 = vst.msk [vmem:[#allocation2 + $0x8] sm:$0xff] %vm2544, %v2181
          %2547 = vst.msk [vmem:[#allocation2 + $0x10] sm:$0xff] %vm2544, %v2184
          %2548 = vst.msk [vmem:[#allocation2 + $0x18] sm:$0xff] %vm2544, %v2187
          %2549 = vst.msk [vmem:[#allocation2 + $0x20] sm:$0xff] %vm2544, %v2190
          %2550 = vst.msk [vmem:[#allocation2 + $0x28] sm:$0xff] %vm2544, %v2193
          %2551 = vst.msk [vmem:[#allocation2 + $0x30] sm:$0xff] %vm2544, %v2196
          %2552 = vst.msk [vmem:[#allocation2 + $0x38] sm:$0xff] %vm2544, %v2199
          %2553 = vst.msk [vmem:[#allocation2 + $0x40] sm:$0xff] %vm2544, %v2202
          %2554 = vst.msk [vmem:[#allocation2 + $0x48] sm:$0xff] %vm2544, %v2205
          %2555 = vst.msk [vmem:[#allocation2 + $0x50] sm:$0xff] %vm2544, %v2208
          %2556 = vst.msk [vmem:[#allocation2 + $0x58] sm:$0xff] %vm2544, %v2211
          %2557 = vst.msk [vmem:[#allocation2 + $0x60] sm:$0xff] %vm2544, %v2214
          %2558 = vst.msk [vmem:[#allocation2 + $0x68] sm:$0xff] %vm2544, %v2217
          %2559 = vst.msk [vmem:[#allocation2 + $0x70] sm:$0xff] %vm2544, %v2220
          %2560 = vst.msk [vmem:[#allocation2 + $0x78] sm:$0xff] %vm2544, %v2223
          %v2561 = vand.u32 %v2303, 15
          %v2562 = vand.u32 %v2319, 15
          %v2563 = vand.u32 %v2335, 15
          %v2564 = vand.u32 %v2351, 15
          %v2565 = vand.u32 %v2367, 15
          %v2566 = vand.u32 %v2383, 15
          %v2567 = vand.u32 %v2399, 15
          %v2568 = vand.u32 %v2415, 15
          %v2569 = vand.u32 %v2431, 15
          %v2570 = vand.u32 %v2447, 15
          %v2571 = vand.u32 %v2463, 15
          %v2572 = vand.u32 %v2479, 15
          %v2573 = vand.u32 %v2495, 15
          %v2574 = vand.u32 %v2511, 15
          %v2575 = vand.u32 %v2527, 15
          %v2576 = vand.u32 %v2543, 15
          %2577 = vst.msk [vmem:[#allocation3] sm:$0xff] %vm2544, %v2561
          %2578 = vst.msk [vmem:[#allocation3 + $0x8] sm:$0xff] %vm2544, %v2562
          %2579 = vst.msk [vmem:[#allocation3 + $0x10] sm:$0xff] %vm2544, %v2563
          %2580 = vst.msk [vmem:[#allocation3 + $0x18] sm:$0xff] %vm2544, %v2564
          %2581 = vst.msk [vmem:[#allocation3 + $0x20] sm:$0xff] %vm2544, %v2565
          %2582 = vst.msk [vmem:[#allocation3 + $0x28] sm:$0xff] %vm2544, %v2566
          %2583 = vst.msk [vmem:[#allocation3 + $0x30] sm:$0xff] %vm2544, %v2567
          %2584 = vst.msk [vmem:[#allocation3 + $0x38] sm:$0xff] %vm2544, %v2568
          %2585 = vst.msk [vmem:[#allocation3 + $0x40] sm:$0xff] %vm2544, %v2569
          %2586 = vst.msk [vmem:[#allocation3 + $0x48] sm:$0xff] %vm2544, %v2570
          %2587 = vst.msk [vmem:[#allocation3 + $0x50] sm:$0xff] %vm2544, %v2571
          %2588 = vst.msk [vmem:[#allocation3 + $0x58] sm:$0xff] %vm2544, %v2572
          %2589 = vst.msk [vmem:[#allocation3 + $0x60] sm:$0xff] %vm2544, %v2573
          %2590 = vst.msk [vmem:[#allocation3 + $0x68] sm:$0xff] %vm2544, %v2574
          %2591 = vst.msk [vmem:[#allocation3 + $0x70] sm:$0xff] %vm2544, %v2575
          %2592 = vst.msk [vmem:[#allocation3 + $0x78] sm:$0xff] %vm2544, %v2576
        $region81: #{_fwd.1} parent=68 // pred_fallthru
          _
        %p2593 = scmp.eq.s32.totalorder %s19, 1
        // Predicated region
        $region82: #{_fwd.1} parent=68 // pred_check
          %p2594 = pneg %p2593
        $region83: #{_fwd.1} parent=68 // pred_check_branch
          %2596 = sbr.rel (%p2594) target = $region85
        $region84: #{_fwd.1} parent=68 // pred_region
          %v2597 = vld [vmem:[#allocation2] sm:$0xff]
          %v2598 = vld [vmem:[#allocation2 + $0x8] sm:$0xff]
          %v2599 = vld [vmem:[#allocation2 + $0x10] sm:$0xff]
          %v2600 = vld [vmem:[#allocation2 + $0x18] sm:$0xff]
          %v2601 = vld [vmem:[#allocation2 + $0x20] sm:$0xff]
          %v2602 = vld [vmem:[#allocation2 + $0x28] sm:$0xff]
          %v2603 = vld [vmem:[#allocation2 + $0x30] sm:$0xff]
          %v2604 = vld [vmem:[#allocation2 + $0x38] sm:$0xff]
          %v2605 = vld [vmem:[#allocation2 + $0x40] sm:$0xff]
          %v2606 = vld [vmem:[#allocation2 + $0x48] sm:$0xff]
          %v2607 = vld [vmem:[#allocation2 + $0x50] sm:$0xff]
          %v2608 = vld [vmem:[#allocation2 + $0x58] sm:$0xff]
          %v2609 = vld [vmem:[#allocation2 + $0x60] sm:$0xff]
          %v2610 = vld [vmem:[#allocation2 + $0x68] sm:$0xff]
          %v2611 = vld [vmem:[#allocation2 + $0x70] sm:$0xff]
          %v2612 = vld [vmem:[#allocation2 + $0x78] sm:$0xff]
          %v2613 = vld [vmem:[#allocation3] sm:$0xff]
          %v2614 = vld [vmem:[#allocation3 + $0x8] sm:$0xff]
          %v2615 = vld [vmem:[#allocation3 + $0x10] sm:$0xff]
          %v2616 = vld [vmem:[#allocation3 + $0x18] sm:$0xff]
          %v2617 = vld [vmem:[#allocation3 + $0x20] sm:$0xff]
          %v2618 = vld [vmem:[#allocation3 + $0x28] sm:$0xff]
          %v2619 = vld [vmem:[#allocation3 + $0x30] sm:$0xff]
          %v2620 = vld [vmem:[#allocation3 + $0x38] sm:$0xff]
          %v2621 = vld [vmem:[#allocation3 + $0x40] sm:$0xff]
          %v2622 = vld [vmem:[#allocation3 + $0x48] sm:$0xff]
          %v2623 = vld [vmem:[#allocation3 + $0x50] sm:$0xff]
          %v2624 = vld [vmem:[#allocation3 + $0x58] sm:$0xff]
          %v2625 = vld [vmem:[#allocation3 + $0x60] sm:$0xff]
          %v2626 = vld [vmem:[#allocation3 + $0x68] sm:$0xff]
          %v2627 = vld [vmem:[#allocation3 + $0x70] sm:$0xff]
          %v2628 = vld [vmem:[#allocation3 + $0x78] sm:$0xff]
          %v2629 = vmul.f32 %v2597, 14.285714
          %v2630 = vmul.f32 %v2598, 14.285714
          %v2631 = vmul.f32 %v2599, 14.285714
          %v2632 = vmul.f32 %v2600, 14.285714
          %v2633 = vmul.f32 %v2601, 14.285714
          %v2634 = vmul.f32 %v2602, 14.285714
          %v2635 = vmul.f32 %v2603, 14.285714
          %v2636 = vmul.f32 %v2604, 14.285714
          %v2637 = vmul.f32 %v2605, 14.285714
          %v2638 = vmul.f32 %v2606, 14.285714
          %v2639 = vmul.f32 %v2607, 14.285714
          %v2640 = vmul.f32 %v2608, 14.285714
          %v2641 = vmul.f32 %v2609, 14.285714
          %v2642 = vmul.f32 %v2610, 14.285714
          %v2643 = vmul.f32 %v2611, 14.285714
          %v2644 = vmul.f32 %v2612, 14.285714
          %2645 = vmax.xlane.f32.xlu0 %v2629
          %v2646 = vpop.xlane.xlu0 %2645
          %2647 = vmax.xlane.f32.xlu0 %v2630
          %v2648 = vpop.xlane.xlu0 %2647
          %2649 = vmax.xlane.f32.xlu0 %v2631
          %v2650 = vpop.xlane.xlu0 %2649
          %2651 = vmax.xlane.f32.xlu0 %v2632
          %v2652 = vpop.xlane.xlu0 %2651
          %2653 = vmax.xlane.f32.xlu0 %v2633
          %v2654 = vpop.xlane.xlu0 %2653
          %2655 = vmax.xlane.f32.xlu0 %v2634
          %v2656 = vpop.xlane.xlu0 %2655
          %2657 = vmax.xlane.f32.xlu0 %v2635
          %v2658 = vpop.xlane.xlu0 %2657
          %2659 = vmax.xlane.f32.xlu0 %v2636
          %v2660 = vpop.xlane.xlu0 %2659
          %2661 = vmax.xlane.f32.xlu0 %v2637
          %v2662 = vpop.xlane.xlu0 %2661
          %2663 = vmax.xlane.f32.xlu0 %v2638
          %v2664 = vpop.xlane.xlu0 %2663
          %2665 = vmax.xlane.f32.xlu0 %v2639
          %v2666 = vpop.xlane.xlu0 %2665
          %2667 = vmax.xlane.f32.xlu0 %v2640
          %v2668 = vpop.xlane.xlu0 %2667
          %2669 = vmax.xlane.f32.xlu0 %v2641
          %v2670 = vpop.xlane.xlu0 %2669
          %2671 = vmax.xlane.f32.xlu0 %v2642
          %v2672 = vpop.xlane.xlu0 %2671
          %2673 = vmax.xlane.f32.xlu0 %v2643
          %v2674 = vpop.xlane.xlu0 %2673
          %2675 = vmax.xlane.f32.xlu0 %v2644
          %v2676 = vpop.xlane.xlu0 %2675
          %v2677 = vsub.f32 %v2629, %v2646
          %v2678 = vsub.f32 %v2630, %v2648
          %v2679 = vsub.f32 %v2631, %v2650
          %v2680 = vsub.f32 %v2632, %v2652
          %v2681 = vsub.f32 %v2633, %v2654
          %v2682 = vsub.f32 %v2634, %v2656
          %v2683 = vsub.f32 %v2635, %v2658
          %v2684 = vsub.f32 %v2636, %v2660
          %v2685 = vsub.f32 %v2637, %v2662
          %v2686 = vsub.f32 %v2638, %v2664
          %v2687 = vsub.f32 %v2639, %v2666
          %v2688 = vsub.f32 %v2640, %v2668
          %v2689 = vsub.f32 %v2641, %v2670
          %v2690 = vsub.f32 %v2642, %v2672
          %v2691 = vsub.f32 %v2643, %v2674
          %v2692 = vsub.f32 %v2644, %v2676
          %v2693 = vmul.f32 %v2677, 1.442695
          %v2694 = vpow.pop %v2693
          %v2695 = vmul.f32 %v2678, 1.442695
          %v2696 = vpow.pop %v2695
          %v2697 = vmul.f32 %v2679, 1.442695
          %v2698 = vpow.pop %v2697
          %v2699 = vmul.f32 %v2680, 1.442695
          %v2700 = vpow.pop %v2699
          %v2701 = vmul.f32 %v2681, 1.442695
          %v2702 = vpow.pop %v2701
          %v2703 = vmul.f32 %v2682, 1.442695
          %v2704 = vpow.pop %v2703
          %v2705 = vmul.f32 %v2683, 1.442695
          %v2706 = vpow.pop %v2705
          %v2707 = vmul.f32 %v2684, 1.442695
          %v2708 = vpow.pop %v2707
          %v2709 = vmul.f32 %v2685, 1.442695
          %v2710 = vpow.pop %v2709
          %v2711 = vmul.f32 %v2686, 1.442695
          %v2712 = vpow.pop %v2711
          %v2713 = vmul.f32 %v2687, 1.442695
          %v2714 = vpow.pop %v2713
          %v2715 = vmul.f32 %v2688, 1.442695
          %v2716 = vpow.pop %v2715
          %v2717 = vmul.f32 %v2689, 1.442695
          %v2718 = vpow.pop %v2717
          %v2719 = vmul.f32 %v2690, 1.442695
          %v2720 = vpow.pop %v2719
          %v2721 = vmul.f32 %v2691, 1.442695
          %v2722 = vpow.pop %v2721
          %v2723 = vmul.f32 %v2692, 1.442695
          %v2724 = vpow.pop %v2723
          %2725 = vadd.xlane.f32.xlu0 %v2694
          %v2726 = vpop.xlane.xlu0 %2725
          %2727 = vadd.xlane.f32.xlu0 %v2696
          %v2728 = vpop.xlane.xlu0 %2727
          %2729 = vadd.xlane.f32.xlu0 %v2698
          %v2730 = vpop.xlane.xlu0 %2729
          %2731 = vadd.xlane.f32.xlu0 %v2700
          %v2732 = vpop.xlane.xlu0 %2731
          %2733 = vadd.xlane.f32.xlu0 %v2702
          %v2734 = vpop.xlane.xlu0 %2733
          %2735 = vadd.xlane.f32.xlu0 %v2704
          %v2736 = vpop.xlane.xlu0 %2735
          %2737 = vadd.xlane.f32.xlu0 %v2706
          %v2738 = vpop.xlane.xlu0 %2737
          %2739 = vadd.xlane.f32.xlu0 %v2708
          %v2740 = vpop.xlane.xlu0 %2739
          %2741 = vadd.xlane.f32.xlu0 %v2710
          %v2742 = vpop.xlane.xlu0 %2741
          %2743 = vadd.xlane.f32.xlu0 %v2712
          %v2744 = vpop.xlane.xlu0 %2743
          %2745 = vadd.xlane.f32.xlu0 %v2714
          %v2746 = vpop.xlane.xlu0 %2745
          %2747 = vadd.xlane.f32.xlu0 %v2716
          %v2748 = vpop.xlane.xlu0 %2747
          %2749 = vadd.xlane.f32.xlu0 %v2718
          %v2750 = vpop.xlane.xlu0 %2749
          %2751 = vadd.xlane.f32.xlu0 %v2720
          %v2752 = vpop.xlane.xlu0 %2751
          %2753 = vadd.xlane.f32.xlu0 %v2722
          %v2754 = vpop.xlane.xlu0 %2753
          %2755 = vadd.xlane.f32.xlu0 %v2724
          %v2756 = vpop.xlane.xlu0 %2755
          %v2757 = vrcp.pop %v2726
          %v2758 = vrcp.pop %v2728
          %v2759 = vrcp.pop %v2730
          %v2760 = vrcp.pop %v2732
          %v2761 = vrcp.pop %v2734
          %v2762 = vrcp.pop %v2736
          %v2763 = vrcp.pop %v2738
          %v2764 = vrcp.pop %v2740
          %v2765 = vrcp.pop %v2742
          %v2766 = vrcp.pop %v2744
          %v2767 = vrcp.pop %v2746
          %v2768 = vrcp.pop %v2748
          %v2769 = vrcp.pop %v2750
          %v2770 = vrcp.pop %v2752
          %v2771 = vrcp.pop %v2754
          %v2772 = vrcp.pop %v2756
          %v2773 = vmul.f32 %v2694, %v2757
          %v2774 = vmul.f32 %v2696, %v2758
          %v2775 = vmul.f32 %v2698, %v2759
          %v2776 = vmul.f32 %v2700, %v2760
          %v2777 = vmul.f32 %v2702, %v2761
          %v2778 = vmul.f32 %v2704, %v2762
          %v2779 = vmul.f32 %v2706, %v2763
          %v2780 = vmul.f32 %v2708, %v2764
          %v2781 = vmul.f32 %v2710, %v2765
          %v2782 = vmul.f32 %v2712, %v2766
          %v2783 = vmul.f32 %v2714, %v2767
          %v2784 = vmul.f32 %v2716, %v2768
          %v2785 = vmul.f32 %v2718, %v2769
          %v2786 = vmul.f32 %v2720, %v2770
          %v2787 = vmul.f32 %v2722, %v2771
          %v2788 = vmul.f32 %v2724, %v2772
          %v2789 = vlaneseq
          %v2790 = vand.u32 %v2789, 127
          %2791 = vset.pattern.permute.xlu0 0
          %2792 = vperm.xlu0 %2791, %v2613
          %v2793 = vpop.permute.xlu0 %2792
          %2794 = vset.pattern.permute.xlu0 0
          %2795 = vperm.xlu0 %2794, %v2614
          %v2796 = vpop.permute.xlu0 %2795
          %2797 = vset.pattern.permute.xlu0 0
          %2798 = vperm.xlu0 %2797, %v2615
          %v2799 = vpop.permute.xlu0 %2798
          %2800 = vset.pattern.permute.xlu0 0
          %2801 = vperm.xlu0 %2800, %v2616
          %v2802 = vpop.permute.xlu0 %2801
          %2803 = vset.pattern.permute.xlu0 0
          %2804 = vperm.xlu0 %2803, %v2617
          %v2805 = vpop.permute.xlu0 %2804
          %2806 = vset.pattern.permute.xlu0 0
          %2807 = vperm.xlu0 %2806, %v2618
          %v2808 = vpop.permute.xlu0 %2807
          %2809 = vset.pattern.permute.xlu0 0
          %2810 = vperm.xlu0 %2809, %v2619
          %v2811 = vpop.permute.xlu0 %2810
          %2812 = vset.pattern.permute.xlu0 0
          %2813 = vperm.xlu0 %2812, %v2620
          %v2814 = vpop.permute.xlu0 %2813
          %2815 = vset.pattern.permute.xlu0 0
          %2816 = vperm.xlu0 %2815, %v2621
          %v2817 = vpop.permute.xlu0 %2816
          %2818 = vset.pattern.permute.xlu0 0
          %2819 = vperm.xlu0 %2818, %v2622
          %v2820 = vpop.permute.xlu0 %2819
          %2821 = vset.pattern.permute.xlu0 0
          %2822 = vperm.xlu0 %2821, %v2623
          %v2823 = vpop.permute.xlu0 %2822
          %2824 = vset.pattern.permute.xlu0 0
          %2825 = vperm.xlu0 %2824, %v2624
          %v2826 = vpop.permute.xlu0 %2825
          %2827 = vset.pattern.permute.xlu0 0
          %2828 = vperm.xlu0 %2827, %v2625
          %v2829 = vpop.permute.xlu0 %2828
          %2830 = vset.pattern.permute.xlu0 0
          %2831 = vperm.xlu0 %2830, %v2626
          %v2832 = vpop.permute.xlu0 %2831
          %2833 = vset.pattern.permute.xlu0 0
          %2834 = vperm.xlu0 %2833, %v2627
          %v2835 = vpop.permute.xlu0 %2834
          %2836 = vset.pattern.permute.xlu0 0
          %2837 = vperm.xlu0 %2836, %v2628
          %v2838 = vpop.permute.xlu0 %2837
          %vm2839 = vcmp.eq.s32.totalorder %v2793, %v2790
          %vm2840 = vcmp.eq.s32.totalorder %v2796, %v2790
          %vm2841 = vcmp.eq.s32.totalorder %v2799, %v2790
          %vm2842 = vcmp.eq.s32.totalorder %v2802, %v2790
          %vm2843 = vcmp.eq.s32.totalorder %v2805, %v2790
          %vm2844 = vcmp.eq.s32.totalorder %v2808, %v2790
          %vm2845 = vcmp.eq.s32.totalorder %v2811, %v2790
          %vm2846 = vcmp.eq.s32.totalorder %v2814, %v2790
          %vm2847 = vcmp.eq.s32.totalorder %v2817, %v2790
          %vm2848 = vcmp.eq.s32.totalorder %v2820, %v2790
          %vm2849 = vcmp.eq.s32.totalorder %v2823, %v2790
          %vm2850 = vcmp.eq.s32.totalorder %v2826, %v2790
          %vm2851 = vcmp.eq.s32.totalorder %v2829, %v2790
          %vm2852 = vcmp.eq.s32.totalorder %v2832, %v2790
          %vm2853 = vcmp.eq.s32.totalorder %v2835, %v2790
          %vm2854 = vcmp.eq.s32.totalorder %v2838, %v2790
          %2856 = vset.pattern.permute.xlu0 0
          %2857 = vperm.xlu0 %2856, %v2773
          %v2858 = vpop.permute.xlu0 %2857
          %2861 = vset.pattern.permute.xlu0 0
          %2862 = vperm.xlu0 %2861, %v2774
          %v2863 = vpop.permute.xlu0 %2862
          %2866 = vset.pattern.permute.xlu0 0
          %2867 = vperm.xlu0 %2866, %v2775
          %v2868 = vpop.permute.xlu0 %2867
          %2871 = vset.pattern.permute.xlu0 0
          %2872 = vperm.xlu0 %2871, %v2776
          %v2873 = vpop.permute.xlu0 %2872
          %2876 = vset.pattern.permute.xlu0 0
          %2877 = vperm.xlu0 %2876, %v2777
          %v2878 = vpop.permute.xlu0 %2877
          %2881 = vset.pattern.permute.xlu0 0
          %2882 = vperm.xlu0 %2881, %v2778
          %v2883 = vpop.permute.xlu0 %2882
          %2886 = vset.pattern.permute.xlu0 0
          %2887 = vperm.xlu0 %2886, %v2779
          %v2888 = vpop.permute.xlu0 %2887
          %2891 = vset.pattern.permute.xlu0 0
          %2892 = vperm.xlu0 %2891, %v2780
          %v2893 = vpop.permute.xlu0 %2892
          %2896 = vset.pattern.permute.xlu0 0
          %2897 = vperm.xlu0 %2896, %v2781
          %v2898 = vpop.permute.xlu0 %2897
          %2901 = vset.pattern.permute.xlu0 0
          %2902 = vperm.xlu0 %2901, %v2782
          %v2903 = vpop.permute.xlu0 %2902
          %2906 = vset.pattern.permute.xlu0 0
          %2907 = vperm.xlu0 %2906, %v2783
          %v2908 = vpop.permute.xlu0 %2907
          %2911 = vset.pattern.permute.xlu0 0
          %2912 = vperm.xlu0 %2911, %v2784
          %v2913 = vpop.permute.xlu0 %2912
          %2916 = vset.pattern.permute.xlu0 0
          %2917 = vperm.xlu0 %2916, %v2785
          %v2918 = vpop.permute.xlu0 %2917
          %2921 = vset.pattern.permute.xlu0 0
          %2922 = vperm.xlu0 %2921, %v2786
          %v2923 = vpop.permute.xlu0 %2922
          %2926 = vset.pattern.permute.xlu0 0
          %2927 = vperm.xlu0 %2926, %v2787
          %v2928 = vpop.permute.xlu0 %2927
          %2931 = vset.pattern.permute.xlu0 0
          %2932 = vperm.xlu0 %2931, %v2788
          %v2933 = vpop.permute.xlu0 %2932
          %v2935 = vsel %vm2839, %v2858, 0.0
          %v2936 = vsel %vm2840, %v2863, 0.0
          %v2937 = vsel %vm2841, %v2868, 0.0
          %v2938 = vsel %vm2842, %v2873, 0.0
          %v2939 = vsel %vm2843, %v2878, 0.0
          %v2940 = vsel %vm2844, %v2883, 0.0
          %v2941 = vsel %vm2845, %v2888, 0.0
          %v2942 = vsel %vm2846, %v2893, 0.0
          %v2943 = vsel %vm2847, %v2898, 0.0
          %v2944 = vsel %vm2848, %v2903, 0.0
          %v2945 = vsel %vm2849, %v2908, 0.0
          %v2946 = vsel %vm2850, %v2913, 0.0
          %v2947 = vsel %vm2851, %v2918, 0.0
          %v2948 = vsel %vm2852, %v2923, 0.0
          %v2949 = vsel %vm2853, %v2928, 0.0
          %v2950 = vsel %vm2854, %v2933, 0.0
          %v2951 = vadd.f32 %v2935, 0.0
          %v2952 = vadd.f32 %v2936, 0.0
          %v2953 = vadd.f32 %v2937, 0.0
          %v2954 = vadd.f32 %v2938, 0.0
          %v2955 = vadd.f32 %v2939, 0.0
          %v2956 = vadd.f32 %v2940, 0.0
          %v2957 = vadd.f32 %v2941, 0.0
          %v2958 = vadd.f32 %v2942, 0.0
          %v2959 = vadd.f32 %v2943, 0.0
          %v2960 = vadd.f32 %v2944, 0.0
          %v2961 = vadd.f32 %v2945, 0.0
          %v2962 = vadd.f32 %v2946, 0.0
          %v2963 = vadd.f32 %v2947, 0.0
          %v2964 = vadd.f32 %v2948, 0.0
          %v2965 = vadd.f32 %v2949, 0.0
          %v2966 = vadd.f32 %v2950, 0.0
          %2967 = vst [vmem:[%s275] sm:$0xff] %v2951
          %2968 = vst [vmem:[%s275 + $0x8] sm:$0xff] %v2952
          %2969 = vst [vmem:[%s275 + $0x10] sm:$0xff] %v2953
          %2970 = vst [vmem:[%s275 + $0x18] sm:$0xff] %v2954
          %2971 = vst [vmem:[%s275 + $0x20] sm:$0xff] %v2955
          %2972 = vst [vmem:[%s275 + $0x28] sm:$0xff] %v2956
          %2973 = vst [vmem:[%s275 + $0x30] sm:$0xff] %v2957
          %2974 = vst [vmem:[%s275 + $0x38] sm:$0xff] %v2958
          %2975 = vst [vmem:[%s275 + $0x40] sm:$0xff] %v2959
          %2976 = vst [vmem:[%s275 + $0x48] sm:$0xff] %v2960
          %2977 = vst [vmem:[%s275 + $0x50] sm:$0xff] %v2961
          %2978 = vst [vmem:[%s275 + $0x58] sm:$0xff] %v2962
          %2979 = vst [vmem:[%s275 + $0x60] sm:$0xff] %v2963
          %2980 = vst [vmem:[%s275 + $0x68] sm:$0xff] %v2964
          %2981 = vst [vmem:[%s275 + $0x70] sm:$0xff] %v2965
          %2982 = vst [vmem:[%s275 + $0x78] sm:$0xff] %v2966
          %2983 = vset.pattern.permute.xlu0 1
          %2984 = vperm.xlu0 %2983, %v2613
          %v2985 = vpop.permute.xlu0 %2984
          %2986 = vset.pattern.permute.xlu0 1
          %2987 = vperm.xlu0 %2986, %v2614
          %v2988 = vpop.permute.xlu0 %2987
          %2989 = vset.pattern.permute.xlu0 1
          %2990 = vperm.xlu0 %2989, %v2615
          %v2991 = vpop.permute.xlu0 %2990
          %2992 = vset.pattern.permute.xlu0 1
          %2993 = vperm.xlu0 %2992, %v2616
          %v2994 = vpop.permute.xlu0 %2993
          %2995 = vset.pattern.permute.xlu0 1
          %2996 = vperm.xlu0 %2995, %v2617
          %v2997 = vpop.permute.xlu0 %2996
          %2998 = vset.pattern.permute.xlu0 1
          %2999 = vperm.xlu0 %2998, %v2618
          %v3000 = vpop.permute.xlu0 %2999
          %3001 = vset.pattern.permute.xlu0 1
          %3002 = vperm.xlu0 %3001, %v2619
          %v3003 = vpop.permute.xlu0 %3002
          %3004 = vset.pattern.permute.xlu0 1
          %3005 = vperm.xlu0 %3004, %v2620
          %v3006 = vpop.permute.xlu0 %3005
          %3007 = vset.pattern.permute.xlu0 1
          %3008 = vperm.xlu0 %3007, %v2621
          %v3009 = vpop.permute.xlu0 %3008
          %3010 = vset.pattern.permute.xlu0 1
          %3011 = vperm.xlu0 %3010, %v2622
          %v3012 = vpop.permute.xlu0 %3011
          %3013 = vset.pattern.permute.xlu0 1
          %3014 = vperm.xlu0 %3013, %v2623
          %v3015 = vpop.permute.xlu0 %3014
          %3016 = vset.pattern.permute.xlu0 1
          %3017 = vperm.xlu0 %3016, %v2624
          %v3018 = vpop.permute.xlu0 %3017
          %3019 = vset.pattern.permute.xlu0 1
          %3020 = vperm.xlu0 %3019, %v2625
          %v3021 = vpop.permute.xlu0 %3020
          %3022 = vset.pattern.permute.xlu0 1
          %3023 = vperm.xlu0 %3022, %v2626
          %v3024 = vpop.permute.xlu0 %3023
          %3025 = vset.pattern.permute.xlu0 1
          %3026 = vperm.xlu0 %3025, %v2627
          %v3027 = vpop.permute.xlu0 %3026
          %3028 = vset.pattern.permute.xlu0 1
          %3029 = vperm.xlu0 %3028, %v2628
          %v3030 = vpop.permute.xlu0 %3029
          %vm3031 = vcmp.eq.s32.totalorder %v2985, %v2790
          %vm3032 = vcmp.eq.s32.totalorder %v2988, %v2790
          %vm3033 = vcmp.eq.s32.totalorder %v2991, %v2790
          %vm3034 = vcmp.eq.s32.totalorder %v2994, %v2790
          %vm3035 = vcmp.eq.s32.totalorder %v2997, %v2790
          %vm3036 = vcmp.eq.s32.totalorder %v3000, %v2790
          %vm3037 = vcmp.eq.s32.totalorder %v3003, %v2790
          %vm3038 = vcmp.eq.s32.totalorder %v3006, %v2790
          %vm3039 = vcmp.eq.s32.totalorder %v3009, %v2790
          %vm3040 = vcmp.eq.s32.totalorder %v3012, %v2790
          %vm3041 = vcmp.eq.s32.totalorder %v3015, %v2790
          %vm3042 = vcmp.eq.s32.totalorder %v3018, %v2790
          %vm3043 = vcmp.eq.s32.totalorder %v3021, %v2790
          %vm3044 = vcmp.eq.s32.totalorder %v3024, %v2790
          %vm3045 = vcmp.eq.s32.totalorder %v3027, %v2790
          %vm3046 = vcmp.eq.s32.totalorder %v3030, %v2790
          %3047 = vset.pattern.permute.xlu0 1
          %3048 = vperm.xlu0 %3047, %v2773
          %v3049 = vpop.permute.xlu0 %3048
          %3051 = vset.pattern.permute.xlu0 1
          %3052 = vperm.xlu0 %3051, %v2774
          %v3053 = vpop.permute.xlu0 %3052
          %3055 = vset.pattern.permute.xlu0 1
          %3056 = vperm.xlu0 %3055, %v2775
          %v3057 = vpop.permute.xlu0 %3056
          %3059 = vset.pattern.permute.xlu0 1
          %3060 = vperm.xlu0 %3059, %v2776
          %v3061 = vpop.permute.xlu0 %3060
          %3063 = vset.pattern.permute.xlu0 1
          %3064 = vperm.xlu0 %3063, %v2777
          %v3065 = vpop.permute.xlu0 %3064
          %3067 = vset.pattern.permute.xlu0 1
          %3068 = vperm.xlu0 %3067, %v2778
          %v3069 = vpop.permute.xlu0 %3068
          %3071 = vset.pattern.permute.xlu0 1
          %3072 = vperm.xlu0 %3071, %v2779
          %v3073 = vpop.permute.xlu0 %3072
          %3075 = vset.pattern.permute.xlu0 1
          %3076 = vperm.xlu0 %3075, %v2780
          %v3077 = vpop.permute.xlu0 %3076
          %3079 = vset.pattern.permute.xlu0 1
          %3080 = vperm.xlu0 %3079, %v2781
          %v3081 = vpop.permute.xlu0 %3080
          %3083 = vset.pattern.permute.xlu0 1
          %3084 = vperm.xlu0 %3083, %v2782
          %v3085 = vpop.permute.xlu0 %3084
          %3087 = vset.pattern.permute.xlu0 1
          %3088 = vperm.xlu0 %3087, %v2783
          %v3089 = vpop.permute.xlu0 %3088
          %3091 = vset.pattern.permute.xlu0 1
          %3092 = vperm.xlu0 %3091, %v2784
          %v3093 = vpop.permute.xlu0 %3092
          %3095 = vset.pattern.permute.xlu0 1
          %3096 = vperm.xlu0 %3095, %v2785
          %v3097 = vpop.permute.xlu0 %3096
          %3099 = vset.pattern.permute.xlu0 1
          %3100 = vperm.xlu0 %3099, %v2786
          %v3101 = vpop.permute.xlu0 %3100
          %3103 = vset.pattern.permute.xlu0 1
          %3104 = vperm.xlu0 %3103, %v2787
          %v3105 = vpop.permute.xlu0 %3104
          %3107 = vset.pattern.permute.xlu0 1
          %3108 = vperm.xlu0 %3107, %v2788
          %v3109 = vpop.permute.xlu0 %3108
          %v3111 = vsel %vm3031, %v3049, 0.0
          %v3112 = vsel %vm3032, %v3053, 0.0
          %v3113 = vsel %vm3033, %v3057, 0.0
          %v3114 = vsel %vm3034, %v3061, 0.0
          %v3115 = vsel %vm3035, %v3065, 0.0
          %v3116 = vsel %vm3036, %v3069, 0.0
          %v3117 = vsel %vm3037, %v3073, 0.0
          %v3118 = vsel %vm3038, %v3077, 0.0
          %v3119 = vsel %vm3039, %v3081, 0.0
          %v3120 = vsel %vm3040, %v3085, 0.0
          %v3121 = vsel %vm3041, %v3089, 0.0
          %v3122 = vsel %vm3042, %v3093, 0.0
          %v3123 = vsel %vm3043, %v3097, 0.0
          %v3124 = vsel %vm3044, %v3101, 0.0
          %v3125 = vsel %vm3045, %v3105, 0.0
          %v3126 = vsel %vm3046, %v3109, 0.0
          %v3127 = vadd.f32 %v2951, %v3111
          %v3128 = vadd.f32 %v2952, %v3112
          %v3129 = vadd.f32 %v2953, %v3113
          %v3130 = vadd.f32 %v2954, %v3114
          %v3131 = vadd.f32 %v2955, %v3115
          %v3132 = vadd.f32 %v2956, %v3116
          %v3133 = vadd.f32 %v2957, %v3117
          %v3134 = vadd.f32 %v2958, %v3118
          %v3135 = vadd.f32 %v2959, %v3119
          %v3136 = vadd.f32 %v2960, %v3120
          %v3137 = vadd.f32 %v2961, %v3121
          %v3138 = vadd.f32 %v2962, %v3122
          %v3139 = vadd.f32 %v2963, %v3123
          %v3140 = vadd.f32 %v2964, %v3124
          %v3141 = vadd.f32 %v2965, %v3125
          %v3142 = vadd.f32 %v2966, %v3126
          %s3143 = scalar_lea.vmem %s275, 128
          %3144 = vst [vmem:[%s3143] sm:$0xff] %v3127
          %3145 = vst [vmem:[%s3143 + $0x8] sm:$0xff] %v3128
          %3146 = vst [vmem:[%s3143 + $0x10] sm:$0xff] %v3129
          %3147 = vst [vmem:[%s3143 + $0x18] sm:$0xff] %v3130
          %3148 = vst [vmem:[%s3143 + $0x20] sm:$0xff] %v3131
          %3149 = vst [vmem:[%s3143 + $0x28] sm:$0xff] %v3132
          %3150 = vst [vmem:[%s3143 + $0x30] sm:$0xff] %v3133
          %3151 = vst [vmem:[%s3143 + $0x38] sm:$0xff] %v3134
          %3152 = vst [vmem:[%s3143 + $0x40] sm:$0xff] %v3135
          %3153 = vst [vmem:[%s3143 + $0x48] sm:$0xff] %v3136
          %3154 = vst [vmem:[%s3143 + $0x50] sm:$0xff] %v3137
          %3155 = vst [vmem:[%s3143 + $0x58] sm:$0xff] %v3138
          %3156 = vst [vmem:[%s3143 + $0x60] sm:$0xff] %v3139
          %3157 = vst [vmem:[%s3143 + $0x68] sm:$0xff] %v3140
          %3158 = vst [vmem:[%s3143 + $0x70] sm:$0xff] %v3141
          %3159 = vst [vmem:[%s3143 + $0x78] sm:$0xff] %v3142
          %3160 = vset.pattern.permute.xlu0 2
          %3161 = vperm.xlu0 %3160, %v2613
          %v3162 = vpop.permute.xlu0 %3161
          %3163 = vset.pattern.permute.xlu0 2
          %3164 = vperm.xlu0 %3163, %v2614
          %v3165 = vpop.permute.xlu0 %3164
          %3166 = vset.pattern.permute.xlu0 2
          %3167 = vperm.xlu0 %3166, %v2615
          %v3168 = vpop.permute.xlu0 %3167
          %3169 = vset.pattern.permute.xlu0 2
          %3170 = vperm.xlu0 %3169, %v2616
          %v3171 = vpop.permute.xlu0 %3170
          %3172 = vset.pattern.permute.xlu0 2
          %3173 = vperm.xlu0 %3172, %v2617
          %v3174 = vpop.permute.xlu0 %3173
          %3175 = vset.pattern.permute.xlu0 2
          %3176 = vperm.xlu0 %3175, %v2618
          %v3177 = vpop.permute.xlu0 %3176
          %3178 = vset.pattern.permute.xlu0 2
          %3179 = vperm.xlu0 %3178, %v2619
          %v3180 = vpop.permute.xlu0 %3179
          %3181 = vset.pattern.permute.xlu0 2
          %3182 = vperm.xlu0 %3181, %v2620
          %v3183 = vpop.permute.xlu0 %3182
          %3184 = vset.pattern.permute.xlu0 2
          %3185 = vperm.xlu0 %3184, %v2621
          %v3186 = vpop.permute.xlu0 %3185
          %3187 = vset.pattern.permute.xlu0 2
          %3188 = vperm.xlu0 %3187, %v2622
          %v3189 = vpop.permute.xlu0 %3188
          %3190 = vset.pattern.permute.xlu0 2
          %3191 = vperm.xlu0 %3190, %v2623
          %v3192 = vpop.permute.xlu0 %3191
          %3193 = vset.pattern.permute.xlu0 2
          %3194 = vperm.xlu0 %3193, %v2624
          %v3195 = vpop.permute.xlu0 %3194
          %3196 = vset.pattern.permute.xlu0 2
          %3197 = vperm.xlu0 %3196, %v2625
          %v3198 = vpop.permute.xlu0 %3197
          %3199 = vset.pattern.permute.xlu0 2
          %3200 = vperm.xlu0 %3199, %v2626
          %v3201 = vpop.permute.xlu0 %3200
          %3202 = vset.pattern.permute.xlu0 2
          %3203 = vperm.xlu0 %3202, %v2627
          %v3204 = vpop.permute.xlu0 %3203
          %3205 = vset.pattern.permute.xlu0 2
          %3206 = vperm.xlu0 %3205, %v2628
          %v3207 = vpop.permute.xlu0 %3206
          %vm3208 = vcmp.eq.s32.totalorder %v3162, %v2790
          %vm3209 = vcmp.eq.s32.totalorder %v3165, %v2790
          %vm3210 = vcmp.eq.s32.totalorder %v3168, %v2790
          %vm3211 = vcmp.eq.s32.totalorder %v3171, %v2790
          %vm3212 = vcmp.eq.s32.totalorder %v3174, %v2790
          %vm3213 = vcmp.eq.s32.totalorder %v3177, %v2790
          %vm3214 = vcmp.eq.s32.totalorder %v3180, %v2790
          %vm3215 = vcmp.eq.s32.totalorder %v3183, %v2790
          %vm3216 = vcmp.eq.s32.totalorder %v3186, %v2790
          %vm3217 = vcmp.eq.s32.totalorder %v3189, %v2790
          %vm3218 = vcmp.eq.s32.totalorder %v3192, %v2790
          %vm3219 = vcmp.eq.s32.totalorder %v3195, %v2790
          %vm3220 = vcmp.eq.s32.totalorder %v3198, %v2790
          %vm3221 = vcmp.eq.s32.totalorder %v3201, %v2790
          %vm3222 = vcmp.eq.s32.totalorder %v3204, %v2790
          %vm3223 = vcmp.eq.s32.totalorder %v3207, %v2790
          %3224 = vset.pattern.permute.xlu0 2
          %3225 = vperm.xlu0 %3224, %v2773
          %v3226 = vpop.permute.xlu0 %3225
          %3228 = vset.pattern.permute.xlu0 2
          %3229 = vperm.xlu0 %3228, %v2774
          %v3230 = vpop.permute.xlu0 %3229
          %3232 = vset.pattern.permute.xlu0 2
          %3233 = vperm.xlu0 %3232, %v2775
          %v3234 = vpop.permute.xlu0 %3233
          %3236 = vset.pattern.permute.xlu0 2
          %3237 = vperm.xlu0 %3236, %v2776
          %v3238 = vpop.permute.xlu0 %3237
          %3240 = vset.pattern.permute.xlu0 2
          %3241 = vperm.xlu0 %3240, %v2777
          %v3242 = vpop.permute.xlu0 %3241
          %3244 = vset.pattern.permute.xlu0 2
          %3245 = vperm.xlu0 %3244, %v2778
          %v3246 = vpop.permute.xlu0 %3245
          %3248 = vset.pattern.permute.xlu0 2
          %3249 = vperm.xlu0 %3248, %v2779
          %v3250 = vpop.permute.xlu0 %3249
          %3252 = vset.pattern.permute.xlu0 2
          %3253 = vperm.xlu0 %3252, %v2780
          %v3254 = vpop.permute.xlu0 %3253
          %3256 = vset.pattern.permute.xlu0 2
          %3257 = vperm.xlu0 %3256, %v2781
          %v3258 = vpop.permute.xlu0 %3257
          %3260 = vset.pattern.permute.xlu0 2
          %3261 = vperm.xlu0 %3260, %v2782
          %v3262 = vpop.permute.xlu0 %3261
          %3264 = vset.pattern.permute.xlu0 2
          %3265 = vperm.xlu0 %3264, %v2783
          %v3266 = vpop.permute.xlu0 %3265
          %3268 = vset.pattern.permute.xlu0 2
          %3269 = vperm.xlu0 %3268, %v2784
          %v3270 = vpop.permute.xlu0 %3269
          %3272 = vset.pattern.permute.xlu0 2
          %3273 = vperm.xlu0 %3272, %v2785
          %v3274 = vpop.permute.xlu0 %3273
          %3276 = vset.pattern.permute.xlu0 2
          %3277 = vperm.xlu0 %3276, %v2786
          %v3278 = vpop.permute.xlu0 %3277
          %3280 = vset.pattern.permute.xlu0 2
          %3281 = vperm.xlu0 %3280, %v2787
          %v3282 = vpop.permute.xlu0 %3281
          %3284 = vset.pattern.permute.xlu0 2
          %3285 = vperm.xlu0 %3284, %v2788
          %v3286 = vpop.permute.xlu0 %3285
          %v3288 = vsel %vm3208, %v3226, 0.0
          %v3289 = vsel %vm3209, %v3230, 0.0
          %v3290 = vsel %vm3210, %v3234, 0.0
          %v3291 = vsel %vm3211, %v3238, 0.0
          %v3292 = vsel %vm3212, %v3242, 0.0
          %v3293 = vsel %vm3213, %v3246, 0.0
          %v3294 = vsel %vm3214, %v3250, 0.0
          %v3295 = vsel %vm3215, %v3254, 0.0
          %v3296 = vsel %vm3216, %v3258, 0.0
          %v3297 = vsel %vm3217, %v3262, 0.0
          %v3298 = vsel %vm3218, %v3266, 0.0
          %v3299 = vsel %vm3219, %v3270, 0.0
          %v3300 = vsel %vm3220, %v3274, 0.0
          %v3301 = vsel %vm3221, %v3278, 0.0
          %v3302 = vsel %vm3222, %v3282, 0.0
          %v3303 = vsel %vm3223, %v3286, 0.0
          %v3304 = vadd.f32 %v3127, %v3288
          %v3305 = vadd.f32 %v3128, %v3289
          %v3306 = vadd.f32 %v3129, %v3290
          %v3307 = vadd.f32 %v3130, %v3291
          %v3308 = vadd.f32 %v3131, %v3292
          %v3309 = vadd.f32 %v3132, %v3293
          %v3310 = vadd.f32 %v3133, %v3294
          %v3311 = vadd.f32 %v3134, %v3295
          %v3312 = vadd.f32 %v3135, %v3296
          %v3313 = vadd.f32 %v3136, %v3297
          %v3314 = vadd.f32 %v3137, %v3298
          %v3315 = vadd.f32 %v3138, %v3299
          %v3316 = vadd.f32 %v3139, %v3300
          %v3317 = vadd.f32 %v3140, %v3301
          %v3318 = vadd.f32 %v3141, %v3302
          %v3319 = vadd.f32 %v3142, %v3303
          %3320 = vset.pattern.permute.xlu0 3
          %3321 = vperm.xlu0 %3320, %v2613
          %v3322 = vpop.permute.xlu0 %3321
          %3323 = vset.pattern.permute.xlu0 3
          %3324 = vperm.xlu0 %3323, %v2614
          %v3325 = vpop.permute.xlu0 %3324
          %3326 = vset.pattern.permute.xlu0 3
          %3327 = vperm.xlu0 %3326, %v2615
          %v3328 = vpop.permute.xlu0 %3327
          %3329 = vset.pattern.permute.xlu0 3
          %3330 = vperm.xlu0 %3329, %v2616
          %v3331 = vpop.permute.xlu0 %3330
          %3332 = vset.pattern.permute.xlu0 3
          %3333 = vperm.xlu0 %3332, %v2617
          %v3334 = vpop.permute.xlu0 %3333
          %3335 = vset.pattern.permute.xlu0 3
          %3336 = vperm.xlu0 %3335, %v2618
          %v3337 = vpop.permute.xlu0 %3336
          %3338 = vset.pattern.permute.xlu0 3
          %3339 = vperm.xlu0 %3338, %v2619
          %v3340 = vpop.permute.xlu0 %3339
          %3341 = vset.pattern.permute.xlu0 3
          %3342 = vperm.xlu0 %3341, %v2620
          %v3343 = vpop.permute.xlu0 %3342
          %3344 = vset.pattern.permute.xlu0 3
          %3345 = vperm.xlu0 %3344, %v2621
          %v3346 = vpop.permute.xlu0 %3345
          %3347 = vset.pattern.permute.xlu0 3
          %3348 = vperm.xlu0 %3347, %v2622
          %v3349 = vpop.permute.xlu0 %3348
          %3350 = vset.pattern.permute.xlu0 3
          %3351 = vperm.xlu0 %3350, %v2623
          %v3352 = vpop.permute.xlu0 %3351
          %3353 = vset.pattern.permute.xlu0 3
          %3354 = vperm.xlu0 %3353, %v2624
          %v3355 = vpop.permute.xlu0 %3354
          %3356 = vset.pattern.permute.xlu0 3
          %3357 = vperm.xlu0 %3356, %v2625
          %v3358 = vpop.permute.xlu0 %3357
          %3359 = vset.pattern.permute.xlu0 3
          %3360 = vperm.xlu0 %3359, %v2626
          %v3361 = vpop.permute.xlu0 %3360
          %3362 = vset.pattern.permute.xlu0 3
          %3363 = vperm.xlu0 %3362, %v2627
          %v3364 = vpop.permute.xlu0 %3363
          %3365 = vset.pattern.permute.xlu0 3
          %3366 = vperm.xlu0 %3365, %v2628
          %v3367 = vpop.permute.xlu0 %3366
          %vm3368 = vcmp.eq.s32.totalorder %v3322, %v2790
          %vm3369 = vcmp.eq.s32.totalorder %v3325, %v2790
          %vm3370 = vcmp.eq.s32.totalorder %v3328, %v2790
          %vm3371 = vcmp.eq.s32.totalorder %v3331, %v2790
          %vm3372 = vcmp.eq.s32.totalorder %v3334, %v2790
          %vm3373 = vcmp.eq.s32.totalorder %v3337, %v2790
          %vm3374 = vcmp.eq.s32.totalorder %v3340, %v2790
          %vm3375 = vcmp.eq.s32.totalorder %v3343, %v2790
          %vm3376 = vcmp.eq.s32.totalorder %v3346, %v2790
          %vm3377 = vcmp.eq.s32.totalorder %v3349, %v2790
          %vm3378 = vcmp.eq.s32.totalorder %v3352, %v2790
          %vm3379 = vcmp.eq.s32.totalorder %v3355, %v2790
          %vm3380 = vcmp.eq.s32.totalorder %v3358, %v2790
          %vm3381 = vcmp.eq.s32.totalorder %v3361, %v2790
          %vm3382 = vcmp.eq.s32.totalorder %v3364, %v2790
          %vm3383 = vcmp.eq.s32.totalorder %v3367, %v2790
          %3384 = vset.pattern.permute.xlu0 3
          %3385 = vperm.xlu0 %3384, %v2773
          %v3386 = vpop.permute.xlu0 %3385
          %3388 = vset.pattern.permute.xlu0 3
          %3389 = vperm.xlu0 %3388, %v2774
          %v3390 = vpop.permute.xlu0 %3389
          %3392 = vset.pattern.permute.xlu0 3
          %3393 = vperm.xlu0 %3392, %v2775
          %v3394 = vpop.permute.xlu0 %3393
          %3396 = vset.pattern.permute.xlu0 3
          %3397 = vperm.xlu0 %3396, %v2776
          %v3398 = vpop.permute.xlu0 %3397
          %3400 = vset.pattern.permute.xlu0 3
          %3401 = vperm.xlu0 %3400, %v2777
          %v3402 = vpop.permute.xlu0 %3401
          %3404 = vset.pattern.permute.xlu0 3
          %3405 = vperm.xlu0 %3404, %v2778
          %v3406 = vpop.permute.xlu0 %3405
          %3408 = vset.pattern.permute.xlu0 3
          %3409 = vperm.xlu0 %3408, %v2779
          %v3410 = vpop.permute.xlu0 %3409
          %3412 = vset.pattern.permute.xlu0 3
          %3413 = vperm.xlu0 %3412, %v2780
          %v3414 = vpop.permute.xlu0 %3413
          %3416 = vset.pattern.permute.xlu0 3
          %3417 = vperm.xlu0 %3416, %v2781
          %v3418 = vpop.permute.xlu0 %3417
          %3420 = vset.pattern.permute.xlu0 3
          %3421 = vperm.xlu0 %3420, %v2782
          %v3422 = vpop.permute.xlu0 %3421
          %3424 = vset.pattern.permute.xlu0 3
          %3425 = vperm.xlu0 %3424, %v2783
          %v3426 = vpop.permute.xlu0 %3425
          %3428 = vset.pattern.permute.xlu0 3
          %3429 = vperm.xlu0 %3428, %v2784
          %v3430 = vpop.permute.xlu0 %3429
          %3432 = vset.pattern.permute.xlu0 3
          %3433 = vperm.xlu0 %3432, %v2785
          %v3434 = vpop.permute.xlu0 %3433
          %3436 = vset.pattern.permute.xlu0 3
          %3437 = vperm.xlu0 %3436, %v2786
          %v3438 = vpop.permute.xlu0 %3437
          %3440 = vset.pattern.permute.xlu0 3
          %3441 = vperm.xlu0 %3440, %v2787
          %v3442 = vpop.permute.xlu0 %3441
          %3444 = vset.pattern.permute.xlu0 3
          %3445 = vperm.xlu0 %3444, %v2788
          %v3446 = vpop.permute.xlu0 %3445
          %v3448 = vsel %vm3368, %v3386, 0.0
          %v3449 = vsel %vm3369, %v3390, 0.0
          %v3450 = vsel %vm3370, %v3394, 0.0
          %v3451 = vsel %vm3371, %v3398, 0.0
          %v3452 = vsel %vm3372, %v3402, 0.0
          %v3453 = vsel %vm3373, %v3406, 0.0
          %v3454 = vsel %vm3374, %v3410, 0.0
          %v3455 = vsel %vm3375, %v3414, 0.0
          %v3456 = vsel %vm3376, %v3418, 0.0
          %v3457 = vsel %vm3377, %v3422, 0.0
          %v3458 = vsel %vm3378, %v3426, 0.0
          %v3459 = vsel %vm3379, %v3430, 0.0
          %v3460 = vsel %vm3380, %v3434, 0.0
          %v3461 = vsel %vm3381, %v3438, 0.0
          %v3462 = vsel %vm3382, %v3442, 0.0
          %v3463 = vsel %vm3383, %v3446, 0.0
          %v3464 = vadd.f32 %v3304, %v3448
          %v3465 = vadd.f32 %v3305, %v3449
          %v3466 = vadd.f32 %v3306, %v3450
          %v3467 = vadd.f32 %v3307, %v3451
          %v3468 = vadd.f32 %v3308, %v3452
          %v3469 = vadd.f32 %v3309, %v3453
          %v3470 = vadd.f32 %v3310, %v3454
          %v3471 = vadd.f32 %v3311, %v3455
          %v3472 = vadd.f32 %v3312, %v3456
          %v3473 = vadd.f32 %v3313, %v3457
          %v3474 = vadd.f32 %v3314, %v3458
          %v3475 = vadd.f32 %v3315, %v3459
          %v3476 = vadd.f32 %v3316, %v3460
          %v3477 = vadd.f32 %v3317, %v3461
          %v3478 = vadd.f32 %v3318, %v3462
          %v3479 = vadd.f32 %v3319, %v3463
          %s3480 = scalar_lea.vmem %s275, 256
          %3481 = vst [vmem:[%s3480] sm:$0xff] %v3464
          %3482 = vst [vmem:[%s3480 + $0x8] sm:$0xff] %v3465
          %3483 = vst [vmem:[%s3480 + $0x10] sm:$0xff] %v3466
          %3484 = vst [vmem:[%s3480 + $0x18] sm:$0xff] %v3467
          %3485 = vst [vmem:[%s3480 + $0x20] sm:$0xff] %v3468
          %3486 = vst [vmem:[%s3480 + $0x28] sm:$0xff] %v3469
          %3487 = vst [vmem:[%s3480 + $0x30] sm:$0xff] %v3470
          %3488 = vst [vmem:[%s3480 + $0x38] sm:$0xff] %v3471
          %3489 = vst [vmem:[%s3480 + $0x40] sm:$0xff] %v3472
          %3490 = vst [vmem:[%s3480 + $0x48] sm:$0xff] %v3473
          %3491 = vst [vmem:[%s3480 + $0x50] sm:$0xff] %v3474
          %3492 = vst [vmem:[%s3480 + $0x58] sm:$0xff] %v3475
          %3493 = vst [vmem:[%s3480 + $0x60] sm:$0xff] %v3476
          %3494 = vst [vmem:[%s3480 + $0x68] sm:$0xff] %v3477
          %3495 = vst [vmem:[%s3480 + $0x70] sm:$0xff] %v3478
          %3496 = vst [vmem:[%s3480 + $0x78] sm:$0xff] %v3479
        $region85: #{_fwd.1} parent=68 // pred_fallthru
          _
        %s3497 = smul.u32 16, %s18
        %p3498 = scmp.lt.s32.totalorder %s3497, 15
        %s3499 = scalar_select %p3498, %s3497, 15
        %s3500 = smul.addr %s3499, 8
        %s3501 = scalar_lea.vmem %s3, %s3500
        // Predicated region
        $region86: #{_fwd.1} parent=68 // pred_check
          %p3502 = pneg %p122
        $region87: #{_fwd.1} parent=68 // pred_check_branch
          %3504 = sbr.rel (%p3502) target = $region89
        $region88: #{_fwd.1} parent=68 // pred_region
          %s3505 = smul.u32 16, %s18
        $region89: #{_fwd.1} parent=68 // pred_fallthru
          _
        // Predicated region
        $region90: #{_fwd.1} parent=68 // pred_check
          %p3506 = pneg %p122
        $region91: #{_fwd.1} parent=68 // pred_check_branch
          %3508 = sbr.rel (%p3506) target = $region93
        $region92: #{_fwd.1} parent=68 // pred_region
          %s3509 = smul.u32 16, %s18
          %p3510 = scmp.lt.s32.totalorder %s3509, 15
          %s3511 = scalar_select %p3510, %s3509, 15
          %s3512 = smul.addr %s3511, 8
          %s3513 = scalar_lea.vmem %s3, %s3512
        $region93: #{_fwd.1} parent=68 // pred_fallthru
          _
      $region69: #{_fwd.1} parent=5 // pred_fallthru
        _
      %p3514 = scmp.le.s32.totalorder 2, %s9
      // Predicated region
      $region94: #{_fwd.1} parent=5 // pred_check
        %p3515 = pneg %p3514
      $region95: #{_fwd.1} parent=5 // pred_check_branch
        %3517 = sbr.rel (%p3515) target = $region97
      $region96: #{_fwd.1} parent=5 // pred_region
        %s3518 = ssub.s32 %s9, 2
      $region97: #{_fwd.1} parent=5 // pred_fallthru
        _
    $region6: #{_fwd.1} parent=1 // loop_footer
      %s13 = sadd.s32 1, %s9
    $region7: #{_fwd.1} parent=1 // loop_footer_branch
      %8 = sbr.rel target = $region3
    $region8: #{_fwd.1} parent=1 // loop_exit
      _

</llo_original>
